<compile_context>
chip_gen: v7x
topology: tpu7x:2x2x1
jax: 0.10.0
libtpu: 0.0.40
codegen_flags: <defaults>
</compile_context>

<pallas_src>
import functools

import jax
import jax.numpy as jnp
from jax import lax
from jax.experimental import pallas as pl
from jax.experimental.pallas import tpu as pltpu


# ----------------------------------------------------------------------------
# Fused kernel: BiLSTM(+maxpool) over stacked [s1; s2] batch + NLI head
# ----------------------------------------------------------------------------
def nlinet_fused_kernel(x_ref,                              # (T*B2, E)
                        wih_ref, b_ref,                     # (E, 8Hp) (1, 8Hp)
                        whh_f_ref, whh_b_ref,               # (Hp, 4Hp) each
                        w1u_ref, w1v_ref, w1a_ref, w1m_ref, b1_ref,  # (2Hp,fcp) x4, (1,fcp)
                        w2_ref, b2_ref,                     # (fcp, fcp) (1, fcp)
                        w3_ref, b3_ref,                     # (fcp, Cp)  (1, Cp)
                        out_ref,                            # (Bp, Cp)
                        xp_f, xp_b,                         # VMEM scratch (T*B2, 4Hp)
                        *, T: int, B2: int, nonlinear_fc: bool):
    Hp = whh_f_ref.shape[0]          # padded hidden size (multiple of 128)
    G = 4 * Hp                       # gate width per direction
    Bp = B2 // 2

    # ---- hoisted input projections: one fused matmul for both directions ----
    proj = (jnp.dot(x_ref[...], wih_ref[...],
                    preferred_element_type=jnp.float32) + b_ref[...])   # (T*B2, 8Hp)
    xp_f[...] = proj[:, 0:G]         # lane split at a 128-multiple -> free
    xp_b[...] = proj[:, G:2 * G]

    whh_f = whh_f_ref[...]
    whh_b = whh_b_ref[...]

    def cell(pre, h, c, whh):
        # torch.nn.LSTM gate order [i, f, g, o]; Hp-aligned lane slices
        gates = pre + jnp.dot(h, whh, preferred_element_type=jnp.float32)
        i = jax.nn.sigmoid(gates[:, 0 * Hp:1 * Hp])
        f = jax.nn.sigmoid(gates[:, 1 * Hp:2 * Hp])
        g = jnp.tanh(gates[:, 2 * Hp:3 * Hp])
        o = jax.nn.sigmoid(gates[:, 3 * Hp:4 * Hp])
        c_new = f * c + i * g
        h_new = o * jnp.tanh(c_new)
        return h_new, c_new

    zeros = jnp.zeros((B2, Hp), jnp.float32)
    ninf = jnp.full((B2, Hp), -jnp.inf, jnp.float32)

    def body(t, carry):
        h_f, c_f, h_b, c_b, m_f, m_b = carry
        off_f = pl.multiple_of(t * B2, B2)
        off_b = pl.multiple_of((T - 1 - t) * B2, B2)
        h_f, c_f = cell(xp_f[pl.ds(off_f, B2)], h_f, c_f, whh_f)
        h_b, c_b = cell(xp_b[pl.ds(off_b, B2)], h_b, c_b, whh_b)
        return (h_f, c_f, h_b, c_b,
                jnp.maximum(m_f, h_f), jnp.maximum(m_b, h_b))

    carry = (zeros, zeros, zeros, zeros, ninf, ninf)
    _, _, _, _, m_f, m_b = lax.fori_loop(0, T, body, carry, unroll=True)

    # sentence embeddings; rows 0:Bp are the s1 batch, Bp:2Bp the s2 batch.
    emb = jnp.concatenate([m_f, m_b], axis=-1)              # (B2, 2Hp), 128-aligned
    u = emb[0:Bp]
    v = emb[Bp:2 * Bp]

    # ---- NLI head: row-split first layer (no lane-axis feature concat) ------
    h1 = (jnp.dot(u, w1u_ref[...], preferred_element_type=jnp.float32)
          + jnp.dot(v, w1v_ref[...], preferred_element_type=jnp.float32)
          + jnp.dot(jnp.abs(u - v), w1a_ref[...], preferred_element_type=jnp.float32)
          + jnp.dot(u * v, w1m_ref[...], preferred_element_type=jnp.float32)
          + b1_ref[...])
    if nonlinear_fc:
        h1 = jnp.tanh(h1)
    h2 = jnp.dot(h1, w2_ref[...], preferred_element_type=jnp.float32) + b2_ref[...]
    if nonlinear_fc:
        h2 = jnp.tanh(h2)
    out_ref[...] = (jnp.dot(h2, w3_ref[...], preferred_element_type=jnp.float32)
                    + b3_ref[...])


# ----------------------------------------------------------------------------
# Wrapper: layout plumbing (padding / weight reorg) + single pallas_call
# ----------------------------------------------------------------------------
def _round_up(x, m):
    return ((x + m - 1) // m) * m


def _pad_gate_cols(w, H, Hp):
    """Zero-pad each of the 4 stacked [i,f,g,o] gate blocks (last dim) H -> Hp."""
    lead = w.shape[:-1]
    w4 = w.reshape(lead + (4, H))
    w4 = jnp.pad(w4, [(0, 0)] * len(lead) + [(0, 0), (0, Hp - H)])
    return w4.reshape(lead + (4 * Hp,))


@functools.partial(jax.jit, static_argnames=("nonlinear_fc",))
def nlinet_forward(s1, s2, enc_params, cls_params, nonlinear_fc=True):
    T, B, E = s1.shape
    H = enc_params["whh_f"].shape[0]
    fc = cls_params["w2"].shape[0]
    C = cls_params["w3"].shape[1]

    Hp = _round_up(H, 128)           # lane-align gates / embeddings
    Bp = _round_up(B, 8)             # sublane-align batch
    B2 = 2 * Bp                      # s1 and s2 stacked along batch
    fcp = _round_up(fc, 128)
    Cp = _round_up(C, 128)           # lane-dense logits output
    f32 = jnp.float32

    # ---- encoder weights: pad hidden dim so each gate block is 128-aligned --
    wih_f = _pad_gate_cols(enc_params["wih_f"].astype(f32), H, Hp)
    wih_b = _pad_gate_cols(enc_params["wih_b"].astype(f32), H, Hp)
    b_f = _pad_gate_cols(enc_params["b_f"].astype(f32), H, Hp)
    b_b = _pad_gate_cols(enc_params["b_b"].astype(f32), H, Hp)
    # fused input-projection weight / bias for both directions: (E, 8Hp)
    wih = jnp.concatenate([wih_f, wih_b], axis=1)
    b = jnp.concatenate([b_f, b_b], axis=1)
    whh_f = _pad_gate_cols(
        jnp.pad(enc_params["whh_f"].astype(f32), ((0, Hp - H), (0, 0))), H, Hp)
    whh_b = _pad_gate_cols(
        jnp.pad(enc_params["whh_b"].astype(f32), ((0, Hp - H), (0, 0))), H, Hp)

    # ---- classifier: split first layer by feature block (u, v, |u-v|, u*v) --
    w1 = cls_params["w1"].astype(f32).reshape(4, 2, H, fc)   # (feat, dir, H, fc)
    w1 = jnp.pad(w1, ((0, 0), (0, 0), (0, Hp - H), (0, fcp - fc)))
    w1u, w1v, w1a, w1m = [w1[i].reshape(2 * Hp, fcp) for i in range(4)]
    b1 = jnp.pad(cls_params["b1"].astype(f32), ((0, 0), (0, fcp - fc)))
    w2 = jnp.pad(cls_params["w2"].astype(f32), ((0, fcp - fc), (0, fcp - fc)))
    b2 = jnp.pad(cls_params["b2"].astype(f32), ((0, 0), (0, fcp - fc)))
    w3 = jnp.pad(cls_params["w3"].astype(f32), ((0, fcp - fc), (0, Cp - C)))
    b3 = jnp.pad(cls_params["b3"].astype(f32), ((0, 0), (0, Cp - C)))

    # ---- stack s1 & s2 along (padded) batch: one encoder pass for both ------
    s1p = jnp.pad(s1.astype(f32), ((0, 0), (0, Bp - B), (0, 0)))
    s2p = jnp.pad(s2.astype(f32), ((0, 0), (0, Bp - B), (0, 0)))
    x = jnp.concatenate([s1p, s2p], axis=1).reshape(T * B2, E)

    kernel = functools.partial(nlinet_fused_kernel,
                               T=T, B2=B2, nonlinear_fc=nonlinear_fc)
    vmem = pl.BlockSpec(memory_space=pltpu.MemorySpace.VMEM)
    out_padded = pl.pallas_call(
        kernel,
        out_shape=jax.ShapeDtypeStruct((Bp, Cp), jnp.float32),
        in_specs=[vmem] * 14,
        out_specs=vmem,
        scratch_shapes=[pltpu.VMEM((T * B2, 4 * Hp), jnp.float32),
                        pltpu.VMEM((T * B2, 4 * Hp), jnp.float32)],
    )(x, wih, b, whh_f, whh_b,
      w1u, w1v, w1a, w1m, b1, w2, b2, w3, b3)

    return out_padded[:B, :C]


# ----------------------------------------------------------------------------
# Pure-JAX reference (for correctness check)
# ----------------------------------------------------------------------------
def nlinet_reference(s1, s2, enc_params, cls_params, nonlinear_fc=True):
    H = enc_params["whh_f"].shape[0]

    def run_dir(wih, whh, b, xs):
        B = xs.shape[1]

        def step(carry, x_t):
            h, c = carry
            gates = x_t @ wih + h @ whh + b
            i = jax.nn.sigmoid(gates[:, 0 * H:1 * H])
            f = jax.nn.sigmoid(gates[:, 1 * H:2 * H])
            g = jnp.tanh(gates[:, 2 * H:3 * H])
            o = jax.nn.sigmoid(gates[:, 3 * H:4 * H])
            c = f * c + i * g
            h = o * jnp.tanh(c)
            return (h, c), h

        init = (jnp.zeros((B, H), jnp.float32), jnp.zeros((B, H), jnp.float32))
        _, hs = lax.scan(step, init, xs)
        return hs                                           # (T, B, H)

    def encode(x):
        h_f = run_dir(enc_params["wih_f"], enc_params["whh_f"], enc_params["b_f"], x)
        h_b = run_dir(enc_params["wih_b"], enc_params["whh_b"], enc_params["b_b"], x[::-1])
        return jnp.concatenate([h_f, h_b[::-1]], axis=-1).max(axis=0)   # (B, 2H)

    u, v = encode(s1), encode(s2)
    feats = jnp.concatenate([u, v, jnp.abs(u - v), u * v], axis=1)
    h = feats @ cls_params["w1"] + cls_params["b1"]
    if nonlinear_fc:
        h = jnp.tanh(h)
    h = h @ cls_params["w2"] + cls_params["b2"]
    if nonlinear_fc:
        h = jnp.tanh(h)
    return h @ cls_params["w3"] + cls_params["b3"]


# ----------------------------------------------------------------------------
# Deterministic parameter initialization (synthetic weights, no checkpoint)
# ----------------------------------------------------------------------------
def init_params(key, word_emb_dim, enc_lstm_dim, fc_dim, n_classes):
    E, H = word_emb_dim, enc_lstm_dim
    inputdim = 4 * 2 * H
    ks = jax.random.split(key, 12)

    def w(k, shape, fan_in):
        return (jax.random.normal(k, shape, jnp.float32) / jnp.sqrt(fan_in)).astype(jnp.float32)

    enc_params = {
        "wih_f": w(ks[0], (E, 4 * H), E),
        "whh_f": w(ks[1], (H, 4 * H), H),
        "b_f":   w(ks[2], (1, 4 * H), H),
        "wih_b": w(ks[3], (E, 4 * H), E),
        "whh_b": w(ks[4], (H, 4 * H), H),
        "b_b":   w(ks[5], (1, 4 * H), H),
    }
    cls_params = {
        "w1": w(ks[6], (inputdim, fc_dim), inputdim),
        "b1": w(ks[7], (1, fc_dim), inputdim),
        "w2": w(ks[8], (fc_dim, fc_dim), fc_dim),
        "b2": w(ks[9], (1, fc_dim), fc_dim),
        "w3": w(ks[10], (fc_dim, n_classes), fc_dim),
        "b3": w(ks[11], (1, n_classes), fc_dim),
    }
    return enc_params, cls_params


if __name__ == "__main__":
    # small shapes consistent with the module
    T, B = 8, 2                 # seq length, batch
    word_emb_dim = 16
    enc_lstm_dim = 32           # -> embedding dim 2*32 = 64, inputdim = 256
    fc_dim = 128
    n_classes = 3
    nonlinear_fc = True

    key = jax.random.PRNGKey(0)
    k_p, k_s1, k_s2 = jax.random.split(key, 3)
    enc_params, cls_params = init_params(k_p, word_emb_dim, enc_lstm_dim,
                                         fc_dim, n_classes)

    s1 = jax.random.normal(k_s1, (T, B, word_emb_dim), jnp.float32)
    s2 = jax.random.normal(k_s2, (T, B, word_emb_dim), jnp.float32)

    out = nlinet_forward(s1, s2, enc_params, cls_params,
                         nonlinear_fc=nonlinear_fc)
    out = jax.block_until_ready(out)

    assert out.shape == (B, n_classes), out.shape
    assert out.dtype == jnp.float32
    assert bool(jnp.all(jnp.isfinite(out)))

    ref = nlinet_reference(s1, s2, enc_params, cls_params,
                           nonlinear_fc=nonlinear_fc)
    assert bool(jnp.allclose(out, ref, rtol=5e-2, atol=5e-2)), (out, ref)

    print("KERNEL_OK")
</pallas_src>

<mosaic_0001>
module attributes {stable_mosaic.version = 11 : i64} {
  func.func @nlinet_fused_kernel(%arg0: memref<128x16xf32, #tpu.memory_space<vmem>>, %arg1: memref<16x1024xf32, #tpu.memory_space<vmem>>, %arg2: memref<1x1024xf32, #tpu.memory_space<vmem>>, %arg3: memref<128x512xf32, #tpu.memory_space<vmem>>, %arg4: memref<128x512xf32, #tpu.memory_space<vmem>>, %arg5: memref<256x128xf32, #tpu.memory_space<vmem>>, %arg6: memref<256x128xf32, #tpu.memory_space<vmem>>, %arg7: memref<256x128xf32, #tpu.memory_space<vmem>>, %arg8: memref<256x128xf32, #tpu.memory_space<vmem>>, %arg9: memref<1x128xf32, #tpu.memory_space<vmem>>, %arg10: memref<128x128xf32, #tpu.memory_space<vmem>>, %arg11: memref<1x128xf32, #tpu.memory_space<vmem>>, %arg12: memref<128x128xf32, #tpu.memory_space<vmem>>, %arg13: memref<1x128xf32, #tpu.memory_space<vmem>>, %arg14: memref<8x128xf32, #tpu.memory_space<vmem>>, %arg15: memref<128x512xf32, #tpu.memory_space<vmem>>, %arg16: memref<128x512xf32, #tpu.memory_space<vmem>>) attributes {dimension_semantics = [], scalar_prefetch = 0 : i64, scratch_operands = 2 : i64, tpu.core_type = #tpu.core_type<tc>} {
    %c0 = arith.constant 0 : index
    %c0_0 = arith.constant 0 : index
    %0 = vector.load %arg0[%c0, %c0_0] : memref<128x16xf32, #tpu.memory_space<vmem>>, vector<128x16xf32>
    %c0_1 = arith.constant 0 : index
    %c0_2 = arith.constant 0 : index
    %1 = vector.load %arg1[%c0_1, %c0_2] : memref<16x1024xf32, #tpu.memory_space<vmem>>, vector<16x1024xf32>
    %cst = arith.constant dense<0.000000e+00> : vector<128x1024xf32>
    %2 = tpu.matmul %0, %1, %cst {dimension_numbers = #tpu.dot_dimension_numbers<[1], [0], [0], [1], [0, 0, 1, 1], [], []>} : vector<128x16xf32>, vector<16x1024xf32>, vector<128x1024xf32> -> vector<128x1024xf32>
    %c0_3 = arith.constant 0 : index
    %c0_4 = arith.constant 0 : index
    %3 = vector.load %arg2[%c0_3, %c0_4] : memref<1x1024xf32, #tpu.memory_space<vmem>>, vector<1x1024xf32>
    %4 = vector.broadcast %3 : vector<1x1024xf32> to vector<128x1024xf32>
    %5 = arith.addf %2, %4 : vector<128x1024xf32>
    %6 = vector.extract_strided_slice %5 {offsets = [0, 0], sizes = [128, 512], strides = [1, 1]} : vector<128x1024xf32> to vector<128x512xf32>
    %c0_5 = arith.constant 0 : index
    %c0_6 = arith.constant 0 : index
    %7 = vector.load %arg15[%c0_5, %c0_6] : memref<128x512xf32, #tpu.memory_space<vmem>>, vector<128x512xf32>
    tpu.vector_store %arg15[%c0_5, %c0_6], %6 {strides = array<i32>} : memref<128x512xf32, #tpu.memory_space<vmem>>, vector<128x512xf32>,
    %8 = vector.extract_strided_slice %5 {offsets = [0, 512], sizes = [128, 512], strides = [1, 1]} : vector<128x1024xf32> to vector<128x512xf32>
    %c0_7 = arith.constant 0 : index
    %c0_8 = arith.constant 0 : index
    %9 = vector.load %arg16[%c0_7, %c0_8] : memref<128x512xf32, #tpu.memory_space<vmem>>, vector<128x512xf32>
    tpu.vector_store %arg16[%c0_7, %c0_8], %8 {strides = array<i32>} : memref<128x512xf32, #tpu.memory_space<vmem>>, vector<128x512xf32>,
    %c0_9 = arith.constant 0 : index
    %c0_10 = arith.constant 0 : index
    %10 = vector.load %arg3[%c0_9, %c0_10] : memref<128x512xf32, #tpu.memory_space<vmem>>, vector<128x512xf32>
    %c0_11 = arith.constant 0 : index
    %c0_12 = arith.constant 0 : index
    %11 = vector.load %arg4[%c0_11, %c0_12] : memref<128x512xf32, #tpu.memory_space<vmem>>, vector<128x512xf32>
    %cst_13 = arith.constant 0.000000e+00 : f32
    %12 = vector.broadcast %cst_13 : f32 to vector<16x128xf32>
    %cst_14 = arith.constant 0xFF800000 : f32
    %13 = vector.broadcast %cst_14 : f32 to vector<16x128xf32>
    %c0_i32 = arith.constant 0 : i32
    %c16_i32 = arith.constant 16 : i32
    %14 = arith.muli %c0_i32, %c16_i32 : i32
    %15 = tpu.assume_multiple %14, 16 : i32
    %c7_i32 = arith.constant 7 : i32
    %16 = arith.subi %c7_i32, %c0_i32 : i32
    %c16_i32_15 = arith.constant 16 : i32
    %17 = arith.muli %16, %c16_i32_15 : i32
    %18 = tpu.assume_multiple %17, 16 : i32
    %19 = arith.index_cast %15 : i32 to index
    %c0_16 = arith.constant 0 : index
    %20 = vector.load %arg15[%19, %c0_16] : memref<128x512xf32, #tpu.memory_space<vmem>>, vector<16x512xf32>
    %cst_17 = arith.constant dense<0.000000e+00> : vector<16x512xf32>
    %21 = tpu.matmul %12, %10, %cst_17 {dimension_numbers = #tpu.dot_dimension_numbers<[1], [0], [0], [1], [0, 0, 1, 1], [], []>} : vector<16x128xf32>, vector<128x512xf32>, vector<16x512xf32> -> vector<16x512xf32>
    %22 = arith.addf %20, %21 : vector<16x512xf32>
    %23 = vector.extract_strided_slice %22 {offsets = [0, 0], sizes = [16, 128], strides = [1, 1]} : vector<16x512xf32> to vector<16x128xf32>
    %24 = arith.negf %23 : vector<16x128xf32>
    %25 = math.exp %24 : vector<16x128xf32>
    %cst_18 = arith.constant 1.000000e+00 : f32
    %26 = vector.broadcast %cst_18 : f32 to vector<16x128xf32>
    %27 = arith.addf %26, %25 : vector<16x128xf32>
    %28 = arith.divf %26, %27 : vector<16x128xf32>
    %29 = vector.extract_strided_slice %22 {offsets = [0, 128], sizes = [16, 128], strides = [1, 1]} : vector<16x512xf32> to vector<16x128xf32>
    %30 = arith.negf %29 : vector<16x128xf32>
    %31 = math.exp %30 : vector<16x128xf32>
    %cst_19 = arith.constant 1.000000e+00 : f32
    %32 = vector.broadcast %cst_19 : f32 to vector<16x128xf32>
    %33 = arith.addf %32, %31 : vector<16x128xf32>
    %34 = arith.divf %32, %33 : vector<16x128xf32>
    %35 = vector.extract_strided_slice %22 {offsets = [0, 256], sizes = [16, 128], strides = [1, 1]} : vector<16x512xf32> to vector<16x128xf32>
    %36 = math.tanh %35 : vector<16x128xf32>
    %37 = vector.extract_strided_slice %22 {offsets = [0, 384], sizes = [16, 128], strides = [1, 1]} : vector<16x512xf32> to vector<16x128xf32>
    %38 = arith.negf %37 : vector<16x128xf32>
    %39 = math.exp %38 : vector<16x128xf32>
    %cst_20 = arith.constant 1.000000e+00 : f32
    %40 = vector.broadcast %cst_20 : f32 to vector<16x128xf32>
    %41 = arith.addf %40, %39 : vector<16x128xf32>
    %42 = arith.divf %40, %41 : vector<16x128xf32>
    %43 = arith.mulf %34, %12 : vector<16x128xf32>
    %44 = arith.mulf %28, %36 : vector<16x128xf32>
    %45 = arith.addf %43, %44 : vector<16x128xf32>
    %46 = math.tanh %45 : vector<16x128xf32>
    %47 = arith.mulf %42, %46 : vector<16x128xf32>
    %48 = arith.index_cast %18 : i32 to index
    %c0_21 = arith.constant 0 : index
    %49 = vector.load %arg16[%48, %c0_21] : memref<128x512xf32, #tpu.memory_space<vmem>>, vector<16x512xf32>
    %cst_22 = arith.constant dense<0.000000e+00> : vector<16x512xf32>
    %50 = tpu.matmul %12, %11, %cst_22 {dimension_numbers = #tpu.dot_dimension_numbers<[1], [0], [0], [1], [0, 0, 1, 1], [], []>} : vector<16x128xf32>, vector<128x512xf32>, vector<16x512xf32> -> vector<16x512xf32>
    %51 = arith.addf %49, %50 : vector<16x512xf32>
    %52 = vector.extract_strided_slice %51 {offsets = [0, 0], sizes = [16, 128], strides = [1, 1]} : vector<16x512xf32> to vector<16x128xf32>
    %53 = arith.negf %52 : vector<16x128xf32>
    %54 = math.exp %53 : vector<16x128xf32>
    %cst_23 = arith.constant 1.000000e+00 : f32
    %55 = vector.broadcast %cst_23 : f32 to vector<16x128xf32>
    %56 = arith.addf %55, %54 : vector<16x128xf32>
    %57 = arith.divf %55, %56 : vector<16x128xf32>
    %58 = vector.extract_strided_slice %51 {offsets = [0, 128], sizes = [16, 128], strides = [1, 1]} : vector<16x512xf32> to vector<16x128xf32>
    %59 = arith.negf %58 : vector<16x128xf32>
    %60 = math.exp %59 : vector<16x128xf32>
    %cst_24 = arith.constant 1.000000e+00 : f32
    %61 = vector.broadcast %cst_24 : f32 to vector<16x128xf32>
    %62 = arith.addf %61, %60 : vector<16x128xf32>
    %63 = arith.divf %61, %62 : vector<16x128xf32>
    %64 = vector.extract_strided_slice %51 {offsets = [0, 256], sizes = [16, 128], strides = [1, 1]} : vector<16x512xf32> to vector<16x128xf32>
    %65 = math.tanh %64 : vector<16x128xf32>
    %66 = vector.extract_strided_slice %51 {offsets = [0, 384], sizes = [16, 128], strides = [1, 1]} : vector<16x512xf32> to vector<16x128xf32>
    %67 = arith.negf %66 : vector<16x128xf32>
    %68 = math.exp %67 : vector<16x128xf32>
    %cst_25 = arith.constant 1.000000e+00 : f32
    %69 = vector.broadcast %cst_25 : f32 to vector<16x128xf32>
    %70 = arith.addf %69, %68 : vector<16x128xf32>
    %71 = arith.divf %69, %70 : vector<16x128xf32>
    %72 = arith.mulf %63, %12 : vector<16x128xf32>
    %73 = arith.mulf %57, %65 : vector<16x128xf32>
    %74 = arith.addf %72, %73 : vector<16x128xf32>
    %75 = math.tanh %74 : vector<16x128xf32>
    %76 = arith.mulf %71, %75 : vector<16x128xf32>
    %77 = arith.maximumf %13, %47 : vector<16x128xf32>
    %78 = arith.maximumf %13, %76 : vector<16x128xf32>
    %c1_i32 = arith.constant 1 : i32
    %c16_i32_26 = arith.constant 16 : i32
    %79 = arith.muli %c1_i32, %c16_i32_26 : i32
    %80 = tpu.assume_multiple %79, 16 : i32
    %c7_i32_27 = arith.constant 7 : i32
    %81 = arith.subi %c7_i32_27, %c1_i32 : i32
    %c16_i32_28 = arith.constant 16 : i32
    %82 = arith.muli %81, %c16_i32_28 : i32
    %83 = tpu.assume_multiple %82, 16 : i32
    %84 = arith.index_cast %80 : i32 to index
    %c0_29 = arith.constant 0 : index
    %85 = vector.load %arg15[%84, %c0_29] : memref<128x512xf32, #tpu.memory_space<vmem>>, vector<16x512xf32>
    %cst_30 = arith.constant dense<0.000000e+00> : vector<16x512xf32>
    %86 = tpu.matmul %47, %10, %cst_30 {dimension_numbers = #tpu.dot_dimension_numbers<[1], [0], [0], [1], [0, 0, 1, 1], [], []>} : vector<16x128xf32>, vector<128x512xf32>, vector<16x512xf32> -> vector<16x512xf32>
    %87 = arith.addf %85, %86 : vector<16x512xf32>
    %88 = vector.extract_strided_slice %87 {offsets = [0, 0], sizes = [16, 128], strides = [1, 1]} : vector<16x512xf32> to vector<16x128xf32>
    %89 = arith.negf %88 : vector<16x128xf32>
    %90 = math.exp %89 : vector<16x128xf32>
    %cst_31 = arith.constant 1.000000e+00 : f32
    %91 = vector.broadcast %cst_31 : f32 to vector<16x128xf32>
    %92 = arith.addf %91, %90 : vector<16x128xf32>
    %93 = arith.divf %91, %92 : vector<16x128xf32>
    %94 = vector.extract_strided_slice %87 {offsets = [0, 128], sizes = [16, 128], strides = [1, 1]} : vector<16x512xf32> to vector<16x128xf32>
    %95 = arith.negf %94 : vector<16x128xf32>
    %96 = math.exp %95 : vector<16x128xf32>
    %cst_32 = arith.constant 1.000000e+00 : f32
    %97 = vector.broadcast %cst_32 : f32 to vector<16x128xf32>
    %98 = arith.addf %97, %96 : vector<16x128xf32>
    %99 = arith.divf %97, %98 : vector<16x128xf32>
    %100 = vector.extract_strided_slice %87 {offsets = [0, 256], sizes = [16, 128], strides = [1, 1]} : vector<16x512xf32> to vector<16x128xf32>
    %101 = math.tanh %100 : vector<16x128xf32>
    %102 = vector.extract_strided_slice %87 {offsets = [0, 384], sizes = [16, 128], strides = [1, 1]} : vector<16x512xf32> to vector<16x128xf32>
    %103 = arith.negf %102 : vector<16x128xf32>
    %104 = math.exp %103 : vector<16x128xf32>
    %cst_33 = arith.constant 1.000000e+00 : f32
    %105 = vector.broadcast %cst_33 : f32 to vector<16x128xf32>
    %106 = arith.addf %105, %104 : vector<16x128xf32>
    %107 = arith.divf %105, %106 : vector<16x128xf32>
    %108 = arith.mulf %99, %45 : vector<16x128xf32>
    %109 = arith.mulf %93, %101 : vector<16x128xf32>
    %110 = arith.addf %108, %109 : vector<16x128xf32>
    %111 = math.tanh %110 : vector<16x128xf32>
    %112 = arith.mulf %107, %111 : vector<16x128xf32>
    %113 = arith.index_cast %83 : i32 to index
    %c0_34 = arith.constant 0 : index
    %114 = vector.load %arg16[%113, %c0_34] : memref<128x512xf32, #tpu.memory_space<vmem>>, vector<16x512xf32>
    %cst_35 = arith.constant dense<0.000000e+00> : vector<16x512xf32>
    %115 = tpu.matmul %76, %11, %cst_35 {dimension_numbers = #tpu.dot_dimension_numbers<[1], [0], [0], [1], [0, 0, 1, 1], [], []>} : vector<16x128xf32>, vector<128x512xf32>, vector<16x512xf32> -> vector<16x512xf32>
    %116 = arith.addf %114, %115 : vector<16x512xf32>
    %117 = vector.extract_strided_slice %116 {offsets = [0, 0], sizes = [16, 128], strides = [1, 1]} : vector<16x512xf32> to vector<16x128xf32>
    %118 = arith.negf %117 : vector<16x128xf32>
    %119 = math.exp %118 : vector<16x128xf32>
    %cst_36 = arith.constant 1.000000e+00 : f32
    %120 = vector.broadcast %cst_36 : f32 to vector<16x128xf32>
    %121 = arith.addf %120, %119 : vector<16x128xf32>
    %122 = arith.divf %120, %121 : vector<16x128xf32>
    %123 = vector.extract_strided_slice %116 {offsets = [0, 128], sizes = [16, 128], strides = [1, 1]} : vector<16x512xf32> to vector<16x128xf32>
    %124 = arith.negf %123 : vector<16x128xf32>
    %125 = math.exp %124 : vector<16x128xf32>
    %cst_37 = arith.constant 1.000000e+00 : f32
    %126 = vector.broadcast %cst_37 : f32 to vector<16x128xf32>
    %127 = arith.addf %126, %125 : vector<16x128xf32>
    %128 = arith.divf %126, %127 : vector<16x128xf32>
    %129 = vector.extract_strided_slice %116 {offsets = [0, 256], sizes = [16, 128], strides = [1, 1]} : vector<16x512xf32> to vector<16x128xf32>
    %130 = math.tanh %129 : vector<16x128xf32>
    %131 = vector.extract_strided_slice %116 {offsets = [0, 384], sizes = [16, 128], strides = [1, 1]} : vector<16x512xf32> to vector<16x128xf32>
    %132 = arith.negf %131 : vector<16x128xf32>
    %133 = math.exp %132 : vector<16x128xf32>
    %cst_38 = arith.constant 1.000000e+00 : f32
    %134 = vector.broadcast %cst_38 : f32 to vector<16x128xf32>
    %135 = arith.addf %134, %133 : vector<16x128xf32>
    %136 = arith.divf %134, %135 : vector<16x128xf32>
    %137 = arith.mulf %128, %74 : vector<16x128xf32>
    %138 = arith.mulf %122, %130 : vector<16x128xf32>
    %139 = arith.addf %137, %138 : vector<16x128xf32>
    %140 = math.tanh %139 : vector<16x128xf32>
    %141 = arith.mulf %136, %140 : vector<16x128xf32>
    %142 = arith.maximumf %77, %112 : vector<16x128xf32>
    %143 = arith.maximumf %78, %141 : vector<16x128xf32>
    %c2_i32 = arith.constant 2 : i32
    %c16_i32_39 = arith.constant 16 : i32
    %144 = arith.muli %c2_i32, %c16_i32_39 : i32
    %145 = tpu.assume_multiple %144, 16 : i32
    %c7_i32_40 = arith.constant 7 : i32
    %146 = arith.subi %c7_i32_40, %c2_i32 : i32
    %c16_i32_41 = arith.constant 16 : i32
    %147 = arith.muli %146, %c16_i32_41 : i32
    %148 = tpu.assume_multiple %147, 16 : i32
    %149 = arith.index_cast %145 : i32 to index
    %c0_42 = arith.constant 0 : index
    %150 = vector.load %arg15[%149, %c0_42] : memref<128x512xf32, #tpu.memory_space<vmem>>, vector<16x512xf32>
    %cst_43 = arith.constant dense<0.000000e+00> : vector<16x512xf32>
    %151 = tpu.matmul %112, %10, %cst_43 {dimension_numbers = #tpu.dot_dimension_numbers<[1], [0], [0], [1], [0, 0, 1, 1], [], []>} : vector<16x128xf32>, vector<128x512xf32>, vector<16x512xf32> -> vector<16x512xf32>
    %152 = arith.addf %150, %151 : vector<16x512xf32>
    %153 = vector.extract_strided_slice %152 {offsets = [0, 0], sizes = [16, 128], strides = [1, 1]} : vector<16x512xf32> to vector<16x128xf32>
    %154 = arith.negf %153 : vector<16x128xf32>
    %155 = math.exp %154 : vector<16x128xf32>
    %cst_44 = arith.constant 1.000000e+00 : f32
    %156 = vector.broadcast %cst_44 : f32 to vector<16x128xf32>
    %157 = arith.addf %156, %155 : vector<16x128xf32>
    %158 = arith.divf %156, %157 : vector<16x128xf32>
    %159 = vector.extract_strided_slice %152 {offsets = [0, 128], sizes = [16, 128], strides = [1, 1]} : vector<16x512xf32> to vector<16x128xf32>
    %160 = arith.negf %159 : vector<16x128xf32>
    %161 = math.exp %160 : vector<16x128xf32>
    %cst_45 = arith.constant 1.000000e+00 : f32
    %162 = vector.broadcast %cst_45 : f32 to vector<16x128xf32>
    %163 = arith.addf %162, %161 : vector<16x128xf32>
    %164 = arith.divf %162, %163 : vector<16x128xf32>
    %165 = vector.extract_strided_slice %152 {offsets = [0, 256], sizes = [16, 128], strides = [1, 1]} : vector<16x512xf32> to vector<16x128xf32>
    %166 = math.tanh %165 : vector<16x128xf32>
    %167 = vector.extract_strided_slice %152 {offsets = [0, 384], sizes = [16, 128], strides = [1, 1]} : vector<16x512xf32> to vector<16x128xf32>
    %168 = arith.negf %167 : vector<16x128xf32>
    %169 = math.exp %168 : vector<16x128xf32>
    %cst_46 = arith.constant 1.000000e+00 : f32
    %170 = vector.broadcast %cst_46 : f32 to vector<16x128xf32>
    %171 = arith.addf %170, %169 : vector<16x128xf32>
    %172 = arith.divf %170, %171 : vector<16x128xf32>
    %173 = arith.mulf %164, %110 : vector<16x128xf32>
    %174 = arith.mulf %158, %166 : vector<16x128xf32>
    %175 = arith.addf %173, %174 : vector<16x128xf32>
    %176 = math.tanh %175 : vector<16x128xf32>
    %177 = arith.mulf %172, %176 : vector<16x128xf32>
    %178 = arith.index_cast %148 : i32 to index
    %c0_47 = arith.constant 0 : index
    %179 = vector.load %arg16[%178, %c0_47] : memref<128x512xf32, #tpu.memory_space<vmem>>, vector<16x512xf32>
    %cst_48 = arith.constant dense<0.000000e+00> : vector<16x512xf32>
    %180 = tpu.matmul %141, %11, %cst_48 {dimension_numbers = #tpu.dot_dimension_numbers<[1], [0], [0], [1], [0, 0, 1, 1], [], []>} : vector<16x128xf32>, vector<128x512xf32>, vector<16x512xf32> -> vector<16x512xf32>
    %181 = arith.addf %179, %180 : vector<16x512xf32>
    %182 = vector.extract_strided_slice %181 {offsets = [0, 0], sizes = [16, 128], strides = [1, 1]} : vector<16x512xf32> to vector<16x128xf32>
    %183 = arith.negf %182 : vector<16x128xf32>
    %184 = math.exp %183 : vector<16x128xf32>
    %cst_49 = arith.constant 1.000000e+00 : f32
    %185 = vector.broadcast %cst_49 : f32 to vector<16x128xf32>
    %186 = arith.addf %185, %184 : vector<16x128xf32>
    %187 = arith.divf %185, %186 : vector<16x128xf32>
    %188 = vector.extract_strided_slice %181 {offsets = [0, 128], sizes = [16, 128], strides = [1, 1]} : vector<16x512xf32> to vector<16x128xf32>
    %189 = arith.negf %188 : vector<16x128xf32>
    %190 = math.exp %189 : vector<16x128xf32>
    %cst_50 = arith.constant 1.000000e+00 : f32
    %191 = vector.broadcast %cst_50 : f32 to vector<16x128xf32>
    %192 = arith.addf %191, %190 : vector<16x128xf32>
    %193 = arith.divf %191, %192 : vector<16x128xf32>
    %194 = vector.extract_strided_slice %181 {offsets = [0, 256], sizes = [16, 128], strides = [1, 1]} : vector<16x512xf32> to vector<16x128xf32>
    %195 = math.tanh %194 : vector<16x128xf32>
    %196 = vector.extract_strided_slice %181 {offsets = [0, 384], sizes = [16, 128], strides = [1, 1]} : vector<16x512xf32> to vector<16x128xf32>
    %197 = arith.negf %196 : vector<16x128xf32>
    %198 = math.exp %197 : vector<16x128xf32>
    %cst_51 = arith.constant 1.000000e+00 : f32
    %199 = vector.broadcast %cst_51 : f32 to vector<16x128xf32>
    %200 = arith.addf %199, %198 : vector<16x128xf32>
    %201 = arith.divf %199, %200 : vector<16x128xf32>
    %202 = arith.mulf %193, %139 : vector<16x128xf32>
    %203 = arith.mulf %187, %195 : vector<16x128xf32>
    %204 = arith.addf %202, %203 : vector<16x128xf32>
    %205 = math.tanh %204 : vector<16x128xf32>
    %206 = arith.mulf %201, %205 : vector<16x128xf32>
    %207 = arith.maximumf %142, %177 : vector<16x128xf32>
    %208 = arith.maximumf %143, %206 : vector<16x128xf32>
    %c3_i32 = arith.constant 3 : i32
    %c16_i32_52 = arith.constant 16 : i32
    %209 = arith.muli %c3_i32, %c16_i32_52 : i32
    %210 = tpu.assume_multiple %209, 16 : i32
    %c7_i32_53 = arith.constant 7 : i32
    %211 = arith.subi %c7_i32_53, %c3_i32 : i32
    %c16_i32_54 = arith.constant 16 : i32
    %212 = arith.muli %211, %c16_i32_54 : i32
    %213 = tpu.assume_multiple %212, 16 : i32
    %214 = arith.index_cast %210 : i32 to index
    %c0_55 = arith.constant 0 : index
    %215 = vector.load %arg15[%214, %c0_55] : memref<128x512xf32, #tpu.memory_space<vmem>>, vector<16x512xf32>
    %cst_56 = arith.constant dense<0.000000e+00> : vector<16x512xf32>
    %216 = tpu.matmul %177, %10, %cst_56 {dimension_numbers = #tpu.dot_dimension_numbers<[1], [0], [0], [1], [0, 0, 1, 1], [], []>} : vector<16x128xf32>, vector<128x512xf32>, vector<16x512xf32> -> vector<16x512xf32>
    %217 = arith.addf %215, %216 : vector<16x512xf32>
    %218 = vector.extract_strided_slice %217 {offsets = [0, 0], sizes = [16, 128], strides = [1, 1]} : vector<16x512xf32> to vector<16x128xf32>
    %219 = arith.negf %218 : vector<16x128xf32>
    %220 = math.exp %219 : vector<16x128xf32>
    %cst_57 = arith.constant 1.000000e+00 : f32
    %221 = vector.broadcast %cst_57 : f32 to vector<16x128xf32>
    %222 = arith.addf %221, %220 : vector<16x128xf32>
    %223 = arith.divf %221, %222 : vector<16x128xf32>
    %224 = vector.extract_strided_slice %217 {offsets = [0, 128], sizes = [16, 128], strides = [1, 1]} : vector<16x512xf32> to vector<16x128xf32>
    %225 = arith.negf %224 : vector<16x128xf32>
    %226 = math.exp %225 : vector<16x128xf32>
    %cst_58 = arith.constant 1.000000e+00 : f32
    %227 = vector.broadcast %cst_58 : f32 to vector<16x128xf32>
    %228 = arith.addf %227, %226 : vector<16x128xf32>
    %229 = arith.divf %227, %228 : vector<16x128xf32>
    %230 = vector.extract_strided_slice %217 {offsets = [0, 256], sizes = [16, 128], strides = [1, 1]} : vector<16x512xf32> to vector<16x128xf32>
    %231 = math.tanh %230 : vector<16x128xf32>
    %232 = vector.extract_strided_slice %217 {offsets = [0, 384], sizes = [16, 128], strides = [1, 1]} : vector<16x512xf32> to vector<16x128xf32>
    %233 = arith.negf %232 : vector<16x128xf32>
    %234 = math.exp %233 : vector<16x128xf32>
    %cst_59 = arith.constant 1.000000e+00 : f32
    %235 = vector.broadcast %cst_59 : f32 to vector<16x128xf32>
    %236 = arith.addf %235, %234 : vector<16x128xf32>
    %237 = arith.divf %235, %236 : vector<16x128xf32>
    %238 = arith.mulf %229, %175 : vector<16x128xf32>
    %239 = arith.mulf %223, %231 : vector<16x128xf32>
    %240 = arith.addf %238, %239 : vector<16x128xf32>
    %241 = math.tanh %240 : vector<16x128xf32>
    %242 = arith.mulf %237, %241 : vector<16x128xf32>
    %243 = arith.index_cast %213 : i32 to index
    %c0_60 = arith.constant 0 : index
    %244 = vector.load %arg16[%243, %c0_60] : memref<128x512xf32, #tpu.memory_space<vmem>>, vector<16x512xf32>
    %cst_61 = arith.constant dense<0.000000e+00> : vector<16x512xf32>
    %245 = tpu.matmul %206, %11, %cst_61 {dimension_numbers = #tpu.dot_dimension_numbers<[1], [0], [0], [1], [0, 0, 1, 1], [], []>} : vector<16x128xf32>, vector<128x512xf32>, vector<16x512xf32> -> vector<16x512xf32>
    %246 = arith.addf %244, %245 : vector<16x512xf32>
    %247 = vector.extract_strided_slice %246 {offsets = [0, 0], sizes = [16, 128], strides = [1, 1]} : vector<16x512xf32> to vector<16x128xf32>
    %248 = arith.negf %247 : vector<16x128xf32>
    %249 = math.exp %248 : vector<16x128xf32>
    %cst_62 = arith.constant 1.000000e+00 : f32
    %250 = vector.broadcast %cst_62 : f32 to vector<16x128xf32>
    %251 = arith.addf %250, %249 : vector<16x128xf32>
    %252 = arith.divf %250, %251 : vector<16x128xf32>
    %253 = vector.extract_strided_slice %246 {offsets = [0, 128], sizes = [16, 128], strides = [1, 1]} : vector<16x512xf32> to vector<16x128xf32>
    %254 = arith.negf %253 : vector<16x128xf32>
    %255 = math.exp %254 : vector<16x128xf32>
    %cst_63 = arith.constant 1.000000e+00 : f32
    %256 = vector.broadcast %cst_63 : f32 to vector<16x128xf32>
    %257 = arith.addf %256, %255 : vector<16x128xf32>
    %258 = arith.divf %256, %257 : vector<16x128xf32>
    %259 = vector.extract_strided_slice %246 {offsets = [0, 256], sizes = [16, 128], strides = [1, 1]} : vector<16x512xf32> to vector<16x128xf32>
    %260 = math.tanh %259 : vector<16x128xf32>
    %261 = vector.extract_strided_slice %246 {offsets = [0, 384], sizes = [16, 128], strides = [1, 1]} : vector<16x512xf32> to vector<16x128xf32>
    %262 = arith.negf %261 : vector<16x128xf32>
    %263 = math.exp %262 : vector<16x128xf32>
    %cst_64 = arith.constant 1.000000e+00 : f32
    %264 = vector.broadcast %cst_64 : f32 to vector<16x128xf32>
    %265 = arith.addf %264, %263 : vector<16x128xf32>
    %266 = arith.divf %264, %265 : vector<16x128xf32>
    %267 = arith.mulf %258, %204 : vector<16x128xf32>
    %268 = arith.mulf %252, %260 : vector<16x128xf32>
    %269 = arith.addf %267, %268 : vector<16x128xf32>
    %270 = math.tanh %269 : vector<16x128xf32>
    %271 = arith.mulf %266, %270 : vector<16x128xf32>
    %272 = arith.maximumf %207, %242 : vector<16x128xf32>
    %273 = arith.maximumf %208, %271 : vector<16x128xf32>
    %c4_i32 = arith.constant 4 : i32
    %c16_i32_65 = arith.constant 16 : i32
    %274 = arith.muli %c4_i32, %c16_i32_65 : i32
    %275 = tpu.assume_multiple %274, 16 : i32
    %c7_i32_66 = arith.constant 7 : i32
    %276 = arith.subi %c7_i32_66, %c4_i32 : i32
    %c16_i32_67 = arith.constant 16 : i32
    %277 = arith.muli %276, %c16_i32_67 : i32
    %278 = tpu.assume_multiple %277, 16 : i32
    %279 = arith.index_cast %275 : i32 to index
    %c0_68 = arith.constant 0 : index
    %280 = vector.load %arg15[%279, %c0_68] : memref<128x512xf32, #tpu.memory_space<vmem>>, vector<16x512xf32>
    %cst_69 = arith.constant dense<0.000000e+00> : vector<16x512xf32>
    %281 = tpu.matmul %242, %10, %cst_69 {dimension_numbers = #tpu.dot_dimension_numbers<[1], [0], [0], [1], [0, 0, 1, 1], [], []>} : vector<16x128xf32>, vector<128x512xf32>, vector<16x512xf32> -> vector<16x512xf32>
    %282 = arith.addf %280, %281 : vector<16x512xf32>
    %283 = vector.extract_strided_slice %282 {offsets = [0, 0], sizes = [16, 128], strides = [1, 1]} : vector<16x512xf32> to vector<16x128xf32>
    %284 = arith.negf %283 : vector<16x128xf32>
    %285 = math.exp %284 : vector<16x128xf32>
    %cst_70 = arith.constant 1.000000e+00 : f32
    %286 = vector.broadcast %cst_70 : f32 to vector<16x128xf32>
    %287 = arith.addf %286, %285 : vector<16x128xf32>
    %288 = arith.divf %286, %287 : vector<16x128xf32>
    %289 = vector.extract_strided_slice %282 {offsets = [0, 128], sizes = [16, 128], strides = [1, 1]} : vector<16x512xf32> to vector<16x128xf32>
    %290 = arith.negf %289 : vector<16x128xf32>
    %291 = math.exp %290 : vector<16x128xf32>
    %cst_71 = arith.constant 1.000000e+00 : f32
    %292 = vector.broadcast %cst_71 : f32 to vector<16x128xf32>
    %293 = arith.addf %292, %291 : vector<16x128xf32>
    %294 = arith.divf %292, %293 : vector<16x128xf32>
    %295 = vector.extract_strided_slice %282 {offsets = [0, 256], sizes = [16, 128], strides = [1, 1]} : vector<16x512xf32> to vector<16x128xf32>
    %296 = math.tanh %295 : vector<16x128xf32>
    %297 = vector.extract_strided_slice %282 {offsets = [0, 384], sizes = [16, 128], strides = [1, 1]} : vector<16x512xf32> to vector<16x128xf32>
    %298 = arith.negf %297 : vector<16x128xf32>
    %299 = math.exp %298 : vector<16x128xf32>
    %cst_72 = arith.constant 1.000000e+00 : f32
    %300 = vector.broadcast %cst_72 : f32 to vector<16x128xf32>
    %301 = arith.addf %300, %299 : vector<16x128xf32>
    %302 = arith.divf %300, %301 : vector<16x128xf32>
    %303 = arith.mulf %294, %240 : vector<16x128xf32>
    %304 = arith.mulf %288, %296 : vector<16x128xf32>
    %305 = arith.addf %303, %304 : vector<16x128xf32>
    %306 = math.tanh %305 : vector<16x128xf32>
    %307 = arith.mulf %302, %306 : vector<16x128xf32>
    %308 = arith.index_cast %278 : i32 to index
    %c0_73 = arith.constant 0 : index
    %309 = vector.load %arg16[%308, %c0_73] : memref<128x512xf32, #tpu.memory_space<vmem>>, vector<16x512xf32>
    %cst_74 = arith.constant dense<0.000000e+00> : vector<16x512xf32>
    %310 = tpu.matmul %271, %11, %cst_74 {dimension_numbers = #tpu.dot_dimension_numbers<[1], [0], [0], [1], [0, 0, 1, 1], [], []>} : vector<16x128xf32>, vector<128x512xf32>, vector<16x512xf32> -> vector<16x512xf32>
    %311 = arith.addf %309, %310 : vector<16x512xf32>
    %312 = vector.extract_strided_slice %311 {offsets = [0, 0], sizes = [16, 128], strides = [1, 1]} : vector<16x512xf32> to vector<16x128xf32>
    %313 = arith.negf %312 : vector<16x128xf32>
    %314 = math.exp %313 : vector<16x128xf32>
    %cst_75 = arith.constant 1.000000e+00 : f32
    %315 = vector.broadcast %cst_75 : f32 to vector<16x128xf32>
    %316 = arith.addf %315, %314 : vector<16x128xf32>
    %317 = arith.divf %315, %316 : vector<16x128xf32>
    %318 = vector.extract_strided_slice %311 {offsets = [0, 128], sizes = [16, 128], strides = [1, 1]} : vector<16x512xf32> to vector<16x128xf32>
    %319 = arith.negf %318 : vector<16x128xf32>
    %320 = math.exp %319 : vector<16x128xf32>
    %cst_76 = arith.constant 1.000000e+00 : f32
    %321 = vector.broadcast %cst_76 : f32 to vector<16x128xf32>
    %322 = arith.addf %321, %320 : vector<16x128xf32>
    %323 = arith.divf %321, %322 : vector<16x128xf32>
    %324 = vector.extract_strided_slice %311 {offsets = [0, 256], sizes = [16, 128], strides = [1, 1]} : vector<16x512xf32> to vector<16x128xf32>
    %325 = math.tanh %324 : vector<16x128xf32>
    %326 = vector.extract_strided_slice %311 {offsets = [0, 384], sizes = [16, 128], strides = [1, 1]} : vector<16x512xf32> to vector<16x128xf32>
    %327 = arith.negf %326 : vector<16x128xf32>
    %328 = math.exp %327 : vector<16x128xf32>
    %cst_77 = arith.constant 1.000000e+00 : f32
    %329 = vector.broadcast %cst_77 : f32 to vector<16x128xf32>
    %330 = arith.addf %329, %328 : vector<16x128xf32>
    %331 = arith.divf %329, %330 : vector<16x128xf32>
    %332 = arith.mulf %323, %269 : vector<16x128xf32>
    %333 = arith.mulf %317, %325 : vector<16x128xf32>
    %334 = arith.addf %332, %333 : vector<16x128xf32>
    %335 = math.tanh %334 : vector<16x128xf32>
    %336 = arith.mulf %331, %335 : vector<16x128xf32>
    %337 = arith.maximumf %272, %307 : vector<16x128xf32>
    %338 = arith.maximumf %273, %336 : vector<16x128xf32>
    %c5_i32 = arith.constant 5 : i32
    %c16_i32_78 = arith.constant 16 : i32
    %339 = arith.muli %c5_i32, %c16_i32_78 : i32
    %340 = tpu.assume_multiple %339, 16 : i32
    %c7_i32_79 = arith.constant 7 : i32
    %341 = arith.subi %c7_i32_79, %c5_i32 : i32
    %c16_i32_80 = arith.constant 16 : i32
    %342 = arith.muli %341, %c16_i32_80 : i32
    %343 = tpu.assume_multiple %342, 16 : i32
    %344 = arith.index_cast %340 : i32 to index
    %c0_81 = arith.constant 0 : index
    %345 = vector.load %arg15[%344, %c0_81] : memref<128x512xf32, #tpu.memory_space<vmem>>, vector<16x512xf32>
    %cst_82 = arith.constant dense<0.000000e+00> : vector<16x512xf32>
    %346 = tpu.matmul %307, %10, %cst_82 {dimension_numbers = #tpu.dot_dimension_numbers<[1], [0], [0], [1], [0, 0, 1, 1], [], []>} : vector<16x128xf32>, vector<128x512xf32>, vector<16x512xf32> -> vector<16x512xf32>
    %347 = arith.addf %345, %346 : vector<16x512xf32>
    %348 = vector.extract_strided_slice %347 {offsets = [0, 0], sizes = [16, 128], strides = [1, 1]} : vector<16x512xf32> to vector<16x128xf32>
    %349 = arith.negf %348 : vector<16x128xf32>
    %350 = math.exp %349 : vector<16x128xf32>
    %cst_83 = arith.constant 1.000000e+00 : f32
    %351 = vector.broadcast %cst_83 : f32 to vector<16x128xf32>
    %352 = arith.addf %351, %350 : vector<16x128xf32>
    %353 = arith.divf %351, %352 : vector<16x128xf32>
    %354 = vector.extract_strided_slice %347 {offsets = [0, 128], sizes = [16, 128], strides = [1, 1]} : vector<16x512xf32> to vector<16x128xf32>
    %355 = arith.negf %354 : vector<16x128xf32>
    %356 = math.exp %355 : vector<16x128xf32>
    %cst_84 = arith.constant 1.000000e+00 : f32
    %357 = vector.broadcast %cst_84 : f32 to vector<16x128xf32>
    %358 = arith.addf %357, %356 : vector<16x128xf32>
    %359 = arith.divf %357, %358 : vector<16x128xf32>
    %360 = vector.extract_strided_slice %347 {offsets = [0, 256], sizes = [16, 128], strides = [1, 1]} : vector<16x512xf32> to vector<16x128xf32>
    %361 = math.tanh %360 : vector<16x128xf32>
    %362 = vector.extract_strided_slice %347 {offsets = [0, 384], sizes = [16, 128], strides = [1, 1]} : vector<16x512xf32> to vector<16x128xf32>
    %363 = arith.negf %362 : vector<16x128xf32>
    %364 = math.exp %363 : vector<16x128xf32>
    %cst_85 = arith.constant 1.000000e+00 : f32
    %365 = vector.broadcast %cst_85 : f32 to vector<16x128xf32>
    %366 = arith.addf %365, %364 : vector<16x128xf32>
    %367 = arith.divf %365, %366 : vector<16x128xf32>
    %368 = arith.mulf %359, %305 : vector<16x128xf32>
    %369 = arith.mulf %353, %361 : vector<16x128xf32>
    %370 = arith.addf %368, %369 : vector<16x128xf32>
    %371 = math.tanh %370 : vector<16x128xf32>
    %372 = arith.mulf %367, %371 : vector<16x128xf32>
    %373 = arith.index_cast %343 : i32 to index
    %c0_86 = arith.constant 0 : index
    %374 = vector.load %arg16[%373, %c0_86] : memref<128x512xf32, #tpu.memory_space<vmem>>, vector<16x512xf32>
    %cst_87 = arith.constant dense<0.000000e+00> : vector<16x512xf32>
    %375 = tpu.matmul %336, %11, %cst_87 {dimension_numbers = #tpu.dot_dimension_numbers<[1], [0], [0], [1], [0, 0, 1, 1], [], []>} : vector<16x128xf32>, vector<128x512xf32>, vector<16x512xf32> -> vector<16x512xf32>
    %376 = arith.addf %374, %375 : vector<16x512xf32>
    %377 = vector.extract_strided_slice %376 {offsets = [0, 0], sizes = [16, 128], strides = [1, 1]} : vector<16x512xf32> to vector<16x128xf32>
    %378 = arith.negf %377 : vector<16x128xf32>
    %379 = math.exp %378 : vector<16x128xf32>
    %cst_88 = arith.constant 1.000000e+00 : f32
    %380 = vector.broadcast %cst_88 : f32 to vector<16x128xf32>
    %381 = arith.addf %380, %379 : vector<16x128xf32>
    %382 = arith.divf %380, %381 : vector<16x128xf32>
    %383 = vector.extract_strided_slice %376 {offsets = [0, 128], sizes = [16, 128], strides = [1, 1]} : vector<16x512xf32> to vector<16x128xf32>
    %384 = arith.negf %383 : vector<16x128xf32>
    %385 = math.exp %384 : vector<16x128xf32>
    %cst_89 = arith.constant 1.000000e+00 : f32
    %386 = vector.broadcast %cst_89 : f32 to vector<16x128xf32>
    %387 = arith.addf %386, %385 : vector<16x128xf32>
    %388 = arith.divf %386, %387 : vector<16x128xf32>
    %389 = vector.extract_strided_slice %376 {offsets = [0, 256], sizes = [16, 128], strides = [1, 1]} : vector<16x512xf32> to vector<16x128xf32>
    %390 = math.tanh %389 : vector<16x128xf32>
    %391 = vector.extract_strided_slice %376 {offsets = [0, 384], sizes = [16, 128], strides = [1, 1]} : vector<16x512xf32> to vector<16x128xf32>
    %392 = arith.negf %391 : vector<16x128xf32>
    %393 = math.exp %392 : vector<16x128xf32>
    %cst_90 = arith.constant 1.000000e+00 : f32
    %394 = vector.broadcast %cst_90 : f32 to vector<16x128xf32>
    %395 = arith.addf %394, %393 : vector<16x128xf32>
    %396 = arith.divf %394, %395 : vector<16x128xf32>
    %397 = arith.mulf %388, %334 : vector<16x128xf32>
    %398 = arith.mulf %382, %390 : vector<16x128xf32>
    %399 = arith.addf %397, %398 : vector<16x128xf32>
    %400 = math.tanh %399 : vector<16x128xf32>
    %401 = arith.mulf %396, %400 : vector<16x128xf32>
    %402 = arith.maximumf %337, %372 : vector<16x128xf32>
    %403 = arith.maximumf %338, %401 : vector<16x128xf32>
    %c6_i32 = arith.constant 6 : i32
    %c16_i32_91 = arith.constant 16 : i32
    %404 = arith.muli %c6_i32, %c16_i32_91 : i32
    %405 = tpu.assume_multiple %404, 16 : i32
    %c7_i32_92 = arith.constant 7 : i32
    %406 = arith.subi %c7_i32_92, %c6_i32 : i32
    %c16_i32_93 = arith.constant 16 : i32
    %407 = arith.muli %406, %c16_i32_93 : i32
    %408 = tpu.assume_multiple %407, 16 : i32
    %409 = arith.index_cast %405 : i32 to index
    %c0_94 = arith.constant 0 : index
    %410 = vector.load %arg15[%409, %c0_94] : memref<128x512xf32, #tpu.memory_space<vmem>>, vector<16x512xf32>
    %cst_95 = arith.constant dense<0.000000e+00> : vector<16x512xf32>
    %411 = tpu.matmul %372, %10, %cst_95 {dimension_numbers = #tpu.dot_dimension_numbers<[1], [0], [0], [1], [0, 0, 1, 1], [], []>} : vector<16x128xf32>, vector<128x512xf32>, vector<16x512xf32> -> vector<16x512xf32>
    %412 = arith.addf %410, %411 : vector<16x512xf32>
    %413 = vector.extract_strided_slice %412 {offsets = [0, 0], sizes = [16, 128], strides = [1, 1]} : vector<16x512xf32> to vector<16x128xf32>
    %414 = arith.negf %413 : vector<16x128xf32>
    %415 = math.exp %414 : vector<16x128xf32>
    %cst_96 = arith.constant 1.000000e+00 : f32
    %416 = vector.broadcast %cst_96 : f32 to vector<16x128xf32>
    %417 = arith.addf %416, %415 : vector<16x128xf32>
    %418 = arith.divf %416, %417 : vector<16x128xf32>
    %419 = vector.extract_strided_slice %412 {offsets = [0, 128], sizes = [16, 128], strides = [1, 1]} : vector<16x512xf32> to vector<16x128xf32>
    %420 = arith.negf %419 : vector<16x128xf32>
    %421 = math.exp %420 : vector<16x128xf32>
    %cst_97 = arith.constant 1.000000e+00 : f32
    %422 = vector.broadcast %cst_97 : f32 to vector<16x128xf32>
    %423 = arith.addf %422, %421 : vector<16x128xf32>
    %424 = arith.divf %422, %423 : vector<16x128xf32>
    %425 = vector.extract_strided_slice %412 {offsets = [0, 256], sizes = [16, 128], strides = [1, 1]} : vector<16x512xf32> to vector<16x128xf32>
    %426 = math.tanh %425 : vector<16x128xf32>
    %427 = vector.extract_strided_slice %412 {offsets = [0, 384], sizes = [16, 128], strides = [1, 1]} : vector<16x512xf32> to vector<16x128xf32>
    %428 = arith.negf %427 : vector<16x128xf32>
    %429 = math.exp %428 : vector<16x128xf32>
    %cst_98 = arith.constant 1.000000e+00 : f32
    %430 = vector.broadcast %cst_98 : f32 to vector<16x128xf32>
    %431 = arith.addf %430, %429 : vector<16x128xf32>
    %432 = arith.divf %430, %431 : vector<16x128xf32>
    %433 = arith.mulf %424, %370 : vector<16x128xf32>
    %434 = arith.mulf %418, %426 : vector<16x128xf32>
    %435 = arith.addf %433, %434 : vector<16x128xf32>
    %436 = math.tanh %435 : vector<16x128xf32>
    %437 = arith.mulf %432, %436 : vector<16x128xf32>
    %438 = arith.index_cast %408 : i32 to index
    %c0_99 = arith.constant 0 : index
    %439 = vector.load %arg16[%438, %c0_99] : memref<128x512xf32, #tpu.memory_space<vmem>>, vector<16x512xf32>
    %cst_100 = arith.constant dense<0.000000e+00> : vector<16x512xf32>
    %440 = tpu.matmul %401, %11, %cst_100 {dimension_numbers = #tpu.dot_dimension_numbers<[1], [0], [0], [1], [0, 0, 1, 1], [], []>} : vector<16x128xf32>, vector<128x512xf32>, vector<16x512xf32> -> vector<16x512xf32>
    %441 = arith.addf %439, %440 : vector<16x512xf32>
    %442 = vector.extract_strided_slice %441 {offsets = [0, 0], sizes = [16, 128], strides = [1, 1]} : vector<16x512xf32> to vector<16x128xf32>
    %443 = arith.negf %442 : vector<16x128xf32>
    %444 = math.exp %443 : vector<16x128xf32>
    %cst_101 = arith.constant 1.000000e+00 : f32
    %445 = vector.broadcast %cst_101 : f32 to vector<16x128xf32>
    %446 = arith.addf %445, %444 : vector<16x128xf32>
    %447 = arith.divf %445, %446 : vector<16x128xf32>
    %448 = vector.extract_strided_slice %441 {offsets = [0, 128], sizes = [16, 128], strides = [1, 1]} : vector<16x512xf32> to vector<16x128xf32>
    %449 = arith.negf %448 : vector<16x128xf32>
    %450 = math.exp %449 : vector<16x128xf32>
    %cst_102 = arith.constant 1.000000e+00 : f32
    %451 = vector.broadcast %cst_102 : f32 to vector<16x128xf32>
    %452 = arith.addf %451, %450 : vector<16x128xf32>
    %453 = arith.divf %451, %452 : vector<16x128xf32>
    %454 = vector.extract_strided_slice %441 {offsets = [0, 256], sizes = [16, 128], strides = [1, 1]} : vector<16x512xf32> to vector<16x128xf32>
    %455 = math.tanh %454 : vector<16x128xf32>
    %456 = vector.extract_strided_slice %441 {offsets = [0, 384], sizes = [16, 128], strides = [1, 1]} : vector<16x512xf32> to vector<16x128xf32>
    %457 = arith.negf %456 : vector<16x128xf32>
    %458 = math.exp %457 : vector<16x128xf32>
    %cst_103 = arith.constant 1.000000e+00 : f32
    %459 = vector.broadcast %cst_103 : f32 to vector<16x128xf32>
    %460 = arith.addf %459, %458 : vector<16x128xf32>
    %461 = arith.divf %459, %460 : vector<16x128xf32>
    %462 = arith.mulf %453, %399 : vector<16x128xf32>
    %463 = arith.mulf %447, %455 : vector<16x128xf32>
    %464 = arith.addf %462, %463 : vector<16x128xf32>
    %465 = math.tanh %464 : vector<16x128xf32>
    %466 = arith.mulf %461, %465 : vector<16x128xf32>
    %467 = arith.maximumf %402, %437 : vector<16x128xf32>
    %468 = arith.maximumf %403, %466 : vector<16x128xf32>
    %c7_i32_104 = arith.constant 7 : i32
    %c16_i32_105 = arith.constant 16 : i32
    %469 = arith.muli %c7_i32_104, %c16_i32_105 : i32
    %470 = tpu.assume_multiple %469, 16 : i32
    %c7_i32_106 = arith.constant 7 : i32
    %471 = arith.subi %c7_i32_106, %c7_i32_104 : i32
    %c16_i32_107 = arith.constant 16 : i32
    %472 = arith.muli %471, %c16_i32_107 : i32
    %473 = tpu.assume_multiple %472, 16 : i32
    %474 = arith.index_cast %470 : i32 to index
    %c0_108 = arith.constant 0 : index
    %475 = vector.load %arg15[%474, %c0_108] : memref<128x512xf32, #tpu.memory_space<vmem>>, vector<16x512xf32>
    %cst_109 = arith.constant dense<0.000000e+00> : vector<16x512xf32>
    %476 = tpu.matmul %437, %10, %cst_109 {dimension_numbers = #tpu.dot_dimension_numbers<[1], [0], [0], [1], [0, 0, 1, 1], [], []>} : vector<16x128xf32>, vector<128x512xf32>, vector<16x512xf32> -> vector<16x512xf32>
    %477 = arith.addf %475, %476 : vector<16x512xf32>
    %478 = vector.extract_strided_slice %477 {offsets = [0, 0], sizes = [16, 128], strides = [1, 1]} : vector<16x512xf32> to vector<16x128xf32>
    %479 = arith.negf %478 : vector<16x128xf32>
    %480 = math.exp %479 : vector<16x128xf32>
    %cst_110 = arith.constant 1.000000e+00 : f32
    %481 = vector.broadcast %cst_110 : f32 to vector<16x128xf32>
    %482 = arith.addf %481, %480 : vector<16x128xf32>
    %483 = arith.divf %481, %482 : vector<16x128xf32>
    %484 = vector.extract_strided_slice %477 {offsets = [0, 128], sizes = [16, 128], strides = [1, 1]} : vector<16x512xf32> to vector<16x128xf32>
    %485 = arith.negf %484 : vector<16x128xf32>
    %486 = math.exp %485 : vector<16x128xf32>
    %cst_111 = arith.constant 1.000000e+00 : f32
    %487 = vector.broadcast %cst_111 : f32 to vector<16x128xf32>
    %488 = arith.addf %487, %486 : vector<16x128xf32>
    %489 = arith.divf %487, %488 : vector<16x128xf32>
    %490 = vector.extract_strided_slice %477 {offsets = [0, 256], sizes = [16, 128], strides = [1, 1]} : vector<16x512xf32> to vector<16x128xf32>
    %491 = math.tanh %490 : vector<16x128xf32>
    %492 = vector.extract_strided_slice %477 {offsets = [0, 384], sizes = [16, 128], strides = [1, 1]} : vector<16x512xf32> to vector<16x128xf32>
    %493 = arith.negf %492 : vector<16x128xf32>
    %494 = math.exp %493 : vector<16x128xf32>
    %cst_112 = arith.constant 1.000000e+00 : f32
    %495 = vector.broadcast %cst_112 : f32 to vector<16x128xf32>
    %496 = arith.addf %495, %494 : vector<16x128xf32>
    %497 = arith.divf %495, %496 : vector<16x128xf32>
    %498 = arith.mulf %489, %435 : vector<16x128xf32>
    %499 = arith.mulf %483, %491 : vector<16x128xf32>
    %500 = arith.addf %498, %499 : vector<16x128xf32>
    %501 = math.tanh %500 : vector<16x128xf32>
    %502 = arith.mulf %497, %501 : vector<16x128xf32>
    %503 = arith.index_cast %473 : i32 to index
    %c0_113 = arith.constant 0 : index
    %504 = vector.load %arg16[%503, %c0_113] : memref<128x512xf32, #tpu.memory_space<vmem>>, vector<16x512xf32>
    %cst_114 = arith.constant dense<0.000000e+00> : vector<16x512xf32>
    %505 = tpu.matmul %466, %11, %cst_114 {dimension_numbers = #tpu.dot_dimension_numbers<[1], [0], [0], [1], [0, 0, 1, 1], [], []>} : vector<16x128xf32>, vector<128x512xf32>, vector<16x512xf32> -> vector<16x512xf32>
    %506 = arith.addf %504, %505 : vector<16x512xf32>
    %507 = vector.extract_strided_slice %506 {offsets = [0, 0], sizes = [16, 128], strides = [1, 1]} : vector<16x512xf32> to vector<16x128xf32>
    %508 = arith.negf %507 : vector<16x128xf32>
    %509 = math.exp %508 : vector<16x128xf32>
    %cst_115 = arith.constant 1.000000e+00 : f32
    %510 = vector.broadcast %cst_115 : f32 to vector<16x128xf32>
    %511 = arith.addf %510, %509 : vector<16x128xf32>
    %512 = arith.divf %510, %511 : vector<16x128xf32>
    %513 = vector.extract_strided_slice %506 {offsets = [0, 128], sizes = [16, 128], strides = [1, 1]} : vector<16x512xf32> to vector<16x128xf32>
    %514 = arith.negf %513 : vector<16x128xf32>
    %515 = math.exp %514 : vector<16x128xf32>
    %cst_116 = arith.constant 1.000000e+00 : f32
    %516 = vector.broadcast %cst_116 : f32 to vector<16x128xf32>
    %517 = arith.addf %516, %515 : vector<16x128xf32>
    %518 = arith.divf %516, %517 : vector<16x128xf32>
    %519 = vector.extract_strided_slice %506 {offsets = [0, 256], sizes = [16, 128], strides = [1, 1]} : vector<16x512xf32> to vector<16x128xf32>
    %520 = math.tanh %519 : vector<16x128xf32>
    %521 = vector.extract_strided_slice %506 {offsets = [0, 384], sizes = [16, 128], strides = [1, 1]} : vector<16x512xf32> to vector<16x128xf32>
    %522 = arith.negf %521 : vector<16x128xf32>
    %523 = math.exp %522 : vector<16x128xf32>
    %cst_117 = arith.constant 1.000000e+00 : f32
    %524 = vector.broadcast %cst_117 : f32 to vector<16x128xf32>
    %525 = arith.addf %524, %523 : vector<16x128xf32>
    %526 = arith.divf %524, %525 : vector<16x128xf32>
    %527 = arith.mulf %518, %464 : vector<16x128xf32>
    %528 = arith.mulf %512, %520 : vector<16x128xf32>
    %529 = arith.addf %527, %528 : vector<16x128xf32>
    %530 = math.tanh %529 : vector<16x128xf32>
    %531 = arith.mulf %526, %530 : vector<16x128xf32>
    %532 = arith.maximumf %467, %502 : vector<16x128xf32>
    %533 = arith.maximumf %468, %531 : vector<16x128xf32>
    %c8_i32 = arith.constant 8 : i32
    %534 = tpu.concatenate %532, %533 in 1 : vector<16x128xf32>, vector<16x128xf32> -> vector<16x256xf32>
    %535 = vector.extract_strided_slice %534 {offsets = [0, 0], sizes = [8, 256], strides = [1, 1]} : vector<16x256xf32> to vector<8x256xf32>
    %536 = vector.extract_strided_slice %534 {offsets = [8, 0], sizes = [8, 256], strides = [1, 1]} : vector<16x256xf32> to vector<8x256xf32>
    %c0_118 = arith.constant 0 : index
    %c0_119 = arith.constant 0 : index
    %537 = vector.load %arg5[%c0_118, %c0_119] : memref<256x128xf32, #tpu.memory_space<vmem>>, vector<256x128xf32>
    %cst_120 = arith.constant dense<0.000000e+00> : vector<8x128xf32>
    %538 = tpu.matmul %535, %537, %cst_120 {dimension_numbers = #tpu.dot_dimension_numbers<[1], [0], [0], [1], [0, 0, 1, 1], [], []>} : vector<8x256xf32>, vector<256x128xf32>, vector<8x128xf32> -> vector<8x128xf32>
    %c0_121 = arith.constant 0 : index
    %c0_122 = arith.constant 0 : index
    %539 = vector.load %arg6[%c0_121, %c0_122] : memref<256x128xf32, #tpu.memory_space<vmem>>, vector<256x128xf32>
    %cst_123 = arith.constant dense<0.000000e+00> : vector<8x128xf32>
    %540 = tpu.matmul %536, %539, %cst_123 {dimension_numbers = #tpu.dot_dimension_numbers<[1], [0], [0], [1], [0, 0, 1, 1], [], []>} : vector<8x256xf32>, vector<256x128xf32>, vector<8x128xf32> -> vector<8x128xf32>
    %541 = arith.addf %538, %540 : vector<8x128xf32>
    %542 = arith.subf %535, %536 : vector<8x256xf32>
    %543 = math.absf %542 : vector<8x256xf32>
    %c0_124 = arith.constant 0 : index
    %c0_125 = arith.constant 0 : index
    %544 = vector.load %arg7[%c0_124, %c0_125] : memref<256x128xf32, #tpu.memory_space<vmem>>, vector<256x128xf32>
    %cst_126 = arith.constant dense<0.000000e+00> : vector<8x128xf32>
    %545 = tpu.matmul %543, %544, %cst_126 {dimension_numbers = #tpu.dot_dimension_numbers<[1], [0], [0], [1], [0, 0, 1, 1], [], []>} : vector<8x256xf32>, vector<256x128xf32>, vector<8x128xf32> -> vector<8x128xf32>
    %546 = arith.addf %541, %545 : vector<8x128xf32>
    %547 = arith.mulf %535, %536 : vector<8x256xf32>
    %c0_127 = arith.constant 0 : index
    %c0_128 = arith.constant 0 : index
    %548 = vector.load %arg8[%c0_127, %c0_128] : memref<256x128xf32, #tpu.memory_space<vmem>>, vector<256x128xf32>
    %cst_129 = arith.constant dense<0.000000e+00> : vector<8x128xf32>
    %549 = tpu.matmul %547, %548, %cst_129 {dimension_numbers = #tpu.dot_dimension_numbers<[1], [0], [0], [1], [0, 0, 1, 1], [], []>} : vector<8x256xf32>, vector<256x128xf32>, vector<8x128xf32> -> vector<8x128xf32>
    %550 = arith.addf %546, %549 : vector<8x128xf32>
    %c0_130 = arith.constant 0 : index
    %c0_131 = arith.constant 0 : index
    %551 = vector.load %arg9[%c0_130, %c0_131] : memref<1x128xf32, #tpu.memory_space<vmem>>, vector<1x128xf32>
    %552 = vector.broadcast %551 : vector<1x128xf32> to vector<8x128xf32>
    %553 = arith.addf %550, %552 : vector<8x128xf32>
    %554 = math.tanh %553 : vector<8x128xf32>
    %c0_132 = arith.constant 0 : index
    %c0_133 = arith.constant 0 : index
    %555 = vector.load %arg10[%c0_132, %c0_133] : memref<128x128xf32, #tpu.memory_space<vmem>>, vector<128x128xf32>
    %cst_134 = arith.constant dense<0.000000e+00> : vector<8x128xf32>
    %556 = tpu.matmul %554, %555, %cst_134 {dimension_numbers = #tpu.dot_dimension_numbers<[1], [0], [0], [1], [0, 0, 1, 1], [], []>} : vector<8x128xf32>, vector<128x128xf32>, vector<8x128xf32> -> vector<8x128xf32>
    %c0_135 = arith.constant 0 : index
    %c0_136 = arith.constant 0 : index
    %557 = vector.load %arg11[%c0_135, %c0_136] : memref<1x128xf32, #tpu.memory_space<vmem>>, vector<1x128xf32>
    %558 = vector.broadcast %557 : vector<1x128xf32> to vector<8x128xf32>
    %559 = arith.addf %556, %558 : vector<8x128xf32>
    %560 = math.tanh %559 : vector<8x128xf32>
    %c0_137 = arith.constant 0 : index
    %c0_138 = arith.constant 0 : index
    %561 = vector.load %arg12[%c0_137, %c0_138] : memref<128x128xf32, #tpu.memory_space<vmem>>, vector<128x128xf32>
    %cst_139 = arith.constant dense<0.000000e+00> : vector<8x128xf32>
    %562 = tpu.matmul %560, %561, %cst_139 {dimension_numbers = #tpu.dot_dimension_numbers<[1], [0], [0], [1], [0, 0, 1, 1], [], []>} : vector<8x128xf32>, vector<128x128xf32>, vector<8x128xf32> -> vector<8x128xf32>
    %c0_140 = arith.constant 0 : index
    %c0_141 = arith.constant 0 : index
    %563 = vector.load %arg13[%c0_140, %c0_141] : memref<1x128xf32, #tpu.memory_space<vmem>>, vector<1x128xf32>
    %564 = vector.broadcast %563 : vector<1x128xf32> to vector<8x128xf32>
    %565 = arith.addf %562, %564 : vector<8x128xf32>
    %c0_142 = arith.constant 0 : index
    %c0_143 = arith.constant 0 : index
    %566 = vector.load %arg14[%c0_142, %c0_143] : memref<8x128xf32, #tpu.memory_space<vmem>>, vector<8x128xf32>
    tpu.vector_store %arg14[%c0_142, %c0_143], %565 {strides = array<i32>} : memref<8x128xf32, #tpu.memory_space<vmem>>, vector<8x128xf32>,
    return
  }
}

</mosaic_0001>

<llo_original>
// kernel: nlinet_forward.1
$region0: #{nlinet_forward.1}
  #allocation0 [shape = 'u32[]', space=smem, size = 0x4, offset = 0x4, fixed_abs, tag = 'smem constant byte address 0x4 - core index']
  #allocation1 [shape = 'u32[144,128]{1,0:T(1,128)}', space=vmem, size = 0x12000, scoped, tag = 'internal scratch']
  #allocation2 [shape = 'f32[128,512]{1,0:T(8,128)}', space=vmem, size = 0x40000, scoped, tag = 'scratch operand']
  #allocation3 [shape = 'f32[128,512]{1,0:T(8,128)}', space=vmem, size = 0x40000, scoped, tag = 'scratch operand']
  %s0 = inlined_call_operand.vmem [shape: f32[128,16], index: 0, kind: input, shape index: {}]
  %s1 = inlined_call_operand.vmem [shape: f32[16,1024], index: 1, kind: input, shape index: {}]
  %s2 = inlined_call_operand.vmem [shape: f32[1,1024], index: 2, kind: input, shape index: {}]
  %s3 = inlined_call_operand.vmem [shape: f32[128,512], index: 3, kind: input, shape index: {}]
  %s4 = inlined_call_operand.vmem [shape: f32[128,512], index: 4, kind: input, shape index: {}]
  %s5 = inlined_call_operand.vmem [shape: f32[256,128], index: 5, kind: input, shape index: {}]
  %s6 = inlined_call_operand.vmem [shape: f32[256,128], index: 6, kind: input, shape index: {}]
  %s7 = inlined_call_operand.vmem [shape: f32[256,128], index: 7, kind: input, shape index: {}]
  %s8 = inlined_call_operand.vmem [shape: f32[256,128], index: 8, kind: input, shape index: {}]
  %s9 = inlined_call_operand.vmem [shape: f32[1,128], index: 9, kind: input, shape index: {}]
  %s10 = inlined_call_operand.vmem [shape: f32[128,128], index: 10, kind: input, shape index: {}]
  %s11 = inlined_call_operand.vmem [shape: f32[1,128], index: 11, kind: input, shape index: {}]
  %s12 = inlined_call_operand.vmem [shape: f32[128,128], index: 12, kind: input, shape index: {}]
  %s13 = inlined_call_operand.vmem [shape: f32[1,128], index: 13, kind: input, shape index: {}]
  %s14 = inlined_call_operand.vmem [shape: f32[8,128], index: 14, kind: output, shape index: {}]
  %s15 = sld [smem:[#allocation0]]
  $region66: #{nlinet_forward.1} parent=0
    _
  %s17 = ssub.s32 1, %s15
  %s18 = scalar_select 0, %s17, %s15
  // Predicated region
  $region2: #{nlinet_forward.1} parent=0 // pred_check
    _
  $region3: #{nlinet_forward.1} parent=0 // pred_check_branch
    %20 = sbr.rel (0) target = $region5
  $region4: #{nlinet_forward.1} parent=0 // pred_region
    _
  $region5: #{nlinet_forward.1} parent=0 // pred_fallthru
    _
  // Predicated region
  $region6: #{nlinet_forward.1} parent=0 // pred_check
    _
  $region7: #{nlinet_forward.1} parent=0 // pred_check_branch
    %22 = sbr.rel (0) target = $region9
  $region8: #{nlinet_forward.1} parent=0 // pred_region
    _
  $region9: #{nlinet_forward.1} parent=0 // pred_fallthru
    _
  // Predicated region
  $region10: #{nlinet_forward.1} parent=0 // pred_check
    _
  $region11: #{nlinet_forward.1} parent=0 // pred_check_branch
    %24 = sbr.rel (0) target = $region13
  $region12: #{nlinet_forward.1} parent=0 // pred_region
    _
  $region13: #{nlinet_forward.1} parent=0 // pred_fallthru
    _
  // Predicated region
  $region14: #{nlinet_forward.1} parent=0 // pred_check
    _
  $region15: #{nlinet_forward.1} parent=0 // pred_check_branch
    %26 = sbr.rel (0) target = $region17
  $region16: #{nlinet_forward.1} parent=0 // pred_region
    _
  $region17: #{nlinet_forward.1} parent=0 // pred_fallthru
    _
  // Predicated region
  $region18: #{nlinet_forward.1} parent=0 // pred_check
    _
  $region19: #{nlinet_forward.1} parent=0 // pred_check_branch
    %28 = sbr.rel (0) target = $region21
  $region20: #{nlinet_forward.1} parent=0 // pred_region
    _
  $region21: #{nlinet_forward.1} parent=0 // pred_fallthru
    _
  // Predicated region
  $region22: #{nlinet_forward.1} parent=0 // pred_check
    _
  $region23: #{nlinet_forward.1} parent=0 // pred_check_branch
    %30 = sbr.rel (0) target = $region25
  $region24: #{nlinet_forward.1} parent=0 // pred_region
    _
  $region25: #{nlinet_forward.1} parent=0 // pred_fallthru
    _
  // Predicated region
  $region26: #{nlinet_forward.1} parent=0 // pred_check
    _
  $region27: #{nlinet_forward.1} parent=0 // pred_check_branch
    %32 = sbr.rel (0) target = $region29
  $region28: #{nlinet_forward.1} parent=0 // pred_region
    _
  $region29: #{nlinet_forward.1} parent=0 // pred_fallthru
    _
  // Predicated region
  $region30: #{nlinet_forward.1} parent=0 // pred_check
    _
  $region31: #{nlinet_forward.1} parent=0 // pred_check_branch
    %34 = sbr.rel (0) target = $region33
  $region32: #{nlinet_forward.1} parent=0 // pred_region
    _
  $region33: #{nlinet_forward.1} parent=0 // pred_fallthru
    _
  // Predicated region
  $region34: #{nlinet_forward.1} parent=0 // pred_check
    _
  $region35: #{nlinet_forward.1} parent=0 // pred_check_branch
    %36 = sbr.rel (0) target = $region37
  $region36: #{nlinet_forward.1} parent=0 // pred_region
    _
  $region37: #{nlinet_forward.1} parent=0 // pred_fallthru
    _
  // Predicated region
  $region38: #{nlinet_forward.1} parent=0 // pred_check
    _
  $region39: #{nlinet_forward.1} parent=0 // pred_check_branch
    %38 = sbr.rel (0) target = $region41
  $region40: #{nlinet_forward.1} parent=0 // pred_region
    _
  $region41: #{nlinet_forward.1} parent=0 // pred_fallthru
    _
  // Predicated region
  $region42: #{nlinet_forward.1} parent=0 // pred_check
    _
  $region43: #{nlinet_forward.1} parent=0 // pred_check_branch
    %40 = sbr.rel (0) target = $region45
  $region44: #{nlinet_forward.1} parent=0 // pred_region
    _
  $region45: #{nlinet_forward.1} parent=0 // pred_fallthru
    _
  // Predicated region
  $region46: #{nlinet_forward.1} parent=0 // pred_check
    _
  $region47: #{nlinet_forward.1} parent=0 // pred_check_branch
    %42 = sbr.rel (0) target = $region49
  $region48: #{nlinet_forward.1} parent=0 // pred_region
    _
  $region49: #{nlinet_forward.1} parent=0 // pred_fallthru
    _
  // Predicated region
  $region50: #{nlinet_forward.1} parent=0 // pred_check
    _
  $region51: #{nlinet_forward.1} parent=0 // pred_check_branch
    %44 = sbr.rel (0) target = $region53
  $region52: #{nlinet_forward.1} parent=0 // pred_region
    _
  $region53: #{nlinet_forward.1} parent=0 // pred_fallthru
    _
  // Predicated region
  $region54: #{nlinet_forward.1} parent=0 // pred_check
    _
  $region55: #{nlinet_forward.1} parent=0 // pred_check_branch
    %46 = sbr.rel (0) target = $region57
  $region56: #{nlinet_forward.1} parent=0 // pred_region
    _
  $region57: #{nlinet_forward.1} parent=0 // pred_fallthru
    _
  %v47 = vld [vmem:[%s0] sm:$0xff]
  %v48 = vld [vmem:[%s0 + $0x8] sm:$0xff]
  %v49 = vld [vmem:[%s0 + $0x10] sm:$0xff]
  %v50 = vld [vmem:[%s0 + $0x18] sm:$0xff]
  %v51 = vld [vmem:[%s0 + $0x20] sm:$0xff]
  %v52 = vld [vmem:[%s0 + $0x28] sm:$0xff]
  %v53 = vld [vmem:[%s0 + $0x30] sm:$0xff]
  %v54 = vld [vmem:[%s0 + $0x38] sm:$0xff]
  %v55 = vld [vmem:[%s0 + $0x40] sm:$0xff]
  %v56 = vld [vmem:[%s0 + $0x48] sm:$0xff]
  %v57 = vld [vmem:[%s0 + $0x50] sm:$0xff]
  %v58 = vld [vmem:[%s0 + $0x58] sm:$0xff]
  %v59 = vld [vmem:[%s0 + $0x60] sm:$0xff]
  %v60 = vld [vmem:[%s0 + $0x68] sm:$0xff]
  %v61 = vld [vmem:[%s0 + $0x70] sm:$0xff]
  %v62 = vld [vmem:[%s0 + $0x78] sm:$0xff]
  %v63 = vld [vmem:[%s1] sm:$0xff]
  %v64 = vld [vmem:[%s1 + $0x8] sm:$0xff]
  %v65 = vld [vmem:[%s1 + $0x10] sm:$0xff]
  %v66 = vld [vmem:[%s1 + $0x18] sm:$0xff]
  %v67 = vld [vmem:[%s1 + $0x20] sm:$0xff]
  %v68 = vld [vmem:[%s1 + $0x28] sm:$0xff]
  %v69 = vld [vmem:[%s1 + $0x30] sm:$0xff]
  %v70 = vld [vmem:[%s1 + $0x38] sm:$0xff]
  %v71 = vld [vmem:[%s1 + $0x40] sm:$0xff]
  %v72 = vld [vmem:[%s1 + $0x48] sm:$0xff]
  %v73 = vld [vmem:[%s1 + $0x50] sm:$0xff]
  %v74 = vld [vmem:[%s1 + $0x58] sm:$0xff]
  %v75 = vld [vmem:[%s1 + $0x60] sm:$0xff]
  %v76 = vld [vmem:[%s1 + $0x68] sm:$0xff]
  %v77 = vld [vmem:[%s1 + $0x70] sm:$0xff]
  %v78 = vld [vmem:[%s1 + $0x78] sm:$0xff]
  %v79 = vld [vmem:[%s2] sm:$0xff]
  %v81 = vlaneseq
  %v82 = vshrl.u32 %v81, 7
  %v83 = vsub.s32 0, %v82
  %v84 = vrot.slane %v79, %v83
  %v85 = vlaneseq
  %v86 = vshrl.u32 %v85, 7
  %v87 = vsub.s32 1, %v86
  %v88 = vrot.slane %v79, %v87
  %v89 = vlaneseq
  %v90 = vshrl.u32 %v89, 7
  %v91 = vsub.s32 2, %v90
  %v92 = vrot.slane %v79, %v91
  %v93 = vlaneseq
  %v94 = vshrl.u32 %v93, 7
  %v95 = vsub.s32 3, %v94
  %v96 = vrot.slane %v79, %v95
  %v97 = vlaneseq
  %v98 = vshrl.u32 %v97, 7
  %v99 = vsub.s32 4, %v98
  %v100 = vrot.slane %v79, %v99
  %v101 = vlaneseq
  %v102 = vshrl.u32 %v101, 7
  %v103 = vsub.s32 5, %v102
  %v104 = vrot.slane %v79, %v103
  %v105 = vlaneseq
  %v106 = vshrl.u32 %v105, 7
  %v107 = vsub.s32 6, %v106
  %v108 = vrot.slane %v79, %v107
  %v109 = vlaneseq
  %v110 = vshrl.u32 %v109, 7
  %v111 = vsub.s32 7, %v110
  %v112 = vrot.slane %v79, %v111
  %vm121 = vcmask 130048
  %v123 = vsel %vm121, %v47, 0
  %v126 = vsel %vm121, %v48, 0
  %v129 = vsel %vm121, %v49, 0
  %v132 = vsel %vm121, %v50, 0
  %v135 = vsel %vm121, %v51, 0
  %v138 = vsel %vm121, %v52, 0
  %v141 = vsel %vm121, %v53, 0
  %v144 = vsel %vm121, %v54, 0
  %v147 = vsel %vm121, %v55, 0
  %v150 = vsel %vm121, %v56, 0
  %v153 = vsel %vm121, %v57, 0
  %v156 = vsel %vm121, %v58, 0
  %v159 = vsel %vm121, %v59, 0
  %v162 = vsel %vm121, %v60, 0
  %v165 = vsel %vm121, %v61, 0
  %v168 = vsel %vm121, %v62, 0
  %170 = vmatprep.subr.mxu0 %v64
  %171 = vmatpush1.msra.mxu0 %v63
  %172 = vmatprep.subr.mxu0 %v72
  %173 = vmatpush1.msra.mxu0 %v71
  %174 = vmatprep.subr.mxu0 0.0
  %175 = vmatpush1.msra.mxu0 0.0
  %176 = vmatprep.subr.mxu0 0.0
  %177 = vmatpush1.msra.mxu0 0.0
  %178 = vmatprep.subr.mxu0 0.0
  %179 = vmatpush1.msra.mxu0 0.0
  %180 = vmatprep.subr.mxu0 0.0
  %181 = vmatpush1.msra.mxu0 0.0
  %182 = vmatprep.subr.mxu0 0.0
  %183 = vmatpush1.msra.mxu0 0.0
  %184 = vmatprep.subr.mxu0 0.0
  %185 = vmatpush1.msra.mxu0 0.0
  %186 = vmatprep.subr.mxu0 0.0
  %187 = vmatpush1.msra.mxu0 0.0
  %188 = vmatprep.subr.mxu0 0.0
  %189 = vmatpush1.msra.mxu0 0.0
  %190 = vmatprep.subr.mxu0 0.0
  %191 = vmatpush1.msra.mxu0 0.0
  %192 = vmatprep.subr.mxu0 0.0
  %193 = vmatpush1.msra.mxu0 0.0
  %194 = vmatprep.subr.mxu0 0.0
  %195 = vmatpush1.msra.mxu0 0.0
  %196 = vmatprep.subr.mxu0 0.0
  %197 = vmatpush1.msra.mxu0 0.0
  %198 = vmatprep.subr.mxu0 0.0
  %199 = vmatpush1.msra.mxu0 0.0
  %200 = vmatprep.subr.mxu0 0.0
  %201 = vmatpush1.msra.mxu0 0.0
  %202 = vmatprep.subr.mxu0 0.0
  %203 = vmatpush1.msra.mxu0 0.0
  %204 = vmatprep.subr.mxu0 0.0
  %205 = vmatpush1.msra.mxu0 0.0
  %206 = vmatprep.subr.mxu0 0.0
  %207 = vmatpush1.msra.mxu0 0.0
  %208 = vmatprep.subr.mxu0 0.0
  %209 = vmatpush1.msra.mxu0 0.0
  %210 = vmatprep.subr.mxu0 0.0
  %211 = vmatpush1.msra.mxu0 0.0
  %212 = vmatprep.subr.mxu0 0.0
  %213 = vmatpush1.msra.mxu0 0.0
  %214 = vmatprep.subr.mxu0 0.0
  %215 = vmatpush1.msra.mxu0 0.0
  %216 = vmatprep.subr.mxu0 0.0
  %217 = vmatpush1.msra.mxu0 0.0
  %218 = vmatprep.subr.mxu0 0.0
  %219 = vmatpush1.msra.mxu0 0.0
  %220 = vmatprep.subr.mxu0 0.0
  %221 = vmatpush1.msra.mxu0 0.0
  %222 = vmatprep.subr.mxu0 0.0
  %223 = vmatpush1.msra.mxu0 0.0
  %224 = vmatprep.subr.mxu0 0.0
  %225 = vmatpush1.msra.mxu0 0.0
  %226 = vmatprep.subr.mxu0 0.0
  %227 = vmatpush1.msra.mxu0 0.0
  %228 = vmatprep.subr.mxu0 0.0
  %229 = vmatpush1.msra.mxu0 0.0
  %230 = vmatprep.subr.mxu0 0.0
  %231 = vmatpush1.msra.mxu0 0.0
  %232 = vmatprep.subr.mxu0 0.0
  %233 = vmatpush1.msra.mxu0 0.0
  %234 = vmatprep.mubr.f32.mxu0 0.0
  %235 = vmatmul.mubr.f32.gmra.mrb[0].mxu0 %v123
  %v236 = vpop.f32.mrb[0].mxu0
  %v237 = vadd.f32 %v84, %v236
  %v238 = vpop.f32.mrb[0].mxu0
  %v239 = vadd.f32 %v88, %v238
  %240 = vmatprep.mubr.f32.mxu0 0.0
  %241 = vmatmul.mubr.f32.gmra.mrb[0].mxu0 %v126
  %v242 = vpop.f32.mrb[0].mxu0
  %v243 = vadd.f32 %v84, %v242
  %v244 = vpop.f32.mrb[0].mxu0
  %v245 = vadd.f32 %v88, %v244
  %246 = vmatprep.mubr.f32.mxu0 0.0
  %247 = vmatmul.mubr.f32.gmra.mrb[0].mxu0 %v129
  %v248 = vpop.f32.mrb[0].mxu0
  %v249 = vadd.f32 %v84, %v248
  %v250 = vpop.f32.mrb[0].mxu0
  %v251 = vadd.f32 %v88, %v250
  %252 = vmatprep.mubr.f32.mxu0 0.0
  %253 = vmatmul.mubr.f32.gmra.mrb[0].mxu0 %v132
  %v254 = vpop.f32.mrb[0].mxu0
  %v255 = vadd.f32 %v84, %v254
  %v256 = vpop.f32.mrb[0].mxu0
  %v257 = vadd.f32 %v88, %v256
  %258 = vmatprep.mubr.f32.mxu0 0.0
  %259 = vmatmul.mubr.f32.gmra.mrb[0].mxu0 %v135
  %v260 = vpop.f32.mrb[0].mxu0
  %v261 = vadd.f32 %v84, %v260
  %v262 = vpop.f32.mrb[0].mxu0
  %v263 = vadd.f32 %v88, %v262
  %264 = vmatprep.mubr.f32.mxu0 0.0
  %265 = vmatmul.mubr.f32.gmra.mrb[0].mxu0 %v138
  %v266 = vpop.f32.mrb[0].mxu0
  %v267 = vadd.f32 %v84, %v266
  %v268 = vpop.f32.mrb[0].mxu0
  %v269 = vadd.f32 %v88, %v268
  %270 = vmatprep.mubr.f32.mxu0 0.0
  %271 = vmatmul.mubr.f32.gmra.mrb[0].mxu0 %v141
  %v272 = vpop.f32.mrb[0].mxu0
  %v273 = vadd.f32 %v84, %v272
  %v274 = vpop.f32.mrb[0].mxu0
  %v275 = vadd.f32 %v88, %v274
  %276 = vmatprep.mubr.f32.mxu0 0.0
  %277 = vmatmul.mubr.f32.gmra.mrb[0].mxu0 %v144
  %v278 = vpop.f32.mrb[0].mxu0
  %v279 = vadd.f32 %v84, %v278
  %v280 = vpop.f32.mrb[0].mxu0
  %v281 = vadd.f32 %v88, %v280
  %282 = vmatprep.mubr.f32.mxu0 0.0
  %283 = vmatmul.mubr.f32.gmra.mrb[0].mxu0 %v147
  %v284 = vpop.f32.mrb[0].mxu0
  %v285 = vadd.f32 %v84, %v284
  %v286 = vpop.f32.mrb[0].mxu0
  %v287 = vadd.f32 %v88, %v286
  %288 = vmatprep.mubr.f32.mxu0 0.0
  %289 = vmatmul.mubr.f32.gmra.mrb[0].mxu0 %v150
  %v290 = vpop.f32.mrb[0].mxu0
  %v291 = vadd.f32 %v84, %v290
  %v292 = vpop.f32.mrb[0].mxu0
  %v293 = vadd.f32 %v88, %v292
  %294 = vmatprep.mubr.f32.mxu0 0.0
  %295 = vmatmul.mubr.f32.gmra.mrb[0].mxu0 %v153
  %v296 = vpop.f32.mrb[0].mxu0
  %v297 = vadd.f32 %v84, %v296
  %v298 = vpop.f32.mrb[0].mxu0
  %v299 = vadd.f32 %v88, %v298
  %300 = vmatprep.mubr.f32.mxu0 0.0
  %301 = vmatmul.mubr.f32.gmra.mrb[0].mxu0 %v156
  %v302 = vpop.f32.mrb[0].mxu0
  %v303 = vadd.f32 %v84, %v302
  %v304 = vpop.f32.mrb[0].mxu0
  %v305 = vadd.f32 %v88, %v304
  %306 = vmatprep.mubr.f32.mxu0 0.0
  %307 = vmatmul.mubr.f32.gmra.mrb[0].mxu0 %v159
  %v308 = vpop.f32.mrb[0].mxu0
  %v309 = vadd.f32 %v84, %v308
  %v310 = vpop.f32.mrb[0].mxu0
  %v311 = vadd.f32 %v88, %v310
  %312 = vmatprep.mubr.f32.mxu0 0.0
  %313 = vmatmul.mubr.f32.gmra.mrb[0].mxu0 %v162
  %v314 = vpop.f32.mrb[0].mxu0
  %v315 = vadd.f32 %v84, %v314
  %v316 = vpop.f32.mrb[0].mxu0
  %v317 = vadd.f32 %v88, %v316
  %318 = vmatprep.mubr.f32.mxu0 0.0
  %319 = vmatmul.mubr.f32.gmra.mrb[0].mxu0 %v165
  %v320 = vpop.f32.mrb[0].mxu0
  %v321 = vadd.f32 %v84, %v320
  %v322 = vpop.f32.mrb[0].mxu0
  %v323 = vadd.f32 %v88, %v322
  %324 = vmatprep.mubr.f32.mxu0 0.0
  %325 = vmatmul.mubr.f32.gmra.mrb[0].mxu0 %v168
  %v326 = vpop.f32.mrb[0].mxu0
  %v327 = vadd.f32 %v84, %v326
  %v328 = vpop.f32.mrb[0].mxu0
  %v329 = vadd.f32 %v88, %v328
  %330 = vdwg.mxu0
  %331 = vmatprep.subr.mxu0 %v66
  %332 = vmatpush1.msra.mxu0 %v65
  %333 = vmatprep.subr.mxu0 %v74
  %334 = vmatpush1.msra.mxu0 %v73
  %335 = vmatprep.subr.mxu0 0.0
  %336 = vmatpush1.msra.mxu0 0.0
  %337 = vmatprep.subr.mxu0 0.0
  %338 = vmatpush1.msra.mxu0 0.0
  %339 = vmatprep.subr.mxu0 0.0
  %340 = vmatpush1.msra.mxu0 0.0
  %341 = vmatprep.subr.mxu0 0.0
  %342 = vmatpush1.msra.mxu0 0.0
  %343 = vmatprep.subr.mxu0 0.0
  %344 = vmatpush1.msra.mxu0 0.0
  %345 = vmatprep.subr.mxu0 0.0
  %346 = vmatpush1.msra.mxu0 0.0
  %347 = vmatprep.subr.mxu0 0.0
  %348 = vmatpush1.msra.mxu0 0.0
  %349 = vmatprep.subr.mxu0 0.0
  %350 = vmatpush1.msra.mxu0 0.0
  %351 = vmatprep.subr.mxu0 0.0
  %352 = vmatpush1.msra.mxu0 0.0
  %353 = vmatprep.subr.mxu0 0.0
  %354 = vmatpush1.msra.mxu0 0.0
  %355 = vmatprep.subr.mxu0 0.0
  %356 = vmatpush1.msra.mxu0 0.0
  %357 = vmatprep.subr.mxu0 0.0
  %358 = vmatpush1.msra.mxu0 0.0
  %359 = vmatprep.subr.mxu0 0.0
  %360 = vmatpush1.msra.mxu0 0.0
  %361 = vmatprep.subr.mxu0 0.0
  %362 = vmatpush1.msra.mxu0 0.0
  %363 = vmatprep.subr.mxu0 0.0
  %364 = vmatpush1.msra.mxu0 0.0
  %365 = vmatprep.subr.mxu0 0.0
  %366 = vmatpush1.msra.mxu0 0.0
  %367 = vmatprep.subr.mxu0 0.0
  %368 = vmatpush1.msra.mxu0 0.0
  %369 = vmatprep.subr.mxu0 0.0
  %370 = vmatpush1.msra.mxu0 0.0
  %371 = vmatprep.subr.mxu0 0.0
  %372 = vmatpush1.msra.mxu0 0.0
  %373 = vmatprep.subr.mxu0 0.0
  %374 = vmatpush1.msra.mxu0 0.0
  %375 = vmatprep.subr.mxu0 0.0
  %376 = vmatpush1.msra.mxu0 0.0
  %377 = vmatprep.subr.mxu0 0.0
  %378 = vmatpush1.msra.mxu0 0.0
  %379 = vmatprep.subr.mxu0 0.0
  %380 = vmatpush1.msra.mxu0 0.0
  %381 = vmatprep.subr.mxu0 0.0
  %382 = vmatpush1.msra.mxu0 0.0
  %383 = vmatprep.subr.mxu0 0.0
  %384 = vmatpush1.msra.mxu0 0.0
  %385 = vmatprep.subr.mxu0 0.0
  %386 = vmatpush1.msra.mxu0 0.0
  %387 = vmatprep.subr.mxu0 0.0
  %388 = vmatpush1.msra.mxu0 0.0
  %389 = vmatprep.subr.mxu0 0.0
  %390 = vmatpush1.msra.mxu0 0.0
  %391 = vmatprep.subr.mxu0 0.0
  %392 = vmatpush1.msra.mxu0 0.0
  %393 = vmatprep.subr.mxu0 0.0
  %394 = vmatpush1.msra.mxu0 0.0
  %395 = vmatprep.mubr.f32.mxu0 0.0
  %396 = vmatmul.mubr.f32.gmra.mrb[0].mxu0 %v123
  %v397 = vpop.f32.mrb[0].mxu0
  %v398 = vadd.f32 %v92, %v397
  %v399 = vpop.f32.mrb[0].mxu0
  %v400 = vadd.f32 %v96, %v399
  %401 = vmatprep.mubr.f32.mxu0 0.0
  %402 = vmatmul.mubr.f32.gmra.mrb[0].mxu0 %v126
  %v403 = vpop.f32.mrb[0].mxu0
  %v404 = vadd.f32 %v92, %v403
  %v405 = vpop.f32.mrb[0].mxu0
  %v406 = vadd.f32 %v96, %v405
  %407 = vmatprep.mubr.f32.mxu0 0.0
  %408 = vmatmul.mubr.f32.gmra.mrb[0].mxu0 %v129
  %v409 = vpop.f32.mrb[0].mxu0
  %v410 = vadd.f32 %v92, %v409
  %v411 = vpop.f32.mrb[0].mxu0
  %v412 = vadd.f32 %v96, %v411
  %413 = vmatprep.mubr.f32.mxu0 0.0
  %414 = vmatmul.mubr.f32.gmra.mrb[0].mxu0 %v132
  %v415 = vpop.f32.mrb[0].mxu0
  %v416 = vadd.f32 %v92, %v415
  %v417 = vpop.f32.mrb[0].mxu0
  %v418 = vadd.f32 %v96, %v417
  %419 = vmatprep.mubr.f32.mxu0 0.0
  %420 = vmatmul.mubr.f32.gmra.mrb[0].mxu0 %v135
  %v421 = vpop.f32.mrb[0].mxu0
  %v422 = vadd.f32 %v92, %v421
  %v423 = vpop.f32.mrb[0].mxu0
  %v424 = vadd.f32 %v96, %v423
  %425 = vmatprep.mubr.f32.mxu0 0.0
  %426 = vmatmul.mubr.f32.gmra.mrb[0].mxu0 %v138
  %v427 = vpop.f32.mrb[0].mxu0
  %v428 = vadd.f32 %v92, %v427
  %v429 = vpop.f32.mrb[0].mxu0
  %v430 = vadd.f32 %v96, %v429
  %431 = vmatprep.mubr.f32.mxu0 0.0
  %432 = vmatmul.mubr.f32.gmra.mrb[0].mxu0 %v141
  %v433 = vpop.f32.mrb[0].mxu0
  %v434 = vadd.f32 %v92, %v433
  %v435 = vpop.f32.mrb[0].mxu0
  %v436 = vadd.f32 %v96, %v435
  %437 = vmatprep.mubr.f32.mxu0 0.0
  %438 = vmatmul.mubr.f32.gmra.mrb[0].mxu0 %v144
  %v439 = vpop.f32.mrb[0].mxu0
  %v440 = vadd.f32 %v92, %v439
  %v441 = vpop.f32.mrb[0].mxu0
  %v442 = vadd.f32 %v96, %v441
  %443 = vmatprep.mubr.f32.mxu0 0.0
  %444 = vmatmul.mubr.f32.gmra.mrb[0].mxu0 %v147
  %v445 = vpop.f32.mrb[0].mxu0
  %v446 = vadd.f32 %v92, %v445
  %v447 = vpop.f32.mrb[0].mxu0
  %v448 = vadd.f32 %v96, %v447
  %449 = vmatprep.mubr.f32.mxu0 0.0
  %450 = vmatmul.mubr.f32.gmra.mrb[0].mxu0 %v150
  %v451 = vpop.f32.mrb[0].mxu0
  %v452 = vadd.f32 %v92, %v451
  %v453 = vpop.f32.mrb[0].mxu0
  %v454 = vadd.f32 %v96, %v453
  %455 = vmatprep.mubr.f32.mxu0 0.0
  %456 = vmatmul.mubr.f32.gmra.mrb[0].mxu0 %v153
  %v457 = vpop.f32.mrb[0].mxu0
  %v458 = vadd.f32 %v92, %v457
  %v459 = vpop.f32.mrb[0].mxu0
  %v460 = vadd.f32 %v96, %v459
  %461 = vmatprep.mubr.f32.mxu0 0.0
  %462 = vmatmul.mubr.f32.gmra.mrb[0].mxu0 %v156
  %v463 = vpop.f32.mrb[0].mxu0
  %v464 = vadd.f32 %v92, %v463
  %v465 = vpop.f32.mrb[0].mxu0
  %v466 = vadd.f32 %v96, %v465
  %467 = vmatprep.mubr.f32.mxu0 0.0
  %468 = vmatmul.mubr.f32.gmra.mrb[0].mxu0 %v159
  %v469 = vpop.f32.mrb[0].mxu0
  %v470 = vadd.f32 %v92, %v469
  %v471 = vpop.f32.mrb[0].mxu0
  %v472 = vadd.f32 %v96, %v471
  %473 = vmatprep.mubr.f32.mxu0 0.0
  %474 = vmatmul.mubr.f32.gmra.mrb[0].mxu0 %v162
  %v475 = vpop.f32.mrb[0].mxu0
  %v476 = vadd.f32 %v92, %v475
  %v477 = vpop.f32.mrb[0].mxu0
  %v478 = vadd.f32 %v96, %v477
  %479 = vmatprep.mubr.f32.mxu0 0.0
  %480 = vmatmul.mubr.f32.gmra.mrb[0].mxu0 %v165
  %v481 = vpop.f32.mrb[0].mxu0
  %v482 = vadd.f32 %v92, %v481
  %v483 = vpop.f32.mrb[0].mxu0
  %v484 = vadd.f32 %v96, %v483
  %485 = vmatprep.mubr.f32.mxu0 0.0
  %486 = vmatmul.mubr.f32.gmra.mrb[0].mxu0 %v168
  %v487 = vpop.f32.mrb[0].mxu0
  %v488 = vadd.f32 %v92, %v487
  %v489 = vpop.f32.mrb[0].mxu0
  %v490 = vadd.f32 %v96, %v489
  %491 = vdwg.mxu0
  %492 = vmatprep.subr.mxu0 %v68
  %493 = vmatpush1.msra.mxu0 %v67
  %494 = vmatprep.subr.mxu0 %v76
  %495 = vmatpush1.msra.mxu0 %v75
  %496 = vmatprep.subr.mxu0 0.0
  %497 = vmatpush1.msra.mxu0 0.0
  %498 = vmatprep.subr.mxu0 0.0
  %499 = vmatpush1.msra.mxu0 0.0
  %500 = vmatprep.subr.mxu0 0.0
  %501 = vmatpush1.msra.mxu0 0.0
  %502 = vmatprep.subr.mxu0 0.0
  %503 = vmatpush1.msra.mxu0 0.0
  %504 = vmatprep.subr.mxu0 0.0
  %505 = vmatpush1.msra.mxu0 0.0
  %506 = vmatprep.subr.mxu0 0.0
  %507 = vmatpush1.msra.mxu0 0.0
  %508 = vmatprep.subr.mxu0 0.0
  %509 = vmatpush1.msra.mxu0 0.0
  %510 = vmatprep.subr.mxu0 0.0
  %511 = vmatpush1.msra.mxu0 0.0
  %512 = vmatprep.subr.mxu0 0.0
  %513 = vmatpush1.msra.mxu0 0.0
  %514 = vmatprep.subr.mxu0 0.0
  %515 = vmatpush1.msra.mxu0 0.0
  %516 = vmatprep.subr.mxu0 0.0
  %517 = vmatpush1.msra.mxu0 0.0
  %518 = vmatprep.subr.mxu0 0.0
  %519 = vmatpush1.msra.mxu0 0.0
  %520 = vmatprep.subr.mxu0 0.0
  %521 = vmatpush1.msra.mxu0 0.0
  %522 = vmatprep.subr.mxu0 0.0
  %523 = vmatpush1.msra.mxu0 0.0
  %524 = vmatprep.subr.mxu0 0.0
  %525 = vmatpush1.msra.mxu0 0.0
  %526 = vmatprep.subr.mxu0 0.0
  %527 = vmatpush1.msra.mxu0 0.0
  %528 = vmatprep.subr.mxu0 0.0
  %529 = vmatpush1.msra.mxu0 0.0
  %530 = vmatprep.subr.mxu0 0.0
  %531 = vmatpush1.msra.mxu0 0.0
  %532 = vmatprep.subr.mxu0 0.0
  %533 = vmatpush1.msra.mxu0 0.0
  %534 = vmatprep.subr.mxu0 0.0
  %535 = vmatpush1.msra.mxu0 0.0
  %536 = vmatprep.subr.mxu0 0.0
  %537 = vmatpush1.msra.mxu0 0.0
  %538 = vmatprep.subr.mxu0 0.0
  %539 = vmatpush1.msra.mxu0 0.0
  %540 = vmatprep.subr.mxu0 0.0
  %541 = vmatpush1.msra.mxu0 0.0
  %542 = vmatprep.subr.mxu0 0.0
  %543 = vmatpush1.msra.mxu0 0.0
  %544 = vmatprep.subr.mxu0 0.0
  %545 = vmatpush1.msra.mxu0 0.0
  %546 = vmatprep.subr.mxu0 0.0
  %547 = vmatpush1.msra.mxu0 0.0
  %548 = vmatprep.subr.mxu0 0.0
  %549 = vmatpush1.msra.mxu0 0.0
  %550 = vmatprep.subr.mxu0 0.0
  %551 = vmatpush1.msra.mxu0 0.0
  %552 = vmatprep.subr.mxu0 0.0
  %553 = vmatpush1.msra.mxu0 0.0
  %554 = vmatprep.subr.mxu0 0.0
  %555 = vmatpush1.msra.mxu0 0.0
  %556 = vmatprep.mubr.f32.mxu0 0.0
  %557 = vmatmul.mubr.f32.gmra.mrb[0].mxu0 %v123
  %v558 = vpop.f32.mrb[0].mxu0
  %v559 = vadd.f32 %v100, %v558
  %v560 = vpop.f32.mrb[0].mxu0
  %v561 = vadd.f32 %v104, %v560
  %562 = vmatprep.mubr.f32.mxu0 0.0
  %563 = vmatmul.mubr.f32.gmra.mrb[0].mxu0 %v126
  %v564 = vpop.f32.mrb[0].mxu0
  %v565 = vadd.f32 %v100, %v564
  %v566 = vpop.f32.mrb[0].mxu0
  %v567 = vadd.f32 %v104, %v566
  %568 = vmatprep.mubr.f32.mxu0 0.0
  %569 = vmatmul.mubr.f32.gmra.mrb[0].mxu0 %v129
  %v570 = vpop.f32.mrb[0].mxu0
  %v571 = vadd.f32 %v100, %v570
  %v572 = vpop.f32.mrb[0].mxu0
  %v573 = vadd.f32 %v104, %v572
  %574 = vmatprep.mubr.f32.mxu0 0.0
  %575 = vmatmul.mubr.f32.gmra.mrb[0].mxu0 %v132
  %v576 = vpop.f32.mrb[0].mxu0
  %v577 = vadd.f32 %v100, %v576
  %v578 = vpop.f32.mrb[0].mxu0
  %v579 = vadd.f32 %v104, %v578
  %580 = vmatprep.mubr.f32.mxu0 0.0
  %581 = vmatmul.mubr.f32.gmra.mrb[0].mxu0 %v135
  %v582 = vpop.f32.mrb[0].mxu0
  %v583 = vadd.f32 %v100, %v582
  %v584 = vpop.f32.mrb[0].mxu0
  %v585 = vadd.f32 %v104, %v584
  %586 = vmatprep.mubr.f32.mxu0 0.0
  %587 = vmatmul.mubr.f32.gmra.mrb[0].mxu0 %v138
  %v588 = vpop.f32.mrb[0].mxu0
  %v589 = vadd.f32 %v100, %v588
  %v590 = vpop.f32.mrb[0].mxu0
  %v591 = vadd.f32 %v104, %v590
  %592 = vmatprep.mubr.f32.mxu0 0.0
  %593 = vmatmul.mubr.f32.gmra.mrb[0].mxu0 %v141
  %v594 = vpop.f32.mrb[0].mxu0
  %v595 = vadd.f32 %v100, %v594
  %v596 = vpop.f32.mrb[0].mxu0
  %v597 = vadd.f32 %v104, %v596
  %598 = vmatprep.mubr.f32.mxu0 0.0
  %599 = vmatmul.mubr.f32.gmra.mrb[0].mxu0 %v144
  %v600 = vpop.f32.mrb[0].mxu0
  %v601 = vadd.f32 %v100, %v600
  %v602 = vpop.f32.mrb[0].mxu0
  %v603 = vadd.f32 %v104, %v602
  %604 = vmatprep.mubr.f32.mxu0 0.0
  %605 = vmatmul.mubr.f32.gmra.mrb[0].mxu0 %v147
  %v606 = vpop.f32.mrb[0].mxu0
  %v607 = vadd.f32 %v100, %v606
  %v608 = vpop.f32.mrb[0].mxu0
  %v609 = vadd.f32 %v104, %v608
  %610 = vmatprep.mubr.f32.mxu0 0.0
  %611 = vmatmul.mubr.f32.gmra.mrb[0].mxu0 %v150
  %v612 = vpop.f32.mrb[0].mxu0
  %v613 = vadd.f32 %v100, %v612
  %v614 = vpop.f32.mrb[0].mxu0
  %v615 = vadd.f32 %v104, %v614
  %616 = vmatprep.mubr.f32.mxu0 0.0
  %617 = vmatmul.mubr.f32.gmra.mrb[0].mxu0 %v153
  %v618 = vpop.f32.mrb[0].mxu0
  %v619 = vadd.f32 %v100, %v618
  %v620 = vpop.f32.mrb[0].mxu0
  %v621 = vadd.f32 %v104, %v620
  %622 = vmatprep.mubr.f32.mxu0 0.0
  %623 = vmatmul.mubr.f32.gmra.mrb[0].mxu0 %v156
  %v624 = vpop.f32.mrb[0].mxu0
  %v625 = vadd.f32 %v100, %v624
  %v626 = vpop.f32.mrb[0].mxu0
  %v627 = vadd.f32 %v104, %v626
  %628 = vmatprep.mubr.f32.mxu0 0.0
  %629 = vmatmul.mubr.f32.gmra.mrb[0].mxu0 %v159
  %v630 = vpop.f32.mrb[0].mxu0
  %v631 = vadd.f32 %v100, %v630
  %v632 = vpop.f32.mrb[0].mxu0
  %v633 = vadd.f32 %v104, %v632
  %634 = vmatprep.mubr.f32.mxu0 0.0
  %635 = vmatmul.mubr.f32.gmra.mrb[0].mxu0 %v162
  %v636 = vpop.f32.mrb[0].mxu0
  %v637 = vadd.f32 %v100, %v636
  %v638 = vpop.f32.mrb[0].mxu0
  %v639 = vadd.f32 %v104, %v638
  %640 = vmatprep.mubr.f32.mxu0 0.0
  %641 = vmatmul.mubr.f32.gmra.mrb[0].mxu0 %v165
  %v642 = vpop.f32.mrb[0].mxu0
  %v643 = vadd.f32 %v100, %v642
  %v644 = vpop.f32.mrb[0].mxu0
  %v645 = vadd.f32 %v104, %v644
  %646 = vmatprep.mubr.f32.mxu0 0.0
  %647 = vmatmul.mubr.f32.gmra.mrb[0].mxu0 %v168
  %v648 = vpop.f32.mrb[0].mxu0
  %v649 = vadd.f32 %v100, %v648
  %v650 = vpop.f32.mrb[0].mxu0
  %v651 = vadd.f32 %v104, %v650
  %652 = vdwg.mxu0
  %653 = vmatprep.subr.mxu0 %v70
  %654 = vmatpush1.msra.mxu0 %v69
  %655 = vmatprep.subr.mxu0 %v78
  %656 = vmatpush1.msra.mxu0 %v77
  %657 = vmatprep.subr.mxu0 0.0
  %658 = vmatpush1.msra.mxu0 0.0
  %659 = vmatprep.subr.mxu0 0.0
  %660 = vmatpush1.msra.mxu0 0.0
  %661 = vmatprep.subr.mxu0 0.0
  %662 = vmatpush1.msra.mxu0 0.0
  %663 = vmatprep.subr.mxu0 0.0
  %664 = vmatpush1.msra.mxu0 0.0
  %665 = vmatprep.subr.mxu0 0.0
  %666 = vmatpush1.msra.mxu0 0.0
  %667 = vmatprep.subr.mxu0 0.0
  %668 = vmatpush1.msra.mxu0 0.0
  %669 = vmatprep.subr.mxu0 0.0
  %670 = vmatpush1.msra.mxu0 0.0
  %671 = vmatprep.subr.mxu0 0.0
  %672 = vmatpush1.msra.mxu0 0.0
  %673 = vmatprep.subr.mxu0 0.0
  %674 = vmatpush1.msra.mxu0 0.0
  %675 = vmatprep.subr.mxu0 0.0
  %676 = vmatpush1.msra.mxu0 0.0
  %677 = vmatprep.subr.mxu0 0.0
  %678 = vmatpush1.msra.mxu0 0.0
  %679 = vmatprep.subr.mxu0 0.0
  %680 = vmatpush1.msra.mxu0 0.0
  %681 = vmatprep.subr.mxu0 0.0
  %682 = vmatpush1.msra.mxu0 0.0
  %683 = vmatprep.subr.mxu0 0.0
  %684 = vmatpush1.msra.mxu0 0.0
  %685 = vmatprep.subr.mxu0 0.0
  %686 = vmatpush1.msra.mxu0 0.0
  %687 = vmatprep.subr.mxu0 0.0
  %688 = vmatpush1.msra.mxu0 0.0
  %689 = vmatprep.subr.mxu0 0.0
  %690 = vmatpush1.msra.mxu0 0.0
  %691 = vmatprep.subr.mxu0 0.0
  %692 = vmatpush1.msra.mxu0 0.0
  %693 = vmatprep.subr.mxu0 0.0
  %694 = vmatpush1.msra.mxu0 0.0
  %695 = vmatprep.subr.mxu0 0.0
  %696 = vmatpush1.msra.mxu0 0.0
  %697 = vmatprep.subr.mxu0 0.0
  %698 = vmatpush1.msra.mxu0 0.0
  %699 = vmatprep.subr.mxu0 0.0
  %700 = vmatpush1.msra.mxu0 0.0
  %701 = vmatprep.subr.mxu0 0.0
  %702 = vmatpush1.msra.mxu0 0.0
  %703 = vmatprep.subr.mxu0 0.0
  %704 = vmatpush1.msra.mxu0 0.0
  %705 = vmatprep.subr.mxu0 0.0
  %706 = vmatpush1.msra.mxu0 0.0
  %707 = vmatprep.subr.mxu0 0.0
  %708 = vmatpush1.msra.mxu0 0.0
  %709 = vmatprep.subr.mxu0 0.0
  %710 = vmatpush1.msra.mxu0 0.0
  %711 = vmatprep.subr.mxu0 0.0
  %712 = vmatpush1.msra.mxu0 0.0
  %713 = vmatprep.subr.mxu0 0.0
  %714 = vmatpush1.msra.mxu0 0.0
  %715 = vmatprep.subr.mxu0 0.0
  %716 = vmatpush1.msra.mxu0 0.0
  %717 = vmatprep.mubr.f32.mxu0 0.0
  %718 = vmatmul.mubr.f32.gmra.mrb[0].mxu0 %v123
  %v719 = vpop.f32.mrb[0].mxu0
  %v720 = vadd.f32 %v108, %v719
  %v721 = vpop.f32.mrb[0].mxu0
  %v722 = vadd.f32 %v112, %v721
  %723 = vmatprep.mubr.f32.mxu0 0.0
  %724 = vmatmul.mubr.f32.gmra.mrb[0].mxu0 %v126
  %v725 = vpop.f32.mrb[0].mxu0
  %v726 = vadd.f32 %v108, %v725
  %v727 = vpop.f32.mrb[0].mxu0
  %v728 = vadd.f32 %v112, %v727
  %729 = vmatprep.mubr.f32.mxu0 0.0
  %730 = vmatmul.mubr.f32.gmra.mrb[0].mxu0 %v129
  %v731 = vpop.f32.mrb[0].mxu0
  %v732 = vadd.f32 %v108, %v731
  %v733 = vpop.f32.mrb[0].mxu0
  %v734 = vadd.f32 %v112, %v733
  %735 = vmatprep.mubr.f32.mxu0 0.0
  %736 = vmatmul.mubr.f32.gmra.mrb[0].mxu0 %v132
  %v737 = vpop.f32.mrb[0].mxu0
  %v738 = vadd.f32 %v108, %v737
  %v739 = vpop.f32.mrb[0].mxu0
  %v740 = vadd.f32 %v112, %v739
  %741 = vmatprep.mubr.f32.mxu0 0.0
  %742 = vmatmul.mubr.f32.gmra.mrb[0].mxu0 %v135
  %v743 = vpop.f32.mrb[0].mxu0
  %v744 = vadd.f32 %v108, %v743
  %v745 = vpop.f32.mrb[0].mxu0
  %v746 = vadd.f32 %v112, %v745
  %747 = vmatprep.mubr.f32.mxu0 0.0
  %748 = vmatmul.mubr.f32.gmra.mrb[0].mxu0 %v138
  %v749 = vpop.f32.mrb[0].mxu0
  %v750 = vadd.f32 %v108, %v749
  %v751 = vpop.f32.mrb[0].mxu0
  %v752 = vadd.f32 %v112, %v751
  %753 = vmatprep.mubr.f32.mxu0 0.0
  %754 = vmatmul.mubr.f32.gmra.mrb[0].mxu0 %v141
  %v755 = vpop.f32.mrb[0].mxu0
  %v756 = vadd.f32 %v108, %v755
  %v757 = vpop.f32.mrb[0].mxu0
  %v758 = vadd.f32 %v112, %v757
  %759 = vmatprep.mubr.f32.mxu0 0.0
  %760 = vmatmul.mubr.f32.gmra.mrb[0].mxu0 %v144
  %v761 = vpop.f32.mrb[0].mxu0
  %v762 = vadd.f32 %v108, %v761
  %v763 = vpop.f32.mrb[0].mxu0
  %v764 = vadd.f32 %v112, %v763
  %765 = vmatprep.mubr.f32.mxu0 0.0
  %766 = vmatmul.mubr.f32.gmra.mrb[0].mxu0 %v147
  %v767 = vpop.f32.mrb[0].mxu0
  %v768 = vadd.f32 %v108, %v767
  %v769 = vpop.f32.mrb[0].mxu0
  %v770 = vadd.f32 %v112, %v769
  %771 = vmatprep.mubr.f32.mxu0 0.0
  %772 = vmatmul.mubr.f32.gmra.mrb[0].mxu0 %v150
  %v773 = vpop.f32.mrb[0].mxu0
  %v774 = vadd.f32 %v108, %v773
  %v775 = vpop.f32.mrb[0].mxu0
  %v776 = vadd.f32 %v112, %v775
  %777 = vmatprep.mubr.f32.mxu0 0.0
  %778 = vmatmul.mubr.f32.gmra.mrb[0].mxu0 %v153
  %v779 = vpop.f32.mrb[0].mxu0
  %v780 = vadd.f32 %v108, %v779
  %v781 = vpop.f32.mrb[0].mxu0
  %v782 = vadd.f32 %v112, %v781
  %783 = vmatprep.mubr.f32.mxu0 0.0
  %784 = vmatmul.mubr.f32.gmra.mrb[0].mxu0 %v156
  %v785 = vpop.f32.mrb[0].mxu0
  %v786 = vadd.f32 %v108, %v785
  %v787 = vpop.f32.mrb[0].mxu0
  %v788 = vadd.f32 %v112, %v787
  %789 = vmatprep.mubr.f32.mxu0 0.0
  %790 = vmatmul.mubr.f32.gmra.mrb[0].mxu0 %v159
  %v791 = vpop.f32.mrb[0].mxu0
  %v792 = vadd.f32 %v108, %v791
  %v793 = vpop.f32.mrb[0].mxu0
  %v794 = vadd.f32 %v112, %v793
  %795 = vmatprep.mubr.f32.mxu0 0.0
  %796 = vmatmul.mubr.f32.gmra.mrb[0].mxu0 %v162
  %v797 = vpop.f32.mrb[0].mxu0
  %v798 = vadd.f32 %v108, %v797
  %v799 = vpop.f32.mrb[0].mxu0
  %v800 = vadd.f32 %v112, %v799
  %801 = vmatprep.mubr.f32.mxu0 0.0
  %802 = vmatmul.mubr.f32.gmra.mrb[0].mxu0 %v165
  %v803 = vpop.f32.mrb[0].mxu0
  %v804 = vadd.f32 %v108, %v803
  %v805 = vpop.f32.mrb[0].mxu0
  %v806 = vadd.f32 %v112, %v805
  %807 = vmatprep.mubr.f32.mxu0 0.0
  %808 = vmatmul.mubr.f32.gmra.mrb[0].mxu0 %v168
  %v809 = vpop.f32.mrb[0].mxu0
  %v810 = vadd.f32 %v108, %v809
  %v811 = vpop.f32.mrb[0].mxu0
  %v812 = vadd.f32 %v112, %v811
  %813 = vdwg.mxu0
  %814 = vst [vmem:[#allocation2] sm:$0xff] %v237
  %815 = vst [vmem:[#allocation2 + $0x8] sm:$0xff] %v239
  %816 = vst [vmem:[#allocation2 + $0x10] sm:$0xff] %v398
  %817 = vst [vmem:[#allocation2 + $0x18] sm:$0xff] %v400
  %818 = vst [vmem:[#allocation2 + $0x20] sm:$0xff] %v243
  %819 = vst [vmem:[#allocation2 + $0x28] sm:$0xff] %v245
  %820 = vst [vmem:[#allocation2 + $0x30] sm:$0xff] %v404
  %821 = vst [vmem:[#allocation2 + $0x38] sm:$0xff] %v406
  %822 = vst [vmem:[#allocation2 + $0x40] sm:$0xff] %v249
  %823 = vst [vmem:[#allocation2 + $0x48] sm:$0xff] %v251
  %824 = vst [vmem:[#allocation2 + $0x50] sm:$0xff] %v410
  %825 = vst [vmem:[#allocation2 + $0x58] sm:$0xff] %v412
  %826 = vst [vmem:[#allocation2 + $0x60] sm:$0xff] %v255
  %827 = vst [vmem:[#allocation2 + $0x68] sm:$0xff] %v257
  %828 = vst [vmem:[#allocation2 + $0x70] sm:$0xff] %v416
  %829 = vst [vmem:[#allocation2 + $0x78] sm:$0xff] %v418
  %830 = vst [vmem:[#allocation2 + $0x80] sm:$0xff] %v261
  %831 = vst [vmem:[#allocation2 + $0x88] sm:$0xff] %v263
  %832 = vst [vmem:[#allocation2 + $0x90] sm:$0xff] %v422
  %833 = vst [vmem:[#allocation2 + $0x98] sm:$0xff] %v424
  %834 = vst [vmem:[#allocation2 + $0xa0] sm:$0xff] %v267
  %835 = vst [vmem:[#allocation2 + $0xa8] sm:$0xff] %v269
  %836 = vst [vmem:[#allocation2 + $0xb0] sm:$0xff] %v428
  %837 = vst [vmem:[#allocation2 + $0xb8] sm:$0xff] %v430
  %838 = vst [vmem:[#allocation2 + $0xc0] sm:$0xff] %v273
  %839 = vst [vmem:[#allocation2 + $0xc8] sm:$0xff] %v275
  %840 = vst [vmem:[#allocation2 + $0xd0] sm:$0xff] %v434
  %841 = vst [vmem:[#allocation2 + $0xd8] sm:$0xff] %v436
  %842 = vst [vmem:[#allocation2 + $0xe0] sm:$0xff] %v279
  %843 = vst [vmem:[#allocation2 + $0xe8] sm:$0xff] %v281
  %844 = vst [vmem:[#allocation2 + $0xf0] sm:$0xff] %v440
  %845 = vst [vmem:[#allocation2 + $0xf8] sm:$0xff] %v442
  %846 = vst [vmem:[#allocation2 + $0x100] sm:$0xff] %v285
  %847 = vst [vmem:[#allocation2 + $0x108] sm:$0xff] %v287
  %848 = vst [vmem:[#allocation2 + $0x110] sm:$0xff] %v446
  %849 = vst [vmem:[#allocation2 + $0x118] sm:$0xff] %v448
  %850 = vst [vmem:[#allocation2 + $0x120] sm:$0xff] %v291
  %851 = vst [vmem:[#allocation2 + $0x128] sm:$0xff] %v293
  %852 = vst [vmem:[#allocation2 + $0x130] sm:$0xff] %v452
  %853 = vst [vmem:[#allocation2 + $0x138] sm:$0xff] %v454
  %854 = vst [vmem:[#allocation2 + $0x140] sm:$0xff] %v297
  %855 = vst [vmem:[#allocation2 + $0x148] sm:$0xff] %v299
  %856 = vst [vmem:[#allocation2 + $0x150] sm:$0xff] %v458
  %857 = vst [vmem:[#allocation2 + $0x158] sm:$0xff] %v460
  %858 = vst [vmem:[#allocation2 + $0x160] sm:$0xff] %v303
  %859 = vst [vmem:[#allocation2 + $0x168] sm:$0xff] %v305
  %860 = vst [vmem:[#allocation2 + $0x170] sm:$0xff] %v464
  %861 = vst [vmem:[#allocation2 + $0x178] sm:$0xff] %v466
  %862 = vst [vmem:[#allocation2 + $0x180] sm:$0xff] %v309
  %863 = vst [vmem:[#allocation2 + $0x188] sm:$0xff] %v311
  %864 = vst [vmem:[#allocation2 + $0x190] sm:$0xff] %v470
  %865 = vst [vmem:[#allocation2 + $0x198] sm:$0xff] %v472
  %866 = vst [vmem:[#allocation2 + $0x1a0] sm:$0xff] %v315
  %867 = vst [vmem:[#allocation2 + $0x1a8] sm:$0xff] %v317
  %868 = vst [vmem:[#allocation2 + $0x1b0] sm:$0xff] %v476
  %869 = vst [vmem:[#allocation2 + $0x1b8] sm:$0xff] %v478
  %870 = vst [vmem:[#allocation2 + $0x1c0] sm:$0xff] %v321
  %871 = vst [vmem:[#allocation2 + $0x1c8] sm:$0xff] %v323
  %872 = vst [vmem:[#allocation2 + $0x1d0] sm:$0xff] %v482
  %873 = vst [vmem:[#allocation2 + $0x1d8] sm:$0xff] %v484
  %874 = vst [vmem:[#allocation2 + $0x1e0] sm:$0xff] %v327
  %875 = vst [vmem:[#allocation2 + $0x1e8] sm:$0xff] %v329
  %876 = vst [vmem:[#allocation2 + $0x1f0] sm:$0xff] %v488
  %877 = vst [vmem:[#allocation2 + $0x1f8] sm:$0xff] %v490
  %878 = vst [vmem:[#allocation3] sm:$0xff] %v559
  %879 = vst [vmem:[#allocation3 + $0x8] sm:$0xff] %v561
  %880 = vst [vmem:[#allocation3 + $0x10] sm:$0xff] %v720
  %881 = vst [vmem:[#allocation3 + $0x18] sm:$0xff] %v722
  %882 = vst [vmem:[#allocation3 + $0x20] sm:$0xff] %v565
  %883 = vst [vmem:[#allocation3 + $0x28] sm:$0xff] %v567
  %884 = vst [vmem:[#allocation3 + $0x30] sm:$0xff] %v726
  %885 = vst [vmem:[#allocation3 + $0x38] sm:$0xff] %v728
  %886 = vst [vmem:[#allocation3 + $0x40] sm:$0xff] %v571
  %887 = vst [vmem:[#allocation3 + $0x48] sm:$0xff] %v573
  %888 = vst [vmem:[#allocation3 + $0x50] sm:$0xff] %v732
  %889 = vst [vmem:[#allocation3 + $0x58] sm:$0xff] %v734
  %890 = vst [vmem:[#allocation3 + $0x60] sm:$0xff] %v577
  %891 = vst [vmem:[#allocation3 + $0x68] sm:$0xff] %v579
  %892 = vst [vmem:[#allocation3 + $0x70] sm:$0xff] %v738
  %893 = vst [vmem:[#allocation3 + $0x78] sm:$0xff] %v740
  %894 = vst [vmem:[#allocation3 + $0x80] sm:$0xff] %v583
  %895 = vst [vmem:[#allocation3 + $0x88] sm:$0xff] %v585
  %896 = vst [vmem:[#allocation3 + $0x90] sm:$0xff] %v744
  %897 = vst [vmem:[#allocation3 + $0x98] sm:$0xff] %v746
  %898 = vst [vmem:[#allocation3 + $0xa0] sm:$0xff] %v589
  %899 = vst [vmem:[#allocation3 + $0xa8] sm:$0xff] %v591
  %900 = vst [vmem:[#allocation3 + $0xb0] sm:$0xff] %v750
  %901 = vst [vmem:[#allocation3 + $0xb8] sm:$0xff] %v752
  %902 = vst [vmem:[#allocation3 + $0xc0] sm:$0xff] %v595
  %903 = vst [vmem:[#allocation3 + $0xc8] sm:$0xff] %v597
  %904 = vst [vmem:[#allocation3 + $0xd0] sm:$0xff] %v756
  %905 = vst [vmem:[#allocation3 + $0xd8] sm:$0xff] %v758
  %906 = vst [vmem:[#allocation3 + $0xe0] sm:$0xff] %v601
  %907 = vst [vmem:[#allocation3 + $0xe8] sm:$0xff] %v603
  %908 = vst [vmem:[#allocation3 + $0xf0] sm:$0xff] %v762
  %909 = vst [vmem:[#allocation3 + $0xf8] sm:$0xff] %v764
  %910 = vst [vmem:[#allocation3 + $0x100] sm:$0xff] %v607
  %911 = vst [vmem:[#allocation3 + $0x108] sm:$0xff] %v609
  %912 = vst [vmem:[#allocation3 + $0x110] sm:$0xff] %v768
  %913 = vst [vmem:[#allocation3 + $0x118] sm:$0xff] %v770
  %914 = vst [vmem:[#allocation3 + $0x120] sm:$0xff] %v613
  %915 = vst [vmem:[#allocation3 + $0x128] sm:$0xff] %v615
  %916 = vst [vmem:[#allocation3 + $0x130] sm:$0xff] %v774
  %917 = vst [vmem:[#allocation3 + $0x138] sm:$0xff] %v776
  %918 = vst [vmem:[#allocation3 + $0x140] sm:$0xff] %v619
  %919 = vst [vmem:[#allocation3 + $0x148] sm:$0xff] %v621
  %920 = vst [vmem:[#allocation3 + $0x150] sm:$0xff] %v780
  %921 = vst [vmem:[#allocation3 + $0x158] sm:$0xff] %v782
  %922 = vst [vmem:[#allocation3 + $0x160] sm:$0xff] %v625
  %923 = vst [vmem:[#allocation3 + $0x168] sm:$0xff] %v627
  %924 = vst [vmem:[#allocation3 + $0x170] sm:$0xff] %v786
  %925 = vst [vmem:[#allocation3 + $0x178] sm:$0xff] %v788
  %926 = vst [vmem:[#allocation3 + $0x180] sm:$0xff] %v631
  %927 = vst [vmem:[#allocation3 + $0x188] sm:$0xff] %v633
  %928 = vst [vmem:[#allocation3 + $0x190] sm:$0xff] %v792
  %929 = vst [vmem:[#allocation3 + $0x198] sm:$0xff] %v794
  %930 = vst [vmem:[#allocation3 + $0x1a0] sm:$0xff] %v637
  %931 = vst [vmem:[#allocation3 + $0x1a8] sm:$0xff] %v639
  %932 = vst [vmem:[#allocation3 + $0x1b0] sm:$0xff] %v798
  %933 = vst [vmem:[#allocation3 + $0x1b8] sm:$0xff] %v800
  %934 = vst [vmem:[#allocation3 + $0x1c0] sm:$0xff] %v643
  %935 = vst [vmem:[#allocation3 + $0x1c8] sm:$0xff] %v645
  %936 = vst [vmem:[#allocation3 + $0x1d0] sm:$0xff] %v804
  %937 = vst [vmem:[#allocation3 + $0x1d8] sm:$0xff] %v806
  %938 = vst [vmem:[#allocation3 + $0x1e0] sm:$0xff] %v649
  %939 = vst [vmem:[#allocation3 + $0x1e8] sm:$0xff] %v651
  %940 = vst [vmem:[#allocation3 + $0x1f0] sm:$0xff] %v810
  %941 = vst [vmem:[#allocation3 + $0x1f8] sm:$0xff] %v812
  %v942 = vld [vmem:[%s3] sm:$0xff]
  %v943 = vld [vmem:[%s3 + $0x8] sm:$0xff]
  %v944 = vld [vmem:[%s3 + $0x10] sm:$0xff]
  %v945 = vld [vmem:[%s3 + $0x18] sm:$0xff]
  %v946 = vld [vmem:[%s3 + $0x20] sm:$0xff]
  %v947 = vld [vmem:[%s3 + $0x28] sm:$0xff]
  %v948 = vld [vmem:[%s3 + $0x30] sm:$0xff]
  %v949 = vld [vmem:[%s3 + $0x38] sm:$0xff]
  %v950 = vld [vmem:[%s3 + $0x40] sm:$0xff]
  %v951 = vld [vmem:[%s3 + $0x48] sm:$0xff]
  %v952 = vld [vmem:[%s3 + $0x50] sm:$0xff]
  %v953 = vld [vmem:[%s3 + $0x58] sm:$0xff]
  %v954 = vld [vmem:[%s3 + $0x60] sm:$0xff]
  %v955 = vld [vmem:[%s3 + $0x68] sm:$0xff]
  %v956 = vld [vmem:[%s3 + $0x70] sm:$0xff]
  %v957 = vld [vmem:[%s3 + $0x78] sm:$0xff]
  %v958 = vld [vmem:[%s3 + $0x80] sm:$0xff]
  %v959 = vld [vmem:[%s3 + $0x88] sm:$0xff]
  %v960 = vld [vmem:[%s3 + $0x90] sm:$0xff]
  %v961 = vld [vmem:[%s3 + $0x98] sm:$0xff]
  %v962 = vld [vmem:[%s3 + $0xa0] sm:$0xff]
  %v963 = vld [vmem:[%s3 + $0xa8] sm:$0xff]
  %v964 = vld [vmem:[%s3 + $0xb0] sm:$0xff]
  %v965 = vld [vmem:[%s3 + $0xb8] sm:$0xff]
  %v966 = vld [vmem:[%s3 + $0xc0] sm:$0xff]
  %v967 = vld [vmem:[%s3 + $0xc8] sm:$0xff]
  %v968 = vld [vmem:[%s3 + $0xd0] sm:$0xff]
  %v969 = vld [vmem:[%s3 + $0xd8] sm:$0xff]
  %v970 = vld [vmem:[%s3 + $0xe0] sm:$0xff]
  %v971 = vld [vmem:[%s3 + $0xe8] sm:$0xff]
  %v972 = vld [vmem:[%s3 + $0xf0] sm:$0xff]
  %v973 = vld [vmem:[%s3 + $0xf8] sm:$0xff]
  %v974 = vld [vmem:[%s3 + $0x100] sm:$0xff]
  %v975 = vld [vmem:[%s3 + $0x108] sm:$0xff]
  %v976 = vld [vmem:[%s3 + $0x110] sm:$0xff]
  %v977 = vld [vmem:[%s3 + $0x118] sm:$0xff]
  %v978 = vld [vmem:[%s3 + $0x120] sm:$0xff]
  %v979 = vld [vmem:[%s3 + $0x128] sm:$0xff]
  %v980 = vld [vmem:[%s3 + $0x130] sm:$0xff]
  %v981 = vld [vmem:[%s3 + $0x138] sm:$0xff]
  %v982 = vld [vmem:[%s3 + $0x140] sm:$0xff]
  %v983 = vld [vmem:[%s3 + $0x148] sm:$0xff]
  %v984 = vld [vmem:[%s3 + $0x150] sm:$0xff]
  %v985 = vld [vmem:[%s3 + $0x158] sm:$0xff]
  %v986 = vld [vmem:[%s3 + $0x160] sm:$0xff]
  %v987 = vld [vmem:[%s3 + $0x168] sm:$0xff]
  %v988 = vld [vmem:[%s3 + $0x170] sm:$0xff]
  %v989 = vld [vmem:[%s3 + $0x178] sm:$0xff]
  %v990 = vld [vmem:[%s3 + $0x180] sm:$0xff]
  %v991 = vld [vmem:[%s3 + $0x188] sm:$0xff]
  %v992 = vld [vmem:[%s3 + $0x190] sm:$0xff]
  %v993 = vld [vmem:[%s3 + $0x198] sm:$0xff]
  %v994 = vld [vmem:[%s3 + $0x1a0] sm:$0xff]
  %v995 = vld [vmem:[%s3 + $0x1a8] sm:$0xff]
  %v996 = vld [vmem:[%s3 + $0x1b0] sm:$0xff]
  %v997 = vld [vmem:[%s3 + $0x1b8] sm:$0xff]
  %v998 = vld [vmem:[%s3 + $0x1c0] sm:$0xff]
  %v999 = vld [vmem:[%s3 + $0x1c8] sm:$0xff]
  %v1000 = vld [vmem:[%s3 + $0x1d0] sm:$0xff]
  %v1001 = vld [vmem:[%s3 + $0x1d8] sm:$0xff]
  %v1002 = vld [vmem:[%s3 + $0x1e0] sm:$0xff]
  %v1003 = vld [vmem:[%s3 + $0x1e8] sm:$0xff]
  %v1004 = vld [vmem:[%s3 + $0x1f0] sm:$0xff]
  %v1005 = vld [vmem:[%s3 + $0x1f8] sm:$0xff]
  %v1006 = vld [vmem:[%s4] sm:$0xff]
  %v1007 = vld [vmem:[%s4 + $0x8] sm:$0xff]
  %v1008 = vld [vmem:[%s4 + $0x10] sm:$0xff]
  %v1009 = vld [vmem:[%s4 + $0x18] sm:$0xff]
  %v1010 = vld [vmem:[%s4 + $0x20] sm:$0xff]
  %v1011 = vld [vmem:[%s4 + $0x28] sm:$0xff]
  %v1012 = vld [vmem:[%s4 + $0x30] sm:$0xff]
  %v1013 = vld [vmem:[%s4 + $0x38] sm:$0xff]
  %v1014 = vld [vmem:[%s4 + $0x40] sm:$0xff]
  %v1015 = vld [vmem:[%s4 + $0x48] sm:$0xff]
  %v1016 = vld [vmem:[%s4 + $0x50] sm:$0xff]
  %v1017 = vld [vmem:[%s4 + $0x58] sm:$0xff]
  %v1018 = vld [vmem:[%s4 + $0x60] sm:$0xff]
  %v1019 = vld [vmem:[%s4 + $0x68] sm:$0xff]
  %v1020 = vld [vmem:[%s4 + $0x70] sm:$0xff]
  %v1021 = vld [vmem:[%s4 + $0x78] sm:$0xff]
  %v1022 = vld [vmem:[%s4 + $0x80] sm:$0xff]
  %v1023 = vld [vmem:[%s4 + $0x88] sm:$0xff]
  %v1024 = vld [vmem:[%s4 + $0x90] sm:$0xff]
  %v1025 = vld [vmem:[%s4 + $0x98] sm:$0xff]
  %v1026 = vld [vmem:[%s4 + $0xa0] sm:$0xff]
  %v1027 = vld [vmem:[%s4 + $0xa8] sm:$0xff]
  %v1028 = vld [vmem:[%s4 + $0xb0] sm:$0xff]
  %v1029 = vld [vmem:[%s4 + $0xb8] sm:$0xff]
  %v1030 = vld [vmem:[%s4 + $0xc0] sm:$0xff]
  %v1031 = vld [vmem:[%s4 + $0xc8] sm:$0xff]
  %v1032 = vld [vmem:[%s4 + $0xd0] sm:$0xff]
  %v1033 = vld [vmem:[%s4 + $0xd8] sm:$0xff]
  %v1034 = vld [vmem:[%s4 + $0xe0] sm:$0xff]
  %v1035 = vld [vmem:[%s4 + $0xe8] sm:$0xff]
  %v1036 = vld [vmem:[%s4 + $0xf0] sm:$0xff]
  %v1037 = vld [vmem:[%s4 + $0xf8] sm:$0xff]
  %v1038 = vld [vmem:[%s4 + $0x100] sm:$0xff]
  %v1039 = vld [vmem:[%s4 + $0x108] sm:$0xff]
  %v1040 = vld [vmem:[%s4 + $0x110] sm:$0xff]
  %v1041 = vld [vmem:[%s4 + $0x118] sm:$0xff]
  %v1042 = vld [vmem:[%s4 + $0x120] sm:$0xff]
  %v1043 = vld [vmem:[%s4 + $0x128] sm:$0xff]
  %v1044 = vld [vmem:[%s4 + $0x130] sm:$0xff]
  %v1045 = vld [vmem:[%s4 + $0x138] sm:$0xff]
  %v1046 = vld [vmem:[%s4 + $0x140] sm:$0xff]
  %v1047 = vld [vmem:[%s4 + $0x148] sm:$0xff]
  %v1048 = vld [vmem:[%s4 + $0x150] sm:$0xff]
  %v1049 = vld [vmem:[%s4 + $0x158] sm:$0xff]
  %v1050 = vld [vmem:[%s4 + $0x160] sm:$0xff]
  %v1051 = vld [vmem:[%s4 + $0x168] sm:$0xff]
  %v1052 = vld [vmem:[%s4 + $0x170] sm:$0xff]
  %v1053 = vld [vmem:[%s4 + $0x178] sm:$0xff]
  %v1054 = vld [vmem:[%s4 + $0x180] sm:$0xff]
  %v1055 = vld [vmem:[%s4 + $0x188] sm:$0xff]
  %v1056 = vld [vmem:[%s4 + $0x190] sm:$0xff]
  %v1057 = vld [vmem:[%s4 + $0x198] sm:$0xff]
  %v1058 = vld [vmem:[%s4 + $0x1a0] sm:$0xff]
  %v1059 = vld [vmem:[%s4 + $0x1a8] sm:$0xff]
  %v1060 = vld [vmem:[%s4 + $0x1b0] sm:$0xff]
  %v1061 = vld [vmem:[%s4 + $0x1b8] sm:$0xff]
  %v1062 = vld [vmem:[%s4 + $0x1c0] sm:$0xff]
  %v1063 = vld [vmem:[%s4 + $0x1c8] sm:$0xff]
  %v1064 = vld [vmem:[%s4 + $0x1d0] sm:$0xff]
  %v1065 = vld [vmem:[%s4 + $0x1d8] sm:$0xff]
  %v1066 = vld [vmem:[%s4 + $0x1e0] sm:$0xff]
  %v1067 = vld [vmem:[%s4 + $0x1e8] sm:$0xff]
  %v1068 = vld [vmem:[%s4 + $0x1f0] sm:$0xff]
  %v1069 = vld [vmem:[%s4 + $0x1f8] sm:$0xff]
  %s1070 = smul.u32 0, 4
  %s1071 = smul.addr %s1070, 8
  %s1072 = scalar_lea.vmem [#allocation2], %s1071
  %v1073 = vld [vmem:[%s1072] sm:$0xff]
  %v1074 = vld [vmem:[%s1072 + $0x8] sm:$0xff]
  %v1075 = vld [vmem:[%s1072 + $0x10] sm:$0xff]
  %v1076 = vld [vmem:[%s1072 + $0x18] sm:$0xff]
  %v1077 = vld [vmem:[%s1072 + $0x20] sm:$0xff]
  %v1078 = vld [vmem:[%s1072 + $0x28] sm:$0xff]
  %v1079 = vld [vmem:[%s1072 + $0x30] sm:$0xff]
  %v1080 = vld [vmem:[%s1072 + $0x38] sm:$0xff]
  %1081 = vmatprep.subr.mxu0 %v943
  %1082 = vmatpush1.msra.mxu0 %v942
  %1083 = vmatprep.subr.mxu0 %v947
  %1084 = vmatpush1.msra.mxu0 %v946
  %1085 = vmatprep.subr.mxu0 %v951
  %1086 = vmatpush1.msra.mxu0 %v950
  %1087 = vmatprep.subr.mxu0 %v955
  %1088 = vmatpush1.msra.mxu0 %v954
  %1089 = vmatprep.subr.mxu0 %v959
  %1090 = vmatpush1.msra.mxu0 %v958
  %1091 = vmatprep.subr.mxu0 %v963
  %1092 = vmatpush1.msra.mxu0 %v962
  %1093 = vmatprep.subr.mxu0 %v967
  %1094 = vmatpush1.msra.mxu0 %v966
  %1095 = vmatprep.subr.mxu0 %v971
  %1096 = vmatpush1.msra.mxu0 %v970
  %1097 = vmatprep.subr.mxu0 %v975
  %1098 = vmatpush1.msra.mxu0 %v974
  %1099 = vmatprep.subr.mxu0 %v979
  %1100 = vmatpush1.msra.mxu0 %v978
  %1101 = vmatprep.subr.mxu0 %v983
  %1102 = vmatpush1.msra.mxu0 %v982
  %1103 = vmatprep.subr.mxu0 %v987
  %1104 = vmatpush1.msra.mxu0 %v986
  %1105 = vmatprep.subr.mxu0 %v991
  %1106 = vmatpush1.msra.mxu0 %v990
  %1107 = vmatprep.subr.mxu0 %v995
  %1108 = vmatpush1.msra.mxu0 %v994
  %1109 = vmatprep.subr.mxu0 %v999
  %1110 = vmatpush1.msra.mxu0 %v998
  %1111 = vmatprep.subr.mxu0 %v1003
  %1112 = vmatpush1.msra.mxu0 %v1002
  %1113 = vmatprep.subr.mxu0 0.0
  %1114 = vmatpush1.msra.mxu0 0.0
  %1115 = vmatprep.subr.mxu0 0.0
  %1116 = vmatpush1.msra.mxu0 0.0
  %1117 = vmatprep.subr.mxu0 0.0
  %1118 = vmatpush1.msra.mxu0 0.0
  %1119 = vmatprep.subr.mxu0 0.0
  %1120 = vmatpush1.msra.mxu0 0.0
  %1121 = vmatprep.subr.mxu0 0.0
  %1122 = vmatpush1.msra.mxu0 0.0
  %1123 = vmatprep.subr.mxu0 0.0
  %1124 = vmatpush1.msra.mxu0 0.0
  %1125 = vmatprep.subr.mxu0 0.0
  %1126 = vmatpush1.msra.mxu0 0.0
  %1127 = vmatprep.subr.mxu0 0.0
  %1128 = vmatpush1.msra.mxu0 0.0
  %1129 = vmatprep.subr.mxu0 0.0
  %1130 = vmatpush1.msra.mxu0 0.0
  %1131 = vmatprep.subr.mxu0 0.0
  %1132 = vmatpush1.msra.mxu0 0.0
  %1133 = vmatprep.subr.mxu0 0.0
  %1134 = vmatpush1.msra.mxu0 0.0
  %1135 = vmatprep.subr.mxu0 0.0
  %1136 = vmatpush1.msra.mxu0 0.0
  %1137 = vmatprep.subr.mxu0 0.0
  %1138 = vmatpush1.msra.mxu0 0.0
  %1139 = vmatprep.subr.mxu0 0.0
  %1140 = vmatpush1.msra.mxu0 0.0
  %1141 = vmatprep.subr.mxu0 0.0
  %1142 = vmatpush1.msra.mxu0 0.0
  %1143 = vmatprep.subr.mxu0 0.0
  %1144 = vmatpush1.msra.mxu0 0.0
  %1145 = vmatprep.mubr.f32.mxu0 0.0
  %1146 = vmatmul.mubr.f32.gmra.mrb[0].mxu0 0.0
  %v1147 = vpop.f32.mrb[0].mxu0
  %v1148 = vadd.f32 0.0, %v1147
  %v1149 = vpop.f32.mrb[0].mxu0
  %v1150 = vadd.f32 0.0, %v1149
  %1151 = vmatprep.mubr.f32.mxu0 0.0
  %1152 = vmatmul.mubr.f32.gmra.mrb[0].mxu0 0.0
  %v1153 = vpop.f32.mrb[0].mxu0
  %v1154 = vadd.f32 0.0, %v1153
  %v1155 = vpop.f32.mrb[0].mxu0
  %v1156 = vadd.f32 0.0, %v1155
  %1157 = vdwg.mxu0
  %1158 = vmatprep.subr.mxu0 %v945
  %1159 = vmatpush1.msra.mxu0 %v944
  %1160 = vmatprep.subr.mxu0 %v949
  %1161 = vmatpush1.msra.mxu0 %v948
  %1162 = vmatprep.subr.mxu0 %v953
  %1163 = vmatpush1.msra.mxu0 %v952
  %1164 = vmatprep.subr.mxu0 %v957
  %1165 = vmatpush1.msra.mxu0 %v956
  %1166 = vmatprep.subr.mxu0 %v961
  %1167 = vmatpush1.msra.mxu0 %v960
  %1168 = vmatprep.subr.mxu0 %v965
  %1169 = vmatpush1.msra.mxu0 %v964
  %1170 = vmatprep.subr.mxu0 %v969
  %1171 = vmatpush1.msra.mxu0 %v968
  %1172 = vmatprep.subr.mxu0 %v973
  %1173 = vmatpush1.msra.mxu0 %v972
  %1174 = vmatprep.subr.mxu0 %v977
  %1175 = vmatpush1.msra.mxu0 %v976
  %1176 = vmatprep.subr.mxu0 %v981
  %1177 = vmatpush1.msra.mxu0 %v980
  %1178 = vmatprep.subr.mxu0 %v985
  %1179 = vmatpush1.msra.mxu0 %v984
  %1180 = vmatprep.subr.mxu0 %v989
  %1181 = vmatpush1.msra.mxu0 %v988
  %1182 = vmatprep.subr.mxu0 %v993
  %1183 = vmatpush1.msra.mxu0 %v992
  %1184 = vmatprep.subr.mxu0 %v997
  %1185 = vmatpush1.msra.mxu0 %v996
  %1186 = vmatprep.subr.mxu0 %v1001
  %1187 = vmatpush1.msra.mxu0 %v1000
  %1188 = vmatprep.subr.mxu0 %v1005
  %1189 = vmatpush1.msra.mxu0 %v1004
  %1190 = vmatprep.subr.mxu0 0.0
  %1191 = vmatpush1.msra.mxu0 0.0
  %1192 = vmatprep.subr.mxu0 0.0
  %1193 = vmatpush1.msra.mxu0 0.0
  %1194 = vmatprep.subr.mxu0 0.0
  %1195 = vmatpush1.msra.mxu0 0.0
  %1196 = vmatprep.subr.mxu0 0.0
  %1197 = vmatpush1.msra.mxu0 0.0
  %1198 = vmatprep.subr.mxu0 0.0
  %1199 = vmatpush1.msra.mxu0 0.0
  %1200 = vmatprep.subr.mxu0 0.0
  %1201 = vmatpush1.msra.mxu0 0.0
  %1202 = vmatprep.subr.mxu0 0.0
  %1203 = vmatpush1.msra.mxu0 0.0
  %1204 = vmatprep.subr.mxu0 0.0
  %1205 = vmatpush1.msra.mxu0 0.0
  %1206 = vmatprep.subr.mxu0 0.0
  %1207 = vmatpush1.msra.mxu0 0.0
  %1208 = vmatprep.subr.mxu0 0.0
  %1209 = vmatpush1.msra.mxu0 0.0
  %1210 = vmatprep.subr.mxu0 0.0
  %1211 = vmatpush1.msra.mxu0 0.0
  %1212 = vmatprep.subr.mxu0 0.0
  %1213 = vmatpush1.msra.mxu0 0.0
  %1214 = vmatprep.subr.mxu0 0.0
  %1215 = vmatpush1.msra.mxu0 0.0
  %1216 = vmatprep.subr.mxu0 0.0
  %1217 = vmatpush1.msra.mxu0 0.0
  %1218 = vmatprep.subr.mxu0 0.0
  %1219 = vmatpush1.msra.mxu0 0.0
  %1220 = vmatprep.subr.mxu0 0.0
  %1221 = vmatpush1.msra.mxu0 0.0
  %1222 = vmatprep.mubr.f32.mxu0 0.0
  %1223 = vmatmul.mubr.f32.gmra.mrb[0].mxu0 0.0
  %v1224 = vpop.f32.mrb[0].mxu0
  %v1225 = vadd.f32 0.0, %v1224
  %v1226 = vpop.f32.mrb[0].mxu0
  %v1227 = vadd.f32 0.0, %v1226
  %1228 = vmatprep.mubr.f32.mxu0 0.0
  %1229 = vmatmul.mubr.f32.gmra.mrb[0].mxu0 0.0
  %v1230 = vpop.f32.mrb[0].mxu0
  %v1231 = vadd.f32 0.0, %v1230
  %v1232 = vpop.f32.mrb[0].mxu0
  %v1233 = vadd.f32 0.0, %v1232
  %1234 = vdwg.mxu0
  %v1235 = vadd.f32 %v1073, %v1148
  %v1236 = vadd.f32 %v1074, %v1150
  %v1237 = vadd.f32 %v1075, %v1225
  %v1238 = vadd.f32 %v1076, %v1227
  %v1239 = vadd.f32 %v1077, %v1154
  %v1240 = vadd.f32 %v1078, %v1156
  %v1241 = vadd.f32 %v1079, %v1231
  %v1242 = vadd.f32 %v1080, %v1233
  %v1243 = vxor.u32 %v1235, 2147483648
  %v1244 = vxor.u32 %v1239, 2147483648
  %v1245 = vmul.f32 %v1243, 1.442695
  %v1246 = vpow.pop %v1245
  %v1247 = vmul.f32 %v1244, 1.442695
  %v1248 = vpow.pop %v1247
  %v1249 = vadd.f32 %v1246, 1.0
  %v1250 = vadd.f32 %v1248, 1.0
  %v1251 = vrcp.pop %v1249
  %v1252 = vmul.f32 1.0, %v1251
  %v1253 = vrcp.pop %v1250
  %v1254 = vmul.f32 1.0, %v1253
  %v1255 = vxor.u32 %v1236, 2147483648
  %v1256 = vxor.u32 %v1240, 2147483648
  %v1257 = vmul.f32 %v1255, 1.442695
  %v1258 = vpow.pop %v1257
  %v1259 = vmul.f32 %v1256, 1.442695
  %v1260 = vpow.pop %v1259
  %v1261 = vadd.f32 %v1258, 1.0
  %v1262 = vadd.f32 %v1260, 1.0
  %v1263 = vrcp.pop %v1261
  %v1264 = vmul.f32 1.0, %v1263
  %v1265 = vrcp.pop %v1262
  %v1266 = vmul.f32 1.0, %v1265
  %v1267 = vtanh.pop %v1237
  %v1268 = vtanh.pop %v1241
  %v1269 = vxor.u32 %v1238, 2147483648
  %v1270 = vxor.u32 %v1242, 2147483648
  %v1271 = vmul.f32 %v1269, 1.442695
  %v1272 = vpow.pop %v1271
  %v1273 = vmul.f32 %v1270, 1.442695
  %v1274 = vpow.pop %v1273
  %v1275 = vadd.f32 %v1272, 1.0
  %v1276 = vadd.f32 %v1274, 1.0
  %v1277 = vrcp.pop %v1275
  %v1278 = vmul.f32 1.0, %v1277
  %v1279 = vrcp.pop %v1276
  %v1280 = vmul.f32 1.0, %v1279
  %v1281 = vmul.f32 %v1264, 0.0
  %v1282 = vmul.f32 %v1266, 0.0
  %v1283 = vmul.f32 %v1252, %v1267
  %v1284 = vmul.f32 %v1254, %v1268
  %v1285 = vadd.f32 %v1281, %v1283
  %v1286 = vadd.f32 %v1282, %v1284
  %v1287 = vtanh.pop %v1285
  %v1288 = vtanh.pop %v1286
  %v1289 = vmul.f32 %v1278, %v1287
  %v1290 = vmul.f32 %v1280, %v1288
  %s1291 = smul.u32 14, 4
  %s1292 = smul.addr %s1291, 8
  %s1293 = scalar_lea.vmem [#allocation3], %s1292
  %v1294 = vld [vmem:[%s1293] sm:$0xff]
  %v1295 = vld [vmem:[%s1293 + $0x8] sm:$0xff]
  %v1296 = vld [vmem:[%s1293 + $0x10] sm:$0xff]
  %v1297 = vld [vmem:[%s1293 + $0x18] sm:$0xff]
  %v1298 = vld [vmem:[%s1293 + $0x20] sm:$0xff]
  %v1299 = vld [vmem:[%s1293 + $0x28] sm:$0xff]
  %v1300 = vld [vmem:[%s1293 + $0x30] sm:$0xff]
  %v1301 = vld [vmem:[%s1293 + $0x38] sm:$0xff]
  %1302 = vmatprep.subr.mxu0 %v1007
  %1303 = vmatpush1.msra.mxu0 %v1006
  %1304 = vmatprep.subr.mxu0 %v1011
  %1305 = vmatpush1.msra.mxu0 %v1010
  %1306 = vmatprep.subr.mxu0 %v1015
  %1307 = vmatpush1.msra.mxu0 %v1014
  %1308 = vmatprep.subr.mxu0 %v1019
  %1309 = vmatpush1.msra.mxu0 %v1018
  %1310 = vmatprep.subr.mxu0 %v1023
  %1311 = vmatpush1.msra.mxu0 %v1022
  %1312 = vmatprep.subr.mxu0 %v1027
  %1313 = vmatpush1.msra.mxu0 %v1026
  %1314 = vmatprep.subr.mxu0 %v1031
  %1315 = vmatpush1.msra.mxu0 %v1030
  %1316 = vmatprep.subr.mxu0 %v1035
  %1317 = vmatpush1.msra.mxu0 %v1034
  %1318 = vmatprep.subr.mxu0 %v1039
  %1319 = vmatpush1.msra.mxu0 %v1038
  %1320 = vmatprep.subr.mxu0 %v1043
  %1321 = vmatpush1.msra.mxu0 %v1042
  %1322 = vmatprep.subr.mxu0 %v1047
  %1323 = vmatpush1.msra.mxu0 %v1046
  %1324 = vmatprep.subr.mxu0 %v1051
  %1325 = vmatpush1.msra.mxu0 %v1050
  %1326 = vmatprep.subr.mxu0 %v1055
  %1327 = vmatpush1.msra.mxu0 %v1054
  %1328 = vmatprep.subr.mxu0 %v1059
  %1329 = vmatpush1.msra.mxu0 %v1058
  %1330 = vmatprep.subr.mxu0 %v1063
  %1331 = vmatpush1.msra.mxu0 %v1062
  %1332 = vmatprep.subr.mxu0 %v1067
  %1333 = vmatpush1.msra.mxu0 %v1066
  %1334 = vmatprep.subr.mxu0 0.0
  %1335 = vmatpush1.msra.mxu0 0.0
  %1336 = vmatprep.subr.mxu0 0.0
  %1337 = vmatpush1.msra.mxu0 0.0
  %1338 = vmatprep.subr.mxu0 0.0
  %1339 = vmatpush1.msra.mxu0 0.0
  %1340 = vmatprep.subr.mxu0 0.0
  %1341 = vmatpush1.msra.mxu0 0.0
  %1342 = vmatprep.subr.mxu0 0.0
  %1343 = vmatpush1.msra.mxu0 0.0
  %1344 = vmatprep.subr.mxu0 0.0
  %1345 = vmatpush1.msra.mxu0 0.0
  %1346 = vmatprep.subr.mxu0 0.0
  %1347 = vmatpush1.msra.mxu0 0.0
  %1348 = vmatprep.subr.mxu0 0.0
  %1349 = vmatpush1.msra.mxu0 0.0
  %1350 = vmatprep.subr.mxu0 0.0
  %1351 = vmatpush1.msra.mxu0 0.0
  %1352 = vmatprep.subr.mxu0 0.0
  %1353 = vmatpush1.msra.mxu0 0.0
  %1354 = vmatprep.subr.mxu0 0.0
  %1355 = vmatpush1.msra.mxu0 0.0
  %1356 = vmatprep.subr.mxu0 0.0
  %1357 = vmatpush1.msra.mxu0 0.0
  %1358 = vmatprep.subr.mxu0 0.0
  %1359 = vmatpush1.msra.mxu0 0.0
  %1360 = vmatprep.subr.mxu0 0.0
  %1361 = vmatpush1.msra.mxu0 0.0
  %1362 = vmatprep.subr.mxu0 0.0
  %1363 = vmatpush1.msra.mxu0 0.0
  %1364 = vmatprep.subr.mxu0 0.0
  %1365 = vmatpush1.msra.mxu0 0.0
  %1366 = vmatprep.mubr.f32.mxu0 0.0
  %1367 = vmatmul.mubr.f32.gmra.mrb[0].mxu0 0.0
  %v1368 = vpop.f32.mrb[0].mxu0
  %v1369 = vadd.f32 0.0, %v1368
  %v1370 = vpop.f32.mrb[0].mxu0
  %v1371 = vadd.f32 0.0, %v1370
  %1372 = vmatprep.mubr.f32.mxu0 0.0
  %1373 = vmatmul.mubr.f32.gmra.mrb[0].mxu0 0.0
  %v1374 = vpop.f32.mrb[0].mxu0
  %v1375 = vadd.f32 0.0, %v1374
  %v1376 = vpop.f32.mrb[0].mxu0
  %v1377 = vadd.f32 0.0, %v1376
  %1378 = vdwg.mxu0
  %1379 = vmatprep.subr.mxu0 %v1009
  %1380 = vmatpush1.msra.mxu0 %v1008
  %1381 = vmatprep.subr.mxu0 %v1013
  %1382 = vmatpush1.msra.mxu0 %v1012
  %1383 = vmatprep.subr.mxu0 %v1017
  %1384 = vmatpush1.msra.mxu0 %v1016
  %1385 = vmatprep.subr.mxu0 %v1021
  %1386 = vmatpush1.msra.mxu0 %v1020
  %1387 = vmatprep.subr.mxu0 %v1025
  %1388 = vmatpush1.msra.mxu0 %v1024
  %1389 = vmatprep.subr.mxu0 %v1029
  %1390 = vmatpush1.msra.mxu0 %v1028
  %1391 = vmatprep.subr.mxu0 %v1033
  %1392 = vmatpush1.msra.mxu0 %v1032
  %1393 = vmatprep.subr.mxu0 %v1037
  %1394 = vmatpush1.msra.mxu0 %v1036
  %1395 = vmatprep.subr.mxu0 %v1041
  %1396 = vmatpush1.msra.mxu0 %v1040
  %1397 = vmatprep.subr.mxu0 %v1045
  %1398 = vmatpush1.msra.mxu0 %v1044
  %1399 = vmatprep.subr.mxu0 %v1049
  %1400 = vmatpush1.msra.mxu0 %v1048
  %1401 = vmatprep.subr.mxu0 %v1053
  %1402 = vmatpush1.msra.mxu0 %v1052
  %1403 = vmatprep.subr.mxu0 %v1057
  %1404 = vmatpush1.msra.mxu0 %v1056
  %1405 = vmatprep.subr.mxu0 %v1061
  %1406 = vmatpush1.msra.mxu0 %v1060
  %1407 = vmatprep.subr.mxu0 %v1065
  %1408 = vmatpush1.msra.mxu0 %v1064
  %1409 = vmatprep.subr.mxu0 %v1069
  %1410 = vmatpush1.msra.mxu0 %v1068
  %1411 = vmatprep.subr.mxu0 0.0
  %1412 = vmatpush1.msra.mxu0 0.0
  %1413 = vmatprep.subr.mxu0 0.0
  %1414 = vmatpush1.msra.mxu0 0.0
  %1415 = vmatprep.subr.mxu0 0.0
  %1416 = vmatpush1.msra.mxu0 0.0
  %1417 = vmatprep.subr.mxu0 0.0
  %1418 = vmatpush1.msra.mxu0 0.0
  %1419 = vmatprep.subr.mxu0 0.0
  %1420 = vmatpush1.msra.mxu0 0.0
  %1421 = vmatprep.subr.mxu0 0.0
  %1422 = vmatpush1.msra.mxu0 0.0
  %1423 = vmatprep.subr.mxu0 0.0
  %1424 = vmatpush1.msra.mxu0 0.0
  %1425 = vmatprep.subr.mxu0 0.0
  %1426 = vmatpush1.msra.mxu0 0.0
  %1427 = vmatprep.subr.mxu0 0.0
  %1428 = vmatpush1.msra.mxu0 0.0
  %1429 = vmatprep.subr.mxu0 0.0
  %1430 = vmatpush1.msra.mxu0 0.0
  %1431 = vmatprep.subr.mxu0 0.0
  %1432 = vmatpush1.msra.mxu0 0.0
  %1433 = vmatprep.subr.mxu0 0.0
  %1434 = vmatpush1.msra.mxu0 0.0
  %1435 = vmatprep.subr.mxu0 0.0
  %1436 = vmatpush1.msra.mxu0 0.0
  %1437 = vmatprep.subr.mxu0 0.0
  %1438 = vmatpush1.msra.mxu0 0.0
  %1439 = vmatprep.subr.mxu0 0.0
  %1440 = vmatpush1.msra.mxu0 0.0
  %1441 = vmatprep.subr.mxu0 0.0
  %1442 = vmatpush1.msra.mxu0 0.0
  %1443 = vmatprep.mubr.f32.mxu0 0.0
  %1444 = vmatmul.mubr.f32.gmra.mrb[0].mxu0 0.0
  %v1445 = vpop.f32.mrb[0].mxu0
  %v1446 = vadd.f32 0.0, %v1445
  %v1447 = vpop.f32.mrb[0].mxu0
  %v1448 = vadd.f32 0.0, %v1447
  %1449 = vmatprep.mubr.f32.mxu0 0.0
  %1450 = vmatmul.mubr.f32.gmra.mrb[0].mxu0 0.0
  %v1451 = vpop.f32.mrb[0].mxu0
  %v1452 = vadd.f32 0.0, %v1451
  %v1453 = vpop.f32.mrb[0].mxu0
  %v1454 = vadd.f32 0.0, %v1453
  %1455 = vdwg.mxu0
  %v1456 = vadd.f32 %v1294, %v1369
  %v1457 = vadd.f32 %v1295, %v1371
  %v1458 = vadd.f32 %v1296, %v1446
  %v1459 = vadd.f32 %v1297, %v1448
  %v1460 = vadd.f32 %v1298, %v1375
  %v1461 = vadd.f32 %v1299, %v1377
  %v1462 = vadd.f32 %v1300, %v1452
  %v1463 = vadd.f32 %v1301, %v1454
  %v1464 = vxor.u32 %v1456, 2147483648
  %v1465 = vxor.u32 %v1460, 2147483648
  %v1466 = vmul.f32 %v1464, 1.442695
  %v1467 = vpow.pop %v1466
  %v1468 = vmul.f32 %v1465, 1.442695
  %v1469 = vpow.pop %v1468
  %v1470 = vadd.f32 %v1467, 1.0
  %v1471 = vadd.f32 %v1469, 1.0
  %v1472 = vrcp.pop %v1470
  %v1473 = vmul.f32 1.0, %v1472
  %v1474 = vrcp.pop %v1471
  %v1475 = vmul.f32 1.0, %v1474
  %v1476 = vxor.u32 %v1457, 2147483648
  %v1477 = vxor.u32 %v1461, 2147483648
  %v1478 = vmul.f32 %v1476, 1.442695
  %v1479 = vpow.pop %v1478
  %v1480 = vmul.f32 %v1477, 1.442695
  %v1481 = vpow.pop %v1480
  %v1482 = vadd.f32 %v1479, 1.0
  %v1483 = vadd.f32 %v1481, 1.0
  %v1484 = vrcp.pop %v1482
  %v1485 = vmul.f32 1.0, %v1484
  %v1486 = vrcp.pop %v1483
  %v1487 = vmul.f32 1.0, %v1486
  %v1488 = vtanh.pop %v1458
  %v1489 = vtanh.pop %v1462
  %v1490 = vxor.u32 %v1459, 2147483648
  %v1491 = vxor.u32 %v1463, 2147483648
  %v1492 = vmul.f32 %v1490, 1.442695
  %v1493 = vpow.pop %v1492
  %v1494 = vmul.f32 %v1491, 1.442695
  %v1495 = vpow.pop %v1494
  %v1496 = vadd.f32 %v1493, 1.0
  %v1497 = vadd.f32 %v1495, 1.0
  %v1498 = vrcp.pop %v1496
  %v1499 = vmul.f32 1.0, %v1498
  %v1500 = vrcp.pop %v1497
  %v1501 = vmul.f32 1.0, %v1500
  %v1502 = vmul.f32 %v1485, 0.0
  %v1503 = vmul.f32 %v1487, 0.0
  %v1504 = vmul.f32 %v1473, %v1488
  %v1505 = vmul.f32 %v1475, %v1489
  %v1506 = vadd.f32 %v1502, %v1504
  %v1507 = vadd.f32 %v1503, %v1505
  %v1508 = vtanh.pop %v1506
  %v1509 = vtanh.pop %v1507
  %v1510 = vmul.f32 %v1499, %v1508
  %v1511 = vmul.f32 %v1501, %v1509
  %s1512 = smul.u32 2, 4
  %s1513 = smul.addr %s1512, 8
  %s1514 = scalar_lea.vmem [#allocation2], %s1513
  %v1515 = vld [vmem:[%s1514] sm:$0xff]
  %v1516 = vld [vmem:[%s1514 + $0x8] sm:$0xff]
  %v1517 = vld [vmem:[%s1514 + $0x10] sm:$0xff]
  %v1518 = vld [vmem:[%s1514 + $0x18] sm:$0xff]
  %v1519 = vld [vmem:[%s1514 + $0x20] sm:$0xff]
  %v1520 = vld [vmem:[%s1514 + $0x28] sm:$0xff]
  %v1521 = vld [vmem:[%s1514 + $0x30] sm:$0xff]
  %v1522 = vld [vmem:[%s1514 + $0x38] sm:$0xff]
  %1523 = vmatprep.subr.mxu0 %v943
  %1524 = vmatpush1.msra.mxu0 %v942
  %1525 = vmatprep.subr.mxu0 %v947
  %1526 = vmatpush1.msra.mxu0 %v946
  %1527 = vmatprep.subr.mxu0 %v951
  %1528 = vmatpush1.msra.mxu0 %v950
  %1529 = vmatprep.subr.mxu0 %v955
  %1530 = vmatpush1.msra.mxu0 %v954
  %1531 = vmatprep.subr.mxu0 %v959
  %1532 = vmatpush1.msra.mxu0 %v958
  %1533 = vmatprep.subr.mxu0 %v963
  %1534 = vmatpush1.msra.mxu0 %v962
  %1535 = vmatprep.subr.mxu0 %v967
  %1536 = vmatpush1.msra.mxu0 %v966
  %1537 = vmatprep.subr.mxu0 %v971
  %1538 = vmatpush1.msra.mxu0 %v970
  %1539 = vmatprep.subr.mxu0 %v975
  %1540 = vmatpush1.msra.mxu0 %v974
  %1541 = vmatprep.subr.mxu0 %v979
  %1542 = vmatpush1.msra.mxu0 %v978
  %1543 = vmatprep.subr.mxu0 %v983
  %1544 = vmatpush1.msra.mxu0 %v982
  %1545 = vmatprep.subr.mxu0 %v987
  %1546 = vmatpush1.msra.mxu0 %v986
  %1547 = vmatprep.subr.mxu0 %v991
  %1548 = vmatpush1.msra.mxu0 %v990
  %1549 = vmatprep.subr.mxu0 %v995
  %1550 = vmatpush1.msra.mxu0 %v994
  %1551 = vmatprep.subr.mxu0 %v999
  %1552 = vmatpush1.msra.mxu0 %v998
  %1553 = vmatprep.subr.mxu0 %v1003
  %1554 = vmatpush1.msra.mxu0 %v1002
  %1555 = vmatprep.subr.mxu0 0.0
  %1556 = vmatpush1.msra.mxu0 0.0
  %1557 = vmatprep.subr.mxu0 0.0
  %1558 = vmatpush1.msra.mxu0 0.0
  %1559 = vmatprep.subr.mxu0 0.0
  %1560 = vmatpush1.msra.mxu0 0.0
  %1561 = vmatprep.subr.mxu0 0.0
  %1562 = vmatpush1.msra.mxu0 0.0
  %1563 = vmatprep.subr.mxu0 0.0
  %1564 = vmatpush1.msra.mxu0 0.0
  %1565 = vmatprep.subr.mxu0 0.0
  %1566 = vmatpush1.msra.mxu0 0.0
  %1567 = vmatprep.subr.mxu0 0.0
  %1568 = vmatpush1.msra.mxu0 0.0
  %1569 = vmatprep.subr.mxu0 0.0
  %1570 = vmatpush1.msra.mxu0 0.0
  %1571 = vmatprep.subr.mxu0 0.0
  %1572 = vmatpush1.msra.mxu0 0.0
  %1573 = vmatprep.subr.mxu0 0.0
  %1574 = vmatpush1.msra.mxu0 0.0
  %1575 = vmatprep.subr.mxu0 0.0
  %1576 = vmatpush1.msra.mxu0 0.0
  %1577 = vmatprep.subr.mxu0 0.0
  %1578 = vmatpush1.msra.mxu0 0.0
  %1579 = vmatprep.subr.mxu0 0.0
  %1580 = vmatpush1.msra.mxu0 0.0
  %1581 = vmatprep.subr.mxu0 0.0
  %1582 = vmatpush1.msra.mxu0 0.0
  %1583 = vmatprep.subr.mxu0 0.0
  %1584 = vmatpush1.msra.mxu0 0.0
  %1585 = vmatprep.subr.mxu0 0.0
  %1586 = vmatpush1.msra.mxu0 0.0
  %1587 = vmatprep.mubr.f32.mxu0 0.0
  %1588 = vmatmul.mubr.f32.gmra.mrb[0].mxu0 %v1289
  %v1589 = vpop.f32.mrb[0].mxu0
  %v1590 = vadd.f32 0.0, %v1589
  %v1591 = vpop.f32.mrb[0].mxu0
  %v1592 = vadd.f32 0.0, %v1591
  %1593 = vmatprep.mubr.f32.mxu0 0.0
  %1594 = vmatmul.mubr.f32.gmra.mrb[0].mxu0 %v1290
  %v1595 = vpop.f32.mrb[0].mxu0
  %v1596 = vadd.f32 0.0, %v1595
  %v1597 = vpop.f32.mrb[0].mxu0
  %v1598 = vadd.f32 0.0, %v1597
  %1599 = vdwg.mxu0
  %1600 = vmatprep.subr.mxu0 %v945
  %1601 = vmatpush1.msra.mxu0 %v944
  %1602 = vmatprep.subr.mxu0 %v949
  %1603 = vmatpush1.msra.mxu0 %v948
  %1604 = vmatprep.subr.mxu0 %v953
  %1605 = vmatpush1.msra.mxu0 %v952
  %1606 = vmatprep.subr.mxu0 %v957
  %1607 = vmatpush1.msra.mxu0 %v956
  %1608 = vmatprep.subr.mxu0 %v961
  %1609 = vmatpush1.msra.mxu0 %v960
  %1610 = vmatprep.subr.mxu0 %v965
  %1611 = vmatpush1.msra.mxu0 %v964
  %1612 = vmatprep.subr.mxu0 %v969
  %1613 = vmatpush1.msra.mxu0 %v968
  %1614 = vmatprep.subr.mxu0 %v973
  %1615 = vmatpush1.msra.mxu0 %v972
  %1616 = vmatprep.subr.mxu0 %v977
  %1617 = vmatpush1.msra.mxu0 %v976
  %1618 = vmatprep.subr.mxu0 %v981
  %1619 = vmatpush1.msra.mxu0 %v980
  %1620 = vmatprep.subr.mxu0 %v985
  %1621 = vmatpush1.msra.mxu0 %v984
  %1622 = vmatprep.subr.mxu0 %v989
  %1623 = vmatpush1.msra.mxu0 %v988
  %1624 = vmatprep.subr.mxu0 %v993
  %1625 = vmatpush1.msra.mxu0 %v992
  %1626 = vmatprep.subr.mxu0 %v997
  %1627 = vmatpush1.msra.mxu0 %v996
  %1628 = vmatprep.subr.mxu0 %v1001
  %1629 = vmatpush1.msra.mxu0 %v1000
  %1630 = vmatprep.subr.mxu0 %v1005
  %1631 = vmatpush1.msra.mxu0 %v1004
  %1632 = vmatprep.subr.mxu0 0.0
  %1633 = vmatpush1.msra.mxu0 0.0
  %1634 = vmatprep.subr.mxu0 0.0
  %1635 = vmatpush1.msra.mxu0 0.0
  %1636 = vmatprep.subr.mxu0 0.0
  %1637 = vmatpush1.msra.mxu0 0.0
  %1638 = vmatprep.subr.mxu0 0.0
  %1639 = vmatpush1.msra.mxu0 0.0
  %1640 = vmatprep.subr.mxu0 0.0
  %1641 = vmatpush1.msra.mxu0 0.0
  %1642 = vmatprep.subr.mxu0 0.0
  %1643 = vmatpush1.msra.mxu0 0.0
  %1644 = vmatprep.subr.mxu0 0.0
  %1645 = vmatpush1.msra.mxu0 0.0
  %1646 = vmatprep.subr.mxu0 0.0
  %1647 = vmatpush1.msra.mxu0 0.0
  %1648 = vmatprep.subr.mxu0 0.0
  %1649 = vmatpush1.msra.mxu0 0.0
  %1650 = vmatprep.subr.mxu0 0.0
  %1651 = vmatpush1.msra.mxu0 0.0
  %1652 = vmatprep.subr.mxu0 0.0
  %1653 = vmatpush1.msra.mxu0 0.0
  %1654 = vmatprep.subr.mxu0 0.0
  %1655 = vmatpush1.msra.mxu0 0.0
  %1656 = vmatprep.subr.mxu0 0.0
  %1657 = vmatpush1.msra.mxu0 0.0
  %1658 = vmatprep.subr.mxu0 0.0
  %1659 = vmatpush1.msra.mxu0 0.0
  %1660 = vmatprep.subr.mxu0 0.0
  %1661 = vmatpush1.msra.mxu0 0.0
  %1662 = vmatprep.subr.mxu0 0.0
  %1663 = vmatpush1.msra.mxu0 0.0
  %1664 = vmatprep.mubr.f32.mxu0 0.0
  %1665 = vmatmul.mubr.f32.gmra.mrb[0].mxu0 %v1289
  %v1666 = vpop.f32.mrb[0].mxu0
  %v1667 = vadd.f32 0.0, %v1666
  %v1668 = vpop.f32.mrb[0].mxu0
  %v1669 = vadd.f32 0.0, %v1668
  %1670 = vmatprep.mubr.f32.mxu0 0.0
  %1671 = vmatmul.mubr.f32.gmra.mrb[0].mxu0 %v1290
  %v1672 = vpop.f32.mrb[0].mxu0
  %v1673 = vadd.f32 0.0, %v1672
  %v1674 = vpop.f32.mrb[0].mxu0
  %v1675 = vadd.f32 0.0, %v1674
  %1676 = vdwg.mxu0
  %v1677 = vadd.f32 %v1515, %v1590
  %v1678 = vadd.f32 %v1516, %v1592
  %v1679 = vadd.f32 %v1517, %v1667
  %v1680 = vadd.f32 %v1518, %v1669
  %v1681 = vadd.f32 %v1519, %v1596
  %v1682 = vadd.f32 %v1520, %v1598
  %v1683 = vadd.f32 %v1521, %v1673
  %v1684 = vadd.f32 %v1522, %v1675
  %v1685 = vxor.u32 %v1677, 2147483648
  %v1686 = vxor.u32 %v1681, 2147483648
  %v1687 = vmul.f32 %v1685, 1.442695
  %v1688 = vpow.pop %v1687
  %v1689 = vmul.f32 %v1686, 1.442695
  %v1690 = vpow.pop %v1689
  %v1691 = vadd.f32 %v1688, 1.0
  %v1692 = vadd.f32 %v1690, 1.0
  %v1693 = vrcp.pop %v1691
  %v1694 = vmul.f32 1.0, %v1693
  %v1695 = vrcp.pop %v1692
  %v1696 = vmul.f32 1.0, %v1695
  %v1697 = vxor.u32 %v1678, 2147483648
  %v1698 = vxor.u32 %v1682, 2147483648
  %v1699 = vmul.f32 %v1697, 1.442695
  %v1700 = vpow.pop %v1699
  %v1701 = vmul.f32 %v1698, 1.442695
  %v1702 = vpow.pop %v1701
  %v1703 = vadd.f32 %v1700, 1.0
  %v1704 = vadd.f32 %v1702, 1.0
  %v1705 = vrcp.pop %v1703
  %v1706 = vmul.f32 1.0, %v1705
  %v1707 = vrcp.pop %v1704
  %v1708 = vmul.f32 1.0, %v1707
  %v1709 = vtanh.pop %v1679
  %v1710 = vtanh.pop %v1683
  %v1711 = vxor.u32 %v1680, 2147483648
  %v1712 = vxor.u32 %v1684, 2147483648
  %v1713 = vmul.f32 %v1711, 1.442695
  %v1714 = vpow.pop %v1713
  %v1715 = vmul.f32 %v1712, 1.442695
  %v1716 = vpow.pop %v1715
  %v1717 = vadd.f32 %v1714, 1.0
  %v1718 = vadd.f32 %v1716, 1.0
  %v1719 = vrcp.pop %v1717
  %v1720 = vmul.f32 1.0, %v1719
  %v1721 = vrcp.pop %v1718
  %v1722 = vmul.f32 1.0, %v1721
  %v1723 = vmul.f32 %v1706, %v1285
  %v1724 = vmul.f32 %v1708, %v1286
  %v1725 = vmul.f32 %v1694, %v1709
  %v1726 = vmul.f32 %v1696, %v1710
  %v1727 = vadd.f32 %v1723, %v1725
  %v1728 = vadd.f32 %v1724, %v1726
  %v1729 = vtanh.pop %v1727
  %v1730 = vtanh.pop %v1728
  %v1731 = vmul.f32 %v1720, %v1729
  %v1732 = vmul.f32 %v1722, %v1730
  %s1733 = smul.u32 12, 4
  %s1734 = smul.addr %s1733, 8
  %s1735 = scalar_lea.vmem [#allocation3], %s1734
  %v1736 = vld [vmem:[%s1735] sm:$0xff]
  %v1737 = vld [vmem:[%s1735 + $0x8] sm:$0xff]
  %v1738 = vld [vmem:[%s1735 + $0x10] sm:$0xff]
  %v1739 = vld [vmem:[%s1735 + $0x18] sm:$0xff]
  %v1740 = vld [vmem:[%s1735 + $0x20] sm:$0xff]
  %v1741 = vld [vmem:[%s1735 + $0x28] sm:$0xff]
  %v1742 = vld [vmem:[%s1735 + $0x30] sm:$0xff]
  %v1743 = vld [vmem:[%s1735 + $0x38] sm:$0xff]
  %1744 = vmatprep.subr.mxu0 %v1007
  %1745 = vmatpush1.msra.mxu0 %v1006
  %1746 = vmatprep.subr.mxu0 %v1011
  %1747 = vmatpush1.msra.mxu0 %v1010
  %1748 = vmatprep.subr.mxu0 %v1015
  %1749 = vmatpush1.msra.mxu0 %v1014
  %1750 = vmatprep.subr.mxu0 %v1019
  %1751 = vmatpush1.msra.mxu0 %v1018
  %1752 = vmatprep.subr.mxu0 %v1023
  %1753 = vmatpush1.msra.mxu0 %v1022
  %1754 = vmatprep.subr.mxu0 %v1027
  %1755 = vmatpush1.msra.mxu0 %v1026
  %1756 = vmatprep.subr.mxu0 %v1031
  %1757 = vmatpush1.msra.mxu0 %v1030
  %1758 = vmatprep.subr.mxu0 %v1035
  %1759 = vmatpush1.msra.mxu0 %v1034
  %1760 = vmatprep.subr.mxu0 %v1039
  %1761 = vmatpush1.msra.mxu0 %v1038
  %1762 = vmatprep.subr.mxu0 %v1043
  %1763 = vmatpush1.msra.mxu0 %v1042
  %1764 = vmatprep.subr.mxu0 %v1047
  %1765 = vmatpush1.msra.mxu0 %v1046
  %1766 = vmatprep.subr.mxu0 %v1051
  %1767 = vmatpush1.msra.mxu0 %v1050
  %1768 = vmatprep.subr.mxu0 %v1055
  %1769 = vmatpush1.msra.mxu0 %v1054
  %1770 = vmatprep.subr.mxu0 %v1059
  %1771 = vmatpush1.msra.mxu0 %v1058
  %1772 = vmatprep.subr.mxu0 %v1063
  %1773 = vmatpush1.msra.mxu0 %v1062
  %1774 = vmatprep.subr.mxu0 %v1067
  %1775 = vmatpush1.msra.mxu0 %v1066
  %1776 = vmatprep.subr.mxu0 0.0
  %1777 = vmatpush1.msra.mxu0 0.0
  %1778 = vmatprep.subr.mxu0 0.0
  %1779 = vmatpush1.msra.mxu0 0.0
  %1780 = vmatprep.subr.mxu0 0.0
  %1781 = vmatpush1.msra.mxu0 0.0
  %1782 = vmatprep.subr.mxu0 0.0
  %1783 = vmatpush1.msra.mxu0 0.0
  %1784 = vmatprep.subr.mxu0 0.0
  %1785 = vmatpush1.msra.mxu0 0.0
  %1786 = vmatprep.subr.mxu0 0.0
  %1787 = vmatpush1.msra.mxu0 0.0
  %1788 = vmatprep.subr.mxu0 0.0
  %1789 = vmatpush1.msra.mxu0 0.0
  %1790 = vmatprep.subr.mxu0 0.0
  %1791 = vmatpush1.msra.mxu0 0.0
  %1792 = vmatprep.subr.mxu0 0.0
  %1793 = vmatpush1.msra.mxu0 0.0
  %1794 = vmatprep.subr.mxu0 0.0
  %1795 = vmatpush1.msra.mxu0 0.0
  %1796 = vmatprep.subr.mxu0 0.0
  %1797 = vmatpush1.msra.mxu0 0.0
  %1798 = vmatprep.subr.mxu0 0.0
  %1799 = vmatpush1.msra.mxu0 0.0
  %1800 = vmatprep.subr.mxu0 0.0
  %1801 = vmatpush1.msra.mxu0 0.0
  %1802 = vmatprep.subr.mxu0 0.0
  %1803 = vmatpush1.msra.mxu0 0.0
  %1804 = vmatprep.subr.mxu0 0.0
  %1805 = vmatpush1.msra.mxu0 0.0
  %1806 = vmatprep.subr.mxu0 0.0
  %1807 = vmatpush1.msra.mxu0 0.0
  %1808 = vmatprep.mubr.f32.mxu0 0.0
  %1809 = vmatmul.mubr.f32.gmra.mrb[0].mxu0 %v1510
  %v1810 = vpop.f32.mrb[0].mxu0
  %v1811 = vadd.f32 0.0, %v1810
  %v1812 = vpop.f32.mrb[0].mxu0
  %v1813 = vadd.f32 0.0, %v1812
  %1814 = vmatprep.mubr.f32.mxu0 0.0
  %1815 = vmatmul.mubr.f32.gmra.mrb[0].mxu0 %v1511
  %v1816 = vpop.f32.mrb[0].mxu0
  %v1817 = vadd.f32 0.0, %v1816
  %v1818 = vpop.f32.mrb[0].mxu0
  %v1819 = vadd.f32 0.0, %v1818
  %1820 = vdwg.mxu0
  %1821 = vmatprep.subr.mxu0 %v1009
  %1822 = vmatpush1.msra.mxu0 %v1008
  %1823 = vmatprep.subr.mxu0 %v1013
  %1824 = vmatpush1.msra.mxu0 %v1012
  %1825 = vmatprep.subr.mxu0 %v1017
  %1826 = vmatpush1.msra.mxu0 %v1016
  %1827 = vmatprep.subr.mxu0 %v1021
  %1828 = vmatpush1.msra.mxu0 %v1020
  %1829 = vmatprep.subr.mxu0 %v1025
  %1830 = vmatpush1.msra.mxu0 %v1024
  %1831 = vmatprep.subr.mxu0 %v1029
  %1832 = vmatpush1.msra.mxu0 %v1028
  %1833 = vmatprep.subr.mxu0 %v1033
  %1834 = vmatpush1.msra.mxu0 %v1032
  %1835 = vmatprep.subr.mxu0 %v1037
  %1836 = vmatpush1.msra.mxu0 %v1036
  %1837 = vmatprep.subr.mxu0 %v1041
  %1838 = vmatpush1.msra.mxu0 %v1040
  %1839 = vmatprep.subr.mxu0 %v1045
  %1840 = vmatpush1.msra.mxu0 %v1044
  %1841 = vmatprep.subr.mxu0 %v1049
  %1842 = vmatpush1.msra.mxu0 %v1048
  %1843 = vmatprep.subr.mxu0 %v1053
  %1844 = vmatpush1.msra.mxu0 %v1052
  %1845 = vmatprep.subr.mxu0 %v1057
  %1846 = vmatpush1.msra.mxu0 %v1056
  %1847 = vmatprep.subr.mxu0 %v1061
  %1848 = vmatpush1.msra.mxu0 %v1060
  %1849 = vmatprep.subr.mxu0 %v1065
  %1850 = vmatpush1.msra.mxu0 %v1064
  %1851 = vmatprep.subr.mxu0 %v1069
  %1852 = vmatpush1.msra.mxu0 %v1068
  %1853 = vmatprep.subr.mxu0 0.0
  %1854 = vmatpush1.msra.mxu0 0.0
  %1855 = vmatprep.subr.mxu0 0.0
  %1856 = vmatpush1.msra.mxu0 0.0
  %1857 = vmatprep.subr.mxu0 0.0
  %1858 = vmatpush1.msra.mxu0 0.0
  %1859 = vmatprep.subr.mxu0 0.0
  %1860 = vmatpush1.msra.mxu0 0.0
  %1861 = vmatprep.subr.mxu0 0.0
  %1862 = vmatpush1.msra.mxu0 0.0
  %1863 = vmatprep.subr.mxu0 0.0
  %1864 = vmatpush1.msra.mxu0 0.0
  %1865 = vmatprep.subr.mxu0 0.0
  %1866 = vmatpush1.msra.mxu0 0.0
  %1867 = vmatprep.subr.mxu0 0.0
  %1868 = vmatpush1.msra.mxu0 0.0
  %1869 = vmatprep.subr.mxu0 0.0
  %1870 = vmatpush1.msra.mxu0 0.0
  %1871 = vmatprep.subr.mxu0 0.0
  %1872 = vmatpush1.msra.mxu0 0.0
  %1873 = vmatprep.subr.mxu0 0.0
  %1874 = vmatpush1.msra.mxu0 0.0
  %1875 = vmatprep.subr.mxu0 0.0
  %1876 = vmatpush1.msra.mxu0 0.0
  %1877 = vmatprep.subr.mxu0 0.0
  %1878 = vmatpush1.msra.mxu0 0.0
  %1879 = vmatprep.subr.mxu0 0.0
  %1880 = vmatpush1.msra.mxu0 0.0
  %1881 = vmatprep.subr.mxu0 0.0
  %1882 = vmatpush1.msra.mxu0 0.0
  %1883 = vmatprep.subr.mxu0 0.0
  %1884 = vmatpush1.msra.mxu0 0.0
  %1885 = vmatprep.mubr.f32.mxu0 0.0
  %1886 = vmatmul.mubr.f32.gmra.mrb[0].mxu0 %v1510
  %v1887 = vpop.f32.mrb[0].mxu0
  %v1888 = vadd.f32 0.0, %v1887
  %v1889 = vpop.f32.mrb[0].mxu0
  %v1890 = vadd.f32 0.0, %v1889
  %1891 = vmatprep.mubr.f32.mxu0 0.0
  %1892 = vmatmul.mubr.f32.gmra.mrb[0].mxu0 %v1511
  %v1893 = vpop.f32.mrb[0].mxu0
  %v1894 = vadd.f32 0.0, %v1893
  %v1895 = vpop.f32.mrb[0].mxu0
  %v1896 = vadd.f32 0.0, %v1895
  %1897 = vdwg.mxu0
  %v1898 = vadd.f32 %v1736, %v1811
  %v1899 = vadd.f32 %v1737, %v1813
  %v1900 = vadd.f32 %v1738, %v1888
  %v1901 = vadd.f32 %v1739, %v1890
  %v1902 = vadd.f32 %v1740, %v1817
  %v1903 = vadd.f32 %v1741, %v1819
  %v1904 = vadd.f32 %v1742, %v1894
  %v1905 = vadd.f32 %v1743, %v1896
  %v1906 = vxor.u32 %v1898, 2147483648
  %v1907 = vxor.u32 %v1902, 2147483648
  %v1908 = vmul.f32 %v1906, 1.442695
  %v1909 = vpow.pop %v1908
  %v1910 = vmul.f32 %v1907, 1.442695
  %v1911 = vpow.pop %v1910
  %v1912 = vadd.f32 %v1909, 1.0
  %v1913 = vadd.f32 %v1911, 1.0
  %v1914 = vrcp.pop %v1912
  %v1915 = vmul.f32 1.0, %v1914
  %v1916 = vrcp.pop %v1913
  %v1917 = vmul.f32 1.0, %v1916
  %v1918 = vxor.u32 %v1899, 2147483648
  %v1919 = vxor.u32 %v1903, 2147483648
  %v1920 = vmul.f32 %v1918, 1.442695
  %v1921 = vpow.pop %v1920
  %v1922 = vmul.f32 %v1919, 1.442695
  %v1923 = vpow.pop %v1922
  %v1924 = vadd.f32 %v1921, 1.0
  %v1925 = vadd.f32 %v1923, 1.0
  %v1926 = vrcp.pop %v1924
  %v1927 = vmul.f32 1.0, %v1926
  %v1928 = vrcp.pop %v1925
  %v1929 = vmul.f32 1.0, %v1928
  %v1930 = vtanh.pop %v1900
  %v1931 = vtanh.pop %v1904
  %v1932 = vxor.u32 %v1901, 2147483648
  %v1933 = vxor.u32 %v1905, 2147483648
  %v1934 = vmul.f32 %v1932, 1.442695
  %v1935 = vpow.pop %v1934
  %v1936 = vmul.f32 %v1933, 1.442695
  %v1937 = vpow.pop %v1936
  %v1938 = vadd.f32 %v1935, 1.0
  %v1939 = vadd.f32 %v1937, 1.0
  %v1940 = vrcp.pop %v1938
  %v1941 = vmul.f32 1.0, %v1940
  %v1942 = vrcp.pop %v1939
  %v1943 = vmul.f32 1.0, %v1942
  %v1944 = vmul.f32 %v1927, %v1506
  %v1945 = vmul.f32 %v1929, %v1507
  %v1946 = vmul.f32 %v1915, %v1930
  %v1947 = vmul.f32 %v1917, %v1931
  %v1948 = vadd.f32 %v1944, %v1946
  %v1949 = vadd.f32 %v1945, %v1947
  %v1950 = vtanh.pop %v1948
  %v1951 = vtanh.pop %v1949
  %v1952 = vmul.f32 %v1941, %v1950
  %v1953 = vmul.f32 %v1943, %v1951
  %v1954 = vmax.f32 %v1289, %v1731
  %v1955 = vmax.f32 %v1290, %v1732
  %v1956 = vmax.f32 %v1510, %v1952
  %v1957 = vmax.f32 %v1511, %v1953
  %s1958 = smul.u32 4, 4
  %s1959 = smul.addr %s1958, 8
  %s1960 = scalar_lea.vmem [#allocation2], %s1959
  %v1961 = vld [vmem:[%s1960] sm:$0xff]
  %v1962 = vld [vmem:[%s1960 + $0x8] sm:$0xff]
  %v1963 = vld [vmem:[%s1960 + $0x10] sm:$0xff]
  %v1964 = vld [vmem:[%s1960 + $0x18] sm:$0xff]
  %v1965 = vld [vmem:[%s1960 + $0x20] sm:$0xff]
  %v1966 = vld [vmem:[%s1960 + $0x28] sm:$0xff]
  %v1967 = vld [vmem:[%s1960 + $0x30] sm:$0xff]
  %v1968 = vld [vmem:[%s1960 + $0x38] sm:$0xff]
  %1969 = vmatprep.subr.mxu0 %v943
  %1970 = vmatpush1.msra.mxu0 %v942
  %1971 = vmatprep.subr.mxu0 %v947
  %1972 = vmatpush1.msra.mxu0 %v946
  %1973 = vmatprep.subr.mxu0 %v951
  %1974 = vmatpush1.msra.mxu0 %v950
  %1975 = vmatprep.subr.mxu0 %v955
  %1976 = vmatpush1.msra.mxu0 %v954
  %1977 = vmatprep.subr.mxu0 %v959
  %1978 = vmatpush1.msra.mxu0 %v958
  %1979 = vmatprep.subr.mxu0 %v963
  %1980 = vmatpush1.msra.mxu0 %v962
  %1981 = vmatprep.subr.mxu0 %v967
  %1982 = vmatpush1.msra.mxu0 %v966
  %1983 = vmatprep.subr.mxu0 %v971
  %1984 = vmatpush1.msra.mxu0 %v970
  %1985 = vmatprep.subr.mxu0 %v975
  %1986 = vmatpush1.msra.mxu0 %v974
  %1987 = vmatprep.subr.mxu0 %v979
  %1988 = vmatpush1.msra.mxu0 %v978
  %1989 = vmatprep.subr.mxu0 %v983
  %1990 = vmatpush1.msra.mxu0 %v982
  %1991 = vmatprep.subr.mxu0 %v987
  %1992 = vmatpush1.msra.mxu0 %v986
  %1993 = vmatprep.subr.mxu0 %v991
  %1994 = vmatpush1.msra.mxu0 %v990
  %1995 = vmatprep.subr.mxu0 %v995
  %1996 = vmatpush1.msra.mxu0 %v994
  %1997 = vmatprep.subr.mxu0 %v999
  %1998 = vmatpush1.msra.mxu0 %v998
  %1999 = vmatprep.subr.mxu0 %v1003
  %2000 = vmatpush1.msra.mxu0 %v1002
  %2001 = vmatprep.subr.mxu0 0.0
  %2002 = vmatpush1.msra.mxu0 0.0
  %2003 = vmatprep.subr.mxu0 0.0
  %2004 = vmatpush1.msra.mxu0 0.0
  %2005 = vmatprep.subr.mxu0 0.0
  %2006 = vmatpush1.msra.mxu0 0.0
  %2007 = vmatprep.subr.mxu0 0.0
  %2008 = vmatpush1.msra.mxu0 0.0
  %2009 = vmatprep.subr.mxu0 0.0
  %2010 = vmatpush1.msra.mxu0 0.0
  %2011 = vmatprep.subr.mxu0 0.0
  %2012 = vmatpush1.msra.mxu0 0.0
  %2013 = vmatprep.subr.mxu0 0.0
  %2014 = vmatpush1.msra.mxu0 0.0
  %2015 = vmatprep.subr.mxu0 0.0
  %2016 = vmatpush1.msra.mxu0 0.0
  %2017 = vmatprep.subr.mxu0 0.0
  %2018 = vmatpush1.msra.mxu0 0.0
  %2019 = vmatprep.subr.mxu0 0.0
  %2020 = vmatpush1.msra.mxu0 0.0
  %2021 = vmatprep.subr.mxu0 0.0
  %2022 = vmatpush1.msra.mxu0 0.0
  %2023 = vmatprep.subr.mxu0 0.0
  %2024 = vmatpush1.msra.mxu0 0.0
  %2025 = vmatprep.subr.mxu0 0.0
  %2026 = vmatpush1.msra.mxu0 0.0
  %2027 = vmatprep.subr.mxu0 0.0
  %2028 = vmatpush1.msra.mxu0 0.0
  %2029 = vmatprep.subr.mxu0 0.0
  %2030 = vmatpush1.msra.mxu0 0.0
  %2031 = vmatprep.subr.mxu0 0.0
  %2032 = vmatpush1.msra.mxu0 0.0
  %2033 = vmatprep.mubr.f32.mxu0 0.0
  %2034 = vmatmul.mubr.f32.gmra.mrb[0].mxu0 %v1731
  %v2035 = vpop.f32.mrb[0].mxu0
  %v2036 = vadd.f32 0.0, %v2035
  %v2037 = vpop.f32.mrb[0].mxu0
  %v2038 = vadd.f32 0.0, %v2037
  %2039 = vmatprep.mubr.f32.mxu0 0.0
  %2040 = vmatmul.mubr.f32.gmra.mrb[0].mxu0 %v1732
  %v2041 = vpop.f32.mrb[0].mxu0
  %v2042 = vadd.f32 0.0, %v2041
  %v2043 = vpop.f32.mrb[0].mxu0
  %v2044 = vadd.f32 0.0, %v2043
  %2045 = vdwg.mxu0
  %2046 = vmatprep.subr.mxu0 %v945
  %2047 = vmatpush1.msra.mxu0 %v944
  %2048 = vmatprep.subr.mxu0 %v949
  %2049 = vmatpush1.msra.mxu0 %v948
  %2050 = vmatprep.subr.mxu0 %v953
  %2051 = vmatpush1.msra.mxu0 %v952
  %2052 = vmatprep.subr.mxu0 %v957
  %2053 = vmatpush1.msra.mxu0 %v956
  %2054 = vmatprep.subr.mxu0 %v961
  %2055 = vmatpush1.msra.mxu0 %v960
  %2056 = vmatprep.subr.mxu0 %v965
  %2057 = vmatpush1.msra.mxu0 %v964
  %2058 = vmatprep.subr.mxu0 %v969
  %2059 = vmatpush1.msra.mxu0 %v968
  %2060 = vmatprep.subr.mxu0 %v973
  %2061 = vmatpush1.msra.mxu0 %v972
  %2062 = vmatprep.subr.mxu0 %v977
  %2063 = vmatpush1.msra.mxu0 %v976
  %2064 = vmatprep.subr.mxu0 %v981
  %2065 = vmatpush1.msra.mxu0 %v980
  %2066 = vmatprep.subr.mxu0 %v985
  %2067 = vmatpush1.msra.mxu0 %v984
  %2068 = vmatprep.subr.mxu0 %v989
  %2069 = vmatpush1.msra.mxu0 %v988
  %2070 = vmatprep.subr.mxu0 %v993
  %2071 = vmatpush1.msra.mxu0 %v992
  %2072 = vmatprep.subr.mxu0 %v997
  %2073 = vmatpush1.msra.mxu0 %v996
  %2074 = vmatprep.subr.mxu0 %v1001
  %2075 = vmatpush1.msra.mxu0 %v1000
  %2076 = vmatprep.subr.mxu0 %v1005
  %2077 = vmatpush1.msra.mxu0 %v1004
  %2078 = vmatprep.subr.mxu0 0.0
  %2079 = vmatpush1.msra.mxu0 0.0
  %2080 = vmatprep.subr.mxu0 0.0
  %2081 = vmatpush1.msra.mxu0 0.0
  %2082 = vmatprep.subr.mxu0 0.0
  %2083 = vmatpush1.msra.mxu0 0.0
  %2084 = vmatprep.subr.mxu0 0.0
  %2085 = vmatpush1.msra.mxu0 0.0
  %2086 = vmatprep.subr.mxu0 0.0
  %2087 = vmatpush1.msra.mxu0 0.0
  %2088 = vmatprep.subr.mxu0 0.0
  %2089 = vmatpush1.msra.mxu0 0.0
  %2090 = vmatprep.subr.mxu0 0.0
  %2091 = vmatpush1.msra.mxu0 0.0
  %2092 = vmatprep.subr.mxu0 0.0
  %2093 = vmatpush1.msra.mxu0 0.0
  %2094 = vmatprep.subr.mxu0 0.0
  %2095 = vmatpush1.msra.mxu0 0.0
  %2096 = vmatprep.subr.mxu0 0.0
  %2097 = vmatpush1.msra.mxu0 0.0
  %2098 = vmatprep.subr.mxu0 0.0
  %2099 = vmatpush1.msra.mxu0 0.0
  %2100 = vmatprep.subr.mxu0 0.0
  %2101 = vmatpush1.msra.mxu0 0.0
  %2102 = vmatprep.subr.mxu0 0.0
  %2103 = vmatpush1.msra.mxu0 0.0
  %2104 = vmatprep.subr.mxu0 0.0
  %2105 = vmatpush1.msra.mxu0 0.0
  %2106 = vmatprep.subr.mxu0 0.0
  %2107 = vmatpush1.msra.mxu0 0.0
  %2108 = vmatprep.subr.mxu0 0.0
  %2109 = vmatpush1.msra.mxu0 0.0
  %2110 = vmatprep.mubr.f32.mxu0 0.0
  %2111 = vmatmul.mubr.f32.gmra.mrb[0].mxu0 %v1731
  %v2112 = vpop.f32.mrb[0].mxu0
  %v2113 = vadd.f32 0.0, %v2112
  %v2114 = vpop.f32.mrb[0].mxu0
  %v2115 = vadd.f32 0.0, %v2114
  %2116 = vmatprep.mubr.f32.mxu0 0.0
  %2117 = vmatmul.mubr.f32.gmra.mrb[0].mxu0 %v1732
  %v2118 = vpop.f32.mrb[0].mxu0
  %v2119 = vadd.f32 0.0, %v2118
  %v2120 = vpop.f32.mrb[0].mxu0
  %v2121 = vadd.f32 0.0, %v2120
  %2122 = vdwg.mxu0
  %v2123 = vadd.f32 %v1961, %v2036
  %v2124 = vadd.f32 %v1962, %v2038
  %v2125 = vadd.f32 %v1963, %v2113
  %v2126 = vadd.f32 %v1964, %v2115
  %v2127 = vadd.f32 %v1965, %v2042
  %v2128 = vadd.f32 %v1966, %v2044
  %v2129 = vadd.f32 %v1967, %v2119
  %v2130 = vadd.f32 %v1968, %v2121
  %v2131 = vxor.u32 %v2123, 2147483648
  %v2132 = vxor.u32 %v2127, 2147483648
  %v2133 = vmul.f32 %v2131, 1.442695
  %v2134 = vpow.pop %v2133
  %v2135 = vmul.f32 %v2132, 1.442695
  %v2136 = vpow.pop %v2135
  %v2137 = vadd.f32 %v2134, 1.0
  %v2138 = vadd.f32 %v2136, 1.0
  %v2139 = vrcp.pop %v2137
  %v2140 = vmul.f32 1.0, %v2139
  %v2141 = vrcp.pop %v2138
  %v2142 = vmul.f32 1.0, %v2141
  %v2143 = vxor.u32 %v2124, 2147483648
  %v2144 = vxor.u32 %v2128, 2147483648
  %v2145 = vmul.f32 %v2143, 1.442695
  %v2146 = vpow.pop %v2145
  %v2147 = vmul.f32 %v2144, 1.442695
  %v2148 = vpow.pop %v2147
  %v2149 = vadd.f32 %v2146, 1.0
  %v2150 = vadd.f32 %v2148, 1.0
  %v2151 = vrcp.pop %v2149
  %v2152 = vmul.f32 1.0, %v2151
  %v2153 = vrcp.pop %v2150
  %v2154 = vmul.f32 1.0, %v2153
  %v2155 = vtanh.pop %v2125
  %v2156 = vtanh.pop %v2129
  %v2157 = vxor.u32 %v2126, 2147483648
  %v2158 = vxor.u32 %v2130, 2147483648
  %v2159 = vmul.f32 %v2157, 1.442695
  %v2160 = vpow.pop %v2159
  %v2161 = vmul.f32 %v2158, 1.442695
  %v2162 = vpow.pop %v2161
  %v2163 = vadd.f32 %v2160, 1.0
  %v2164 = vadd.f32 %v2162, 1.0
  %v2165 = vrcp.pop %v2163
  %v2166 = vmul.f32 1.0, %v2165
  %v2167 = vrcp.pop %v2164
  %v2168 = vmul.f32 1.0, %v2167
  %v2169 = vmul.f32 %v2152, %v1727
  %v2170 = vmul.f32 %v2154, %v1728
  %v2171 = vmul.f32 %v2140, %v2155
  %v2172 = vmul.f32 %v2142, %v2156
  %v2173 = vadd.f32 %v2169, %v2171
  %v2174 = vadd.f32 %v2170, %v2172
  %v2175 = vtanh.pop %v2173
  %v2176 = vtanh.pop %v2174
  %v2177 = vmul.f32 %v2166, %v2175
  %v2178 = vmul.f32 %v2168, %v2176
  %s2179 = smul.u32 10, 4
  %s2180 = smul.addr %s2179, 8
  %s2181 = scalar_lea.vmem [#allocation3], %s2180
  %v2182 = vld [vmem:[%s2181] sm:$0xff]
  %v2183 = vld [vmem:[%s2181 + $0x8] sm:$0xff]
  %v2184 = vld [vmem:[%s2181 + $0x10] sm:$0xff]
  %v2185 = vld [vmem:[%s2181 + $0x18] sm:$0xff]
  %v2186 = vld [vmem:[%s2181 + $0x20] sm:$0xff]
  %v2187 = vld [vmem:[%s2181 + $0x28] sm:$0xff]
  %v2188 = vld [vmem:[%s2181 + $0x30] sm:$0xff]
  %v2189 = vld [vmem:[%s2181 + $0x38] sm:$0xff]
  %2190 = vmatprep.subr.mxu0 %v1007
  %2191 = vmatpush1.msra.mxu0 %v1006
  %2192 = vmatprep.subr.mxu0 %v1011
  %2193 = vmatpush1.msra.mxu0 %v1010
  %2194 = vmatprep.subr.mxu0 %v1015
  %2195 = vmatpush1.msra.mxu0 %v1014
  %2196 = vmatprep.subr.mxu0 %v1019
  %2197 = vmatpush1.msra.mxu0 %v1018
  %2198 = vmatprep.subr.mxu0 %v1023
  %2199 = vmatpush1.msra.mxu0 %v1022
  %2200 = vmatprep.subr.mxu0 %v1027
  %2201 = vmatpush1.msra.mxu0 %v1026
  %2202 = vmatprep.subr.mxu0 %v1031
  %2203 = vmatpush1.msra.mxu0 %v1030
  %2204 = vmatprep.subr.mxu0 %v1035
  %2205 = vmatpush1.msra.mxu0 %v1034
  %2206 = vmatprep.subr.mxu0 %v1039
  %2207 = vmatpush1.msra.mxu0 %v1038
  %2208 = vmatprep.subr.mxu0 %v1043
  %2209 = vmatpush1.msra.mxu0 %v1042
  %2210 = vmatprep.subr.mxu0 %v1047
  %2211 = vmatpush1.msra.mxu0 %v1046
  %2212 = vmatprep.subr.mxu0 %v1051
  %2213 = vmatpush1.msra.mxu0 %v1050
  %2214 = vmatprep.subr.mxu0 %v1055
  %2215 = vmatpush1.msra.mxu0 %v1054
  %2216 = vmatprep.subr.mxu0 %v1059
  %2217 = vmatpush1.msra.mxu0 %v1058
  %2218 = vmatprep.subr.mxu0 %v1063
  %2219 = vmatpush1.msra.mxu0 %v1062
  %2220 = vmatprep.subr.mxu0 %v1067
  %2221 = vmatpush1.msra.mxu0 %v1066
  %2222 = vmatprep.subr.mxu0 0.0
  %2223 = vmatpush1.msra.mxu0 0.0
  %2224 = vmatprep.subr.mxu0 0.0
  %2225 = vmatpush1.msra.mxu0 0.0
  %2226 = vmatprep.subr.mxu0 0.0
  %2227 = vmatpush1.msra.mxu0 0.0
  %2228 = vmatprep.subr.mxu0 0.0
  %2229 = vmatpush1.msra.mxu0 0.0
  %2230 = vmatprep.subr.mxu0 0.0
  %2231 = vmatpush1.msra.mxu0 0.0
  %2232 = vmatprep.subr.mxu0 0.0
  %2233 = vmatpush1.msra.mxu0 0.0
  %2234 = vmatprep.subr.mxu0 0.0
  %2235 = vmatpush1.msra.mxu0 0.0
  %2236 = vmatprep.subr.mxu0 0.0
  %2237 = vmatpush1.msra.mxu0 0.0
  %2238 = vmatprep.subr.mxu0 0.0
  %2239 = vmatpush1.msra.mxu0 0.0
  %2240 = vmatprep.subr.mxu0 0.0
  %2241 = vmatpush1.msra.mxu0 0.0
  %2242 = vmatprep.subr.mxu0 0.0
  %2243 = vmatpush1.msra.mxu0 0.0
  %2244 = vmatprep.subr.mxu0 0.0
  %2245 = vmatpush1.msra.mxu0 0.0
  %2246 = vmatprep.subr.mxu0 0.0
  %2247 = vmatpush1.msra.mxu0 0.0
  %2248 = vmatprep.subr.mxu0 0.0
  %2249 = vmatpush1.msra.mxu0 0.0
  %2250 = vmatprep.subr.mxu0 0.0
  %2251 = vmatpush1.msra.mxu0 0.0
  %2252 = vmatprep.subr.mxu0 0.0
  %2253 = vmatpush1.msra.mxu0 0.0
  %2254 = vmatprep.mubr.f32.mxu0 0.0
  %2255 = vmatmul.mubr.f32.gmra.mrb[0].mxu0 %v1952
  %v2256 = vpop.f32.mrb[0].mxu0
  %v2257 = vadd.f32 0.0, %v2256
  %v2258 = vpop.f32.mrb[0].mxu0
  %v2259 = vadd.f32 0.0, %v2258
  %2260 = vmatprep.mubr.f32.mxu0 0.0
  %2261 = vmatmul.mubr.f32.gmra.mrb[0].mxu0 %v1953
  %v2262 = vpop.f32.mrb[0].mxu0
  %v2263 = vadd.f32 0.0, %v2262
  %v2264 = vpop.f32.mrb[0].mxu0
  %v2265 = vadd.f32 0.0, %v2264
  %2266 = vdwg.mxu0
  %2267 = vmatprep.subr.mxu0 %v1009
  %2268 = vmatpush1.msra.mxu0 %v1008
  %2269 = vmatprep.subr.mxu0 %v1013
  %2270 = vmatpush1.msra.mxu0 %v1012
  %2271 = vmatprep.subr.mxu0 %v1017
  %2272 = vmatpush1.msra.mxu0 %v1016
  %2273 = vmatprep.subr.mxu0 %v1021
  %2274 = vmatpush1.msra.mxu0 %v1020
  %2275 = vmatprep.subr.mxu0 %v1025
  %2276 = vmatpush1.msra.mxu0 %v1024
  %2277 = vmatprep.subr.mxu0 %v1029
  %2278 = vmatpush1.msra.mxu0 %v1028
  %2279 = vmatprep.subr.mxu0 %v1033
  %2280 = vmatpush1.msra.mxu0 %v1032
  %2281 = vmatprep.subr.mxu0 %v1037
  %2282 = vmatpush1.msra.mxu0 %v1036
  %2283 = vmatprep.subr.mxu0 %v1041
  %2284 = vmatpush1.msra.mxu0 %v1040
  %2285 = vmatprep.subr.mxu0 %v1045
  %2286 = vmatpush1.msra.mxu0 %v1044
  %2287 = vmatprep.subr.mxu0 %v1049
  %2288 = vmatpush1.msra.mxu0 %v1048
  %2289 = vmatprep.subr.mxu0 %v1053
  %2290 = vmatpush1.msra.mxu0 %v1052
  %2291 = vmatprep.subr.mxu0 %v1057
  %2292 = vmatpush1.msra.mxu0 %v1056
  %2293 = vmatprep.subr.mxu0 %v1061
  %2294 = vmatpush1.msra.mxu0 %v1060
  %2295 = vmatprep.subr.mxu0 %v1065
  %2296 = vmatpush1.msra.mxu0 %v1064
  %2297 = vmatprep.subr.mxu0 %v1069
  %2298 = vmatpush1.msra.mxu0 %v1068
  %2299 = vmatprep.subr.mxu0 0.0
  %2300 = vmatpush1.msra.mxu0 0.0
  %2301 = vmatprep.subr.mxu0 0.0
  %2302 = vmatpush1.msra.mxu0 0.0
  %2303 = vmatprep.subr.mxu0 0.0
  %2304 = vmatpush1.msra.mxu0 0.0
  %2305 = vmatprep.subr.mxu0 0.0
  %2306 = vmatpush1.msra.mxu0 0.0
  %2307 = vmatprep.subr.mxu0 0.0
  %2308 = vmatpush1.msra.mxu0 0.0
  %2309 = vmatprep.subr.mxu0 0.0
  %2310 = vmatpush1.msra.mxu0 0.0
  %2311 = vmatprep.subr.mxu0 0.0
  %2312 = vmatpush1.msra.mxu0 0.0
  %2313 = vmatprep.subr.mxu0 0.0
  %2314 = vmatpush1.msra.mxu0 0.0
  %2315 = vmatprep.subr.mxu0 0.0
  %2316 = vmatpush1.msra.mxu0 0.0
  %2317 = vmatprep.subr.mxu0 0.0
  %2318 = vmatpush1.msra.mxu0 0.0
  %2319 = vmatprep.subr.mxu0 0.0
  %2320 = vmatpush1.msra.mxu0 0.0
  %2321 = vmatprep.subr.mxu0 0.0
  %2322 = vmatpush1.msra.mxu0 0.0
  %2323 = vmatprep.subr.mxu0 0.0
  %2324 = vmatpush1.msra.mxu0 0.0
  %2325 = vmatprep.subr.mxu0 0.0
  %2326 = vmatpush1.msra.mxu0 0.0
  %2327 = vmatprep.subr.mxu0 0.0
  %2328 = vmatpush1.msra.mxu0 0.0
  %2329 = vmatprep.subr.mxu0 0.0
  %2330 = vmatpush1.msra.mxu0 0.0
  %2331 = vmatprep.mubr.f32.mxu0 0.0
  %2332 = vmatmul.mubr.f32.gmra.mrb[0].mxu0 %v1952
  %v2333 = vpop.f32.mrb[0].mxu0
  %v2334 = vadd.f32 0.0, %v2333
  %v2335 = vpop.f32.mrb[0].mxu0
  %v2336 = vadd.f32 0.0, %v2335
  %2337 = vmatprep.mubr.f32.mxu0 0.0
  %2338 = vmatmul.mubr.f32.gmra.mrb[0].mxu0 %v1953
  %v2339 = vpop.f32.mrb[0].mxu0
  %v2340 = vadd.f32 0.0, %v2339
  %v2341 = vpop.f32.mrb[0].mxu0
  %v2342 = vadd.f32 0.0, %v2341
  %2343 = vdwg.mxu0
  %v2344 = vadd.f32 %v2182, %v2257
  %v2345 = vadd.f32 %v2183, %v2259
  %v2346 = vadd.f32 %v2184, %v2334
  %v2347 = vadd.f32 %v2185, %v2336
  %v2348 = vadd.f32 %v2186, %v2263
  %v2349 = vadd.f32 %v2187, %v2265
  %v2350 = vadd.f32 %v2188, %v2340
  %v2351 = vadd.f32 %v2189, %v2342
  %v2352 = vxor.u32 %v2344, 2147483648
  %v2353 = vxor.u32 %v2348, 2147483648
  %v2354 = vmul.f32 %v2352, 1.442695
  %v2355 = vpow.pop %v2354
  %v2356 = vmul.f32 %v2353, 1.442695
  %v2357 = vpow.pop %v2356
  %v2358 = vadd.f32 %v2355, 1.0
  %v2359 = vadd.f32 %v2357, 1.0
  %v2360 = vrcp.pop %v2358
  %v2361 = vmul.f32 1.0, %v2360
  %v2362 = vrcp.pop %v2359
  %v2363 = vmul.f32 1.0, %v2362
  %v2364 = vxor.u32 %v2345, 2147483648
  %v2365 = vxor.u32 %v2349, 2147483648
  %v2366 = vmul.f32 %v2364, 1.442695
  %v2367 = vpow.pop %v2366
  %v2368 = vmul.f32 %v2365, 1.442695
  %v2369 = vpow.pop %v2368
  %v2370 = vadd.f32 %v2367, 1.0
  %v2371 = vadd.f32 %v2369, 1.0
  %v2372 = vrcp.pop %v2370
  %v2373 = vmul.f32 1.0, %v2372
  %v2374 = vrcp.pop %v2371
  %v2375 = vmul.f32 1.0, %v2374
  %v2376 = vtanh.pop %v2346
  %v2377 = vtanh.pop %v2350
  %v2378 = vxor.u32 %v2347, 2147483648
  %v2379 = vxor.u32 %v2351, 2147483648
  %v2380 = vmul.f32 %v2378, 1.442695
  %v2381 = vpow.pop %v2380
  %v2382 = vmul.f32 %v2379, 1.442695
  %v2383 = vpow.pop %v2382
  %v2384 = vadd.f32 %v2381, 1.0
  %v2385 = vadd.f32 %v2383, 1.0
  %v2386 = vrcp.pop %v2384
  %v2387 = vmul.f32 1.0, %v2386
  %v2388 = vrcp.pop %v2385
  %v2389 = vmul.f32 1.0, %v2388
  %v2390 = vmul.f32 %v2373, %v1948
  %v2391 = vmul.f32 %v2375, %v1949
  %v2392 = vmul.f32 %v2361, %v2376
  %v2393 = vmul.f32 %v2363, %v2377
  %v2394 = vadd.f32 %v2390, %v2392
  %v2395 = vadd.f32 %v2391, %v2393
  %v2396 = vtanh.pop %v2394
  %v2397 = vtanh.pop %v2395
  %v2398 = vmul.f32 %v2387, %v2396
  %v2399 = vmul.f32 %v2389, %v2397
  %v2400 = vmax.f32 %v1954, %v2177
  %v2401 = vmax.f32 %v1955, %v2178
  %v2402 = vmax.f32 %v1956, %v2398
  %v2403 = vmax.f32 %v1957, %v2399
  %s2404 = smul.u32 6, 4
  %s2405 = smul.addr %s2404, 8
  %s2406 = scalar_lea.vmem [#allocation2], %s2405
  %v2407 = vld [vmem:[%s2406] sm:$0xff]
  %v2408 = vld [vmem:[%s2406 + $0x8] sm:$0xff]
  %v2409 = vld [vmem:[%s2406 + $0x10] sm:$0xff]
  %v2410 = vld [vmem:[%s2406 + $0x18] sm:$0xff]
  %v2411 = vld [vmem:[%s2406 + $0x20] sm:$0xff]
  %v2412 = vld [vmem:[%s2406 + $0x28] sm:$0xff]
  %v2413 = vld [vmem:[%s2406 + $0x30] sm:$0xff]
  %v2414 = vld [vmem:[%s2406 + $0x38] sm:$0xff]
  %2415 = vmatprep.subr.mxu0 %v943
  %2416 = vmatpush1.msra.mxu0 %v942
  %2417 = vmatprep.subr.mxu0 %v947
  %2418 = vmatpush1.msra.mxu0 %v946
  %2419 = vmatprep.subr.mxu0 %v951
  %2420 = vmatpush1.msra.mxu0 %v950
  %2421 = vmatprep.subr.mxu0 %v955
  %2422 = vmatpush1.msra.mxu0 %v954
  %2423 = vmatprep.subr.mxu0 %v959
  %2424 = vmatpush1.msra.mxu0 %v958
  %2425 = vmatprep.subr.mxu0 %v963
  %2426 = vmatpush1.msra.mxu0 %v962
  %2427 = vmatprep.subr.mxu0 %v967
  %2428 = vmatpush1.msra.mxu0 %v966
  %2429 = vmatprep.subr.mxu0 %v971
  %2430 = vmatpush1.msra.mxu0 %v970
  %2431 = vmatprep.subr.mxu0 %v975
  %2432 = vmatpush1.msra.mxu0 %v974
  %2433 = vmatprep.subr.mxu0 %v979
  %2434 = vmatpush1.msra.mxu0 %v978
  %2435 = vmatprep.subr.mxu0 %v983
  %2436 = vmatpush1.msra.mxu0 %v982
  %2437 = vmatprep.subr.mxu0 %v987
  %2438 = vmatpush1.msra.mxu0 %v986
  %2439 = vmatprep.subr.mxu0 %v991
  %2440 = vmatpush1.msra.mxu0 %v990
  %2441 = vmatprep.subr.mxu0 %v995
  %2442 = vmatpush1.msra.mxu0 %v994
  %2443 = vmatprep.subr.mxu0 %v999
  %2444 = vmatpush1.msra.mxu0 %v998
  %2445 = vmatprep.subr.mxu0 %v1003
  %2446 = vmatpush1.msra.mxu0 %v1002
  %2447 = vmatprep.subr.mxu0 0.0
  %2448 = vmatpush1.msra.mxu0 0.0
  %2449 = vmatprep.subr.mxu0 0.0
  %2450 = vmatpush1.msra.mxu0 0.0
  %2451 = vmatprep.subr.mxu0 0.0
  %2452 = vmatpush1.msra.mxu0 0.0
  %2453 = vmatprep.subr.mxu0 0.0
  %2454 = vmatpush1.msra.mxu0 0.0
  %2455 = vmatprep.subr.mxu0 0.0
  %2456 = vmatpush1.msra.mxu0 0.0
  %2457 = vmatprep.subr.mxu0 0.0
  %2458 = vmatpush1.msra.mxu0 0.0
  %2459 = vmatprep.subr.mxu0 0.0
  %2460 = vmatpush1.msra.mxu0 0.0
  %2461 = vmatprep.subr.mxu0 0.0
  %2462 = vmatpush1.msra.mxu0 0.0
  %2463 = vmatprep.subr.mxu0 0.0
  %2464 = vmatpush1.msra.mxu0 0.0
  %2465 = vmatprep.subr.mxu0 0.0
  %2466 = vmatpush1.msra.mxu0 0.0
  %2467 = vmatprep.subr.mxu0 0.0
  %2468 = vmatpush1.msra.mxu0 0.0
  %2469 = vmatprep.subr.mxu0 0.0
  %2470 = vmatpush1.msra.mxu0 0.0
  %2471 = vmatprep.subr.mxu0 0.0
  %2472 = vmatpush1.msra.mxu0 0.0
  %2473 = vmatprep.subr.mxu0 0.0
  %2474 = vmatpush1.msra.mxu0 0.0
  %2475 = vmatprep.subr.mxu0 0.0
  %2476 = vmatpush1.msra.mxu0 0.0
  %2477 = vmatprep.subr.mxu0 0.0
  %2478 = vmatpush1.msra.mxu0 0.0
  %2479 = vmatprep.mubr.f32.mxu0 0.0
  %2480 = vmatmul.mubr.f32.gmra.mrb[0].mxu0 %v2177
  %v2481 = vpop.f32.mrb[0].mxu0
  %v2482 = vadd.f32 0.0, %v2481
  %v2483 = vpop.f32.mrb[0].mxu0
  %v2484 = vadd.f32 0.0, %v2483
  %2485 = vmatprep.mubr.f32.mxu0 0.0
  %2486 = vmatmul.mubr.f32.gmra.mrb[0].mxu0 %v2178
  %v2487 = vpop.f32.mrb[0].mxu0
  %v2488 = vadd.f32 0.0, %v2487
  %v2489 = vpop.f32.mrb[0].mxu0
  %v2490 = vadd.f32 0.0, %v2489
  %2491 = vdwg.mxu0
  %2492 = vmatprep.subr.mxu0 %v945
  %2493 = vmatpush1.msra.mxu0 %v944
  %2494 = vmatprep.subr.mxu0 %v949
  %2495 = vmatpush1.msra.mxu0 %v948
  %2496 = vmatprep.subr.mxu0 %v953
  %2497 = vmatpush1.msra.mxu0 %v952
  %2498 = vmatprep.subr.mxu0 %v957
  %2499 = vmatpush1.msra.mxu0 %v956
  %2500 = vmatprep.subr.mxu0 %v961
  %2501 = vmatpush1.msra.mxu0 %v960
  %2502 = vmatprep.subr.mxu0 %v965
  %2503 = vmatpush1.msra.mxu0 %v964
  %2504 = vmatprep.subr.mxu0 %v969
  %2505 = vmatpush1.msra.mxu0 %v968
  %2506 = vmatprep.subr.mxu0 %v973
  %2507 = vmatpush1.msra.mxu0 %v972
  %2508 = vmatprep.subr.mxu0 %v977
  %2509 = vmatpush1.msra.mxu0 %v976
  %2510 = vmatprep.subr.mxu0 %v981
  %2511 = vmatpush1.msra.mxu0 %v980
  %2512 = vmatprep.subr.mxu0 %v985
  %2513 = vmatpush1.msra.mxu0 %v984
  %2514 = vmatprep.subr.mxu0 %v989
  %2515 = vmatpush1.msra.mxu0 %v988
  %2516 = vmatprep.subr.mxu0 %v993
  %2517 = vmatpush1.msra.mxu0 %v992
  %2518 = vmatprep.subr.mxu0 %v997
  %2519 = vmatpush1.msra.mxu0 %v996
  %2520 = vmatprep.subr.mxu0 %v1001
  %2521 = vmatpush1.msra.mxu0 %v1000
  %2522 = vmatprep.subr.mxu0 %v1005
  %2523 = vmatpush1.msra.mxu0 %v1004
  %2524 = vmatprep.subr.mxu0 0.0
  %2525 = vmatpush1.msra.mxu0 0.0
  %2526 = vmatprep.subr.mxu0 0.0
  %2527 = vmatpush1.msra.mxu0 0.0
  %2528 = vmatprep.subr.mxu0 0.0
  %2529 = vmatpush1.msra.mxu0 0.0
  %2530 = vmatprep.subr.mxu0 0.0
  %2531 = vmatpush1.msra.mxu0 0.0
  %2532 = vmatprep.subr.mxu0 0.0
  %2533 = vmatpush1.msra.mxu0 0.0
  %2534 = vmatprep.subr.mxu0 0.0
  %2535 = vmatpush1.msra.mxu0 0.0
  %2536 = vmatprep.subr.mxu0 0.0
  %2537 = vmatpush1.msra.mxu0 0.0
  %2538 = vmatprep.subr.mxu0 0.0
  %2539 = vmatpush1.msra.mxu0 0.0
  %2540 = vmatprep.subr.mxu0 0.0
  %2541 = vmatpush1.msra.mxu0 0.0
  %2542 = vmatprep.subr.mxu0 0.0
  %2543 = vmatpush1.msra.mxu0 0.0
  %2544 = vmatprep.subr.mxu0 0.0
  %2545 = vmatpush1.msra.mxu0 0.0
  %2546 = vmatprep.subr.mxu0 0.0
  %2547 = vmatpush1.msra.mxu0 0.0
  %2548 = vmatprep.subr.mxu0 0.0
  %2549 = vmatpush1.msra.mxu0 0.0
  %2550 = vmatprep.subr.mxu0 0.0
  %2551 = vmatpush1.msra.mxu0 0.0
  %2552 = vmatprep.subr.mxu0 0.0
  %2553 = vmatpush1.msra.mxu0 0.0
  %2554 = vmatprep.subr.mxu0 0.0
  %2555 = vmatpush1.msra.mxu0 0.0
  %2556 = vmatprep.mubr.f32.mxu0 0.0
  %2557 = vmatmul.mubr.f32.gmra.mrb[0].mxu0 %v2177
  %v2558 = vpop.f32.mrb[0].mxu0
  %v2559 = vadd.f32 0.0, %v2558
  %v2560 = vpop.f32.mrb[0].mxu0
  %v2561 = vadd.f32 0.0, %v2560
  %2562 = vmatprep.mubr.f32.mxu0 0.0
  %2563 = vmatmul.mubr.f32.gmra.mrb[0].mxu0 %v2178
  %v2564 = vpop.f32.mrb[0].mxu0
  %v2565 = vadd.f32 0.0, %v2564
  %v2566 = vpop.f32.mrb[0].mxu0
  %v2567 = vadd.f32 0.0, %v2566
  %2568 = vdwg.mxu0
  %v2569 = vadd.f32 %v2407, %v2482
  %v2570 = vadd.f32 %v2408, %v2484
  %v2571 = vadd.f32 %v2409, %v2559
  %v2572 = vadd.f32 %v2410, %v2561
  %v2573 = vadd.f32 %v2411, %v2488
  %v2574 = vadd.f32 %v2412, %v2490
  %v2575 = vadd.f32 %v2413, %v2565
  %v2576 = vadd.f32 %v2414, %v2567
  %v2577 = vxor.u32 %v2569, 2147483648
  %v2578 = vxor.u32 %v2573, 2147483648
  %v2579 = vmul.f32 %v2577, 1.442695
  %v2580 = vpow.pop %v2579
  %v2581 = vmul.f32 %v2578, 1.442695
  %v2582 = vpow.pop %v2581
  %v2583 = vadd.f32 %v2580, 1.0
  %v2584 = vadd.f32 %v2582, 1.0
  %v2585 = vrcp.pop %v2583
  %v2586 = vmul.f32 1.0, %v2585
  %v2587 = vrcp.pop %v2584
  %v2588 = vmul.f32 1.0, %v2587
  %v2589 = vxor.u32 %v2570, 2147483648
  %v2590 = vxor.u32 %v2574, 2147483648
  %v2591 = vmul.f32 %v2589, 1.442695
  %v2592 = vpow.pop %v2591
  %v2593 = vmul.f32 %v2590, 1.442695
  %v2594 = vpow.pop %v2593
  %v2595 = vadd.f32 %v2592, 1.0
  %v2596 = vadd.f32 %v2594, 1.0
  %v2597 = vrcp.pop %v2595
  %v2598 = vmul.f32 1.0, %v2597
  %v2599 = vrcp.pop %v2596
  %v2600 = vmul.f32 1.0, %v2599
  %v2601 = vtanh.pop %v2571
  %v2602 = vtanh.pop %v2575
  %v2603 = vxor.u32 %v2572, 2147483648
  %v2604 = vxor.u32 %v2576, 2147483648
  %v2605 = vmul.f32 %v2603, 1.442695
  %v2606 = vpow.pop %v2605
  %v2607 = vmul.f32 %v2604, 1.442695
  %v2608 = vpow.pop %v2607
  %v2609 = vadd.f32 %v2606, 1.0
  %v2610 = vadd.f32 %v2608, 1.0
  %v2611 = vrcp.pop %v2609
  %v2612 = vmul.f32 1.0, %v2611
  %v2613 = vrcp.pop %v2610
  %v2614 = vmul.f32 1.0, %v2613
  %v2615 = vmul.f32 %v2598, %v2173
  %v2616 = vmul.f32 %v2600, %v2174
  %v2617 = vmul.f32 %v2586, %v2601
  %v2618 = vmul.f32 %v2588, %v2602
  %v2619 = vadd.f32 %v2615, %v2617
  %v2620 = vadd.f32 %v2616, %v2618
  %v2621 = vtanh.pop %v2619
  %v2622 = vtanh.pop %v2620
  %v2623 = vmul.f32 %v2612, %v2621
  %v2624 = vmul.f32 %v2614, %v2622
  %s2625 = smul.u32 8, 4
  %s2626 = smul.addr %s2625, 8
  %s2627 = scalar_lea.vmem [#allocation3], %s2626
  %v2628 = vld [vmem:[%s2627] sm:$0xff]
  %v2629 = vld [vmem:[%s2627 + $0x8] sm:$0xff]
  %v2630 = vld [vmem:[%s2627 + $0x10] sm:$0xff]
  %v2631 = vld [vmem:[%s2627 + $0x18] sm:$0xff]
  %v2632 = vld [vmem:[%s2627 + $0x20] sm:$0xff]
  %v2633 = vld [vmem:[%s2627 + $0x28] sm:$0xff]
  %v2634 = vld [vmem:[%s2627 + $0x30] sm:$0xff]
  %v2635 = vld [vmem:[%s2627 + $0x38] sm:$0xff]
  %2636 = vmatprep.subr.mxu0 %v1007
  %2637 = vmatpush1.msra.mxu0 %v1006
  %2638 = vmatprep.subr.mxu0 %v1011
  %2639 = vmatpush1.msra.mxu0 %v1010
  %2640 = vmatprep.subr.mxu0 %v1015
  %2641 = vmatpush1.msra.mxu0 %v1014
  %2642 = vmatprep.subr.mxu0 %v1019
  %2643 = vmatpush1.msra.mxu0 %v1018
  %2644 = vmatprep.subr.mxu0 %v1023
  %2645 = vmatpush1.msra.mxu0 %v1022
  %2646 = vmatprep.subr.mxu0 %v1027
  %2647 = vmatpush1.msra.mxu0 %v1026
  %2648 = vmatprep.subr.mxu0 %v1031
  %2649 = vmatpush1.msra.mxu0 %v1030
  %2650 = vmatprep.subr.mxu0 %v1035
  %2651 = vmatpush1.msra.mxu0 %v1034
  %2652 = vmatprep.subr.mxu0 %v1039
  %2653 = vmatpush1.msra.mxu0 %v1038
  %2654 = vmatprep.subr.mxu0 %v1043
  %2655 = vmatpush1.msra.mxu0 %v1042
  %2656 = vmatprep.subr.mxu0 %v1047
  %2657 = vmatpush1.msra.mxu0 %v1046
  %2658 = vmatprep.subr.mxu0 %v1051
  %2659 = vmatpush1.msra.mxu0 %v1050
  %2660 = vmatprep.subr.mxu0 %v1055
  %2661 = vmatpush1.msra.mxu0 %v1054
  %2662 = vmatprep.subr.mxu0 %v1059
  %2663 = vmatpush1.msra.mxu0 %v1058
  %2664 = vmatprep.subr.mxu0 %v1063
  %2665 = vmatpush1.msra.mxu0 %v1062
  %2666 = vmatprep.subr.mxu0 %v1067
  %2667 = vmatpush1.msra.mxu0 %v1066
  %2668 = vmatprep.subr.mxu0 0.0
  %2669 = vmatpush1.msra.mxu0 0.0
  %2670 = vmatprep.subr.mxu0 0.0
  %2671 = vmatpush1.msra.mxu0 0.0
  %2672 = vmatprep.subr.mxu0 0.0
  %2673 = vmatpush1.msra.mxu0 0.0
  %2674 = vmatprep.subr.mxu0 0.0
  %2675 = vmatpush1.msra.mxu0 0.0
  %2676 = vmatprep.subr.mxu0 0.0
  %2677 = vmatpush1.msra.mxu0 0.0
  %2678 = vmatprep.subr.mxu0 0.0
  %2679 = vmatpush1.msra.mxu0 0.0
  %2680 = vmatprep.subr.mxu0 0.0
  %2681 = vmatpush1.msra.mxu0 0.0
  %2682 = vmatprep.subr.mxu0 0.0
  %2683 = vmatpush1.msra.mxu0 0.0
  %2684 = vmatprep.subr.mxu0 0.0
  %2685 = vmatpush1.msra.mxu0 0.0
  %2686 = vmatprep.subr.mxu0 0.0
  %2687 = vmatpush1.msra.mxu0 0.0
  %2688 = vmatprep.subr.mxu0 0.0
  %2689 = vmatpush1.msra.mxu0 0.0
  %2690 = vmatprep.subr.mxu0 0.0
  %2691 = vmatpush1.msra.mxu0 0.0
  %2692 = vmatprep.subr.mxu0 0.0
  %2693 = vmatpush1.msra.mxu0 0.0
  %2694 = vmatprep.subr.mxu0 0.0
  %2695 = vmatpush1.msra.mxu0 0.0
  %2696 = vmatprep.subr.mxu0 0.0
  %2697 = vmatpush1.msra.mxu0 0.0
  %2698 = vmatprep.subr.mxu0 0.0
  %2699 = vmatpush1.msra.mxu0 0.0
  %2700 = vmatprep.mubr.f32.mxu0 0.0
  %2701 = vmatmul.mubr.f32.gmra.mrb[0].mxu0 %v2398
  %v2702 = vpop.f32.mrb[0].mxu0
  %v2703 = vadd.f32 0.0, %v2702
  %v2704 = vpop.f32.mrb[0].mxu0
  %v2705 = vadd.f32 0.0, %v2704
  %2706 = vmatprep.mubr.f32.mxu0 0.0
  %2707 = vmatmul.mubr.f32.gmra.mrb[0].mxu0 %v2399
  %v2708 = vpop.f32.mrb[0].mxu0
  %v2709 = vadd.f32 0.0, %v2708
  %v2710 = vpop.f32.mrb[0].mxu0
  %v2711 = vadd.f32 0.0, %v2710
  %2712 = vdwg.mxu0
  %2713 = vmatprep.subr.mxu0 %v1009
  %2714 = vmatpush1.msra.mxu0 %v1008
  %2715 = vmatprep.subr.mxu0 %v1013
  %2716 = vmatpush1.msra.mxu0 %v1012
  %2717 = vmatprep.subr.mxu0 %v1017
  %2718 = vmatpush1.msra.mxu0 %v1016
  %2719 = vmatprep.subr.mxu0 %v1021
  %2720 = vmatpush1.msra.mxu0 %v1020
  %2721 = vmatprep.subr.mxu0 %v1025
  %2722 = vmatpush1.msra.mxu0 %v1024
  %2723 = vmatprep.subr.mxu0 %v1029
  %2724 = vmatpush1.msra.mxu0 %v1028
  %2725 = vmatprep.subr.mxu0 %v1033
  %2726 = vmatpush1.msra.mxu0 %v1032
  %2727 = vmatprep.subr.mxu0 %v1037
  %2728 = vmatpush1.msra.mxu0 %v1036
  %2729 = vmatprep.subr.mxu0 %v1041
  %2730 = vmatpush1.msra.mxu0 %v1040
  %2731 = vmatprep.subr.mxu0 %v1045
  %2732 = vmatpush1.msra.mxu0 %v1044
  %2733 = vmatprep.subr.mxu0 %v1049
  %2734 = vmatpush1.msra.mxu0 %v1048
  %2735 = vmatprep.subr.mxu0 %v1053
  %2736 = vmatpush1.msra.mxu0 %v1052
  %2737 = vmatprep.subr.mxu0 %v1057
  %2738 = vmatpush1.msra.mxu0 %v1056
  %2739 = vmatprep.subr.mxu0 %v1061
  %2740 = vmatpush1.msra.mxu0 %v1060
  %2741 = vmatprep.subr.mxu0 %v1065
  %2742 = vmatpush1.msra.mxu0 %v1064
  %2743 = vmatprep.subr.mxu0 %v1069
  %2744 = vmatpush1.msra.mxu0 %v1068
  %2745 = vmatprep.subr.mxu0 0.0
  %2746 = vmatpush1.msra.mxu0 0.0
  %2747 = vmatprep.subr.mxu0 0.0
  %2748 = vmatpush1.msra.mxu0 0.0
  %2749 = vmatprep.subr.mxu0 0.0
  %2750 = vmatpush1.msra.mxu0 0.0
  %2751 = vmatprep.subr.mxu0 0.0
  %2752 = vmatpush1.msra.mxu0 0.0
  %2753 = vmatprep.subr.mxu0 0.0
  %2754 = vmatpush1.msra.mxu0 0.0
  %2755 = vmatprep.subr.mxu0 0.0
  %2756 = vmatpush1.msra.mxu0 0.0
  %2757 = vmatprep.subr.mxu0 0.0
  %2758 = vmatpush1.msra.mxu0 0.0
  %2759 = vmatprep.subr.mxu0 0.0
  %2760 = vmatpush1.msra.mxu0 0.0
  %2761 = vmatprep.subr.mxu0 0.0
  %2762 = vmatpush1.msra.mxu0 0.0
  %2763 = vmatprep.subr.mxu0 0.0
  %2764 = vmatpush1.msra.mxu0 0.0
  %2765 = vmatprep.subr.mxu0 0.0
  %2766 = vmatpush1.msra.mxu0 0.0
  %2767 = vmatprep.subr.mxu0 0.0
  %2768 = vmatpush1.msra.mxu0 0.0
  %2769 = vmatprep.subr.mxu0 0.0
  %2770 = vmatpush1.msra.mxu0 0.0
  %2771 = vmatprep.subr.mxu0 0.0
  %2772 = vmatpush1.msra.mxu0 0.0
  %2773 = vmatprep.subr.mxu0 0.0
  %2774 = vmatpush1.msra.mxu0 0.0
  %2775 = vmatprep.subr.mxu0 0.0
  %2776 = vmatpush1.msra.mxu0 0.0
  %2777 = vmatprep.mubr.f32.mxu0 0.0
  %2778 = vmatmul.mubr.f32.gmra.mrb[0].mxu0 %v2398
  %v2779 = vpop.f32.mrb[0].mxu0
  %v2780 = vadd.f32 0.0, %v2779
  %v2781 = vpop.f32.mrb[0].mxu0
  %v2782 = vadd.f32 0.0, %v2781
  %2783 = vmatprep.mubr.f32.mxu0 0.0
  %2784 = vmatmul.mubr.f32.gmra.mrb[0].mxu0 %v2399
  %v2785 = vpop.f32.mrb[0].mxu0
  %v2786 = vadd.f32 0.0, %v2785
  %v2787 = vpop.f32.mrb[0].mxu0
  %v2788 = vadd.f32 0.0, %v2787
  %2789 = vdwg.mxu0
  %v2790 = vadd.f32 %v2628, %v2703
  %v2791 = vadd.f32 %v2629, %v2705
  %v2792 = vadd.f32 %v2630, %v2780
  %v2793 = vadd.f32 %v2631, %v2782
  %v2794 = vadd.f32 %v2632, %v2709
  %v2795 = vadd.f32 %v2633, %v2711
  %v2796 = vadd.f32 %v2634, %v2786
  %v2797 = vadd.f32 %v2635, %v2788
  %v2798 = vxor.u32 %v2790, 2147483648
  %v2799 = vxor.u32 %v2794, 2147483648
  %v2800 = vmul.f32 %v2798, 1.442695
  %v2801 = vpow.pop %v2800
  %v2802 = vmul.f32 %v2799, 1.442695
  %v2803 = vpow.pop %v2802
  %v2804 = vadd.f32 %v2801, 1.0
  %v2805 = vadd.f32 %v2803, 1.0
  %v2806 = vrcp.pop %v2804
  %v2807 = vmul.f32 1.0, %v2806
  %v2808 = vrcp.pop %v2805
  %v2809 = vmul.f32 1.0, %v2808
  %v2810 = vxor.u32 %v2791, 2147483648
  %v2811 = vxor.u32 %v2795, 2147483648
  %v2812 = vmul.f32 %v2810, 1.442695
  %v2813 = vpow.pop %v2812
  %v2814 = vmul.f32 %v2811, 1.442695
  %v2815 = vpow.pop %v2814
  %v2816 = vadd.f32 %v2813, 1.0
  %v2817 = vadd.f32 %v2815, 1.0
  %v2818 = vrcp.pop %v2816
  %v2819 = vmul.f32 1.0, %v2818
  %v2820 = vrcp.pop %v2817
  %v2821 = vmul.f32 1.0, %v2820
  %v2822 = vtanh.pop %v2792
  %v2823 = vtanh.pop %v2796
  %v2824 = vxor.u32 %v2793, 2147483648
  %v2825 = vxor.u32 %v2797, 2147483648
  %v2826 = vmul.f32 %v2824, 1.442695
  %v2827 = vpow.pop %v2826
  %v2828 = vmul.f32 %v2825, 1.442695
  %v2829 = vpow.pop %v2828
  %v2830 = vadd.f32 %v2827, 1.0
  %v2831 = vadd.f32 %v2829, 1.0
  %v2832 = vrcp.pop %v2830
  %v2833 = vmul.f32 1.0, %v2832
  %v2834 = vrcp.pop %v2831
  %v2835 = vmul.f32 1.0, %v2834
  %v2836 = vmul.f32 %v2819, %v2394
  %v2837 = vmul.f32 %v2821, %v2395
  %v2838 = vmul.f32 %v2807, %v2822
  %v2839 = vmul.f32 %v2809, %v2823
  %v2840 = vadd.f32 %v2836, %v2838
  %v2841 = vadd.f32 %v2837, %v2839
  %v2842 = vtanh.pop %v2840
  %v2843 = vtanh.pop %v2841
  %v2844 = vmul.f32 %v2833, %v2842
  %v2845 = vmul.f32 %v2835, %v2843
  %v2846 = vmax.f32 %v2400, %v2623
  %v2847 = vmax.f32 %v2401, %v2624
  %v2848 = vmax.f32 %v2402, %v2844
  %v2849 = vmax.f32 %v2403, %v2845
  %s2850 = smul.addr %s2625, 8
  %s2851 = scalar_lea.vmem [#allocation2], %s2850
  %v2852 = vld [vmem:[%s2851] sm:$0xff]
  %v2853 = vld [vmem:[%s2851 + $0x8] sm:$0xff]
  %v2854 = vld [vmem:[%s2851 + $0x10] sm:$0xff]
  %v2855 = vld [vmem:[%s2851 + $0x18] sm:$0xff]
  %v2856 = vld [vmem:[%s2851 + $0x20] sm:$0xff]
  %v2857 = vld [vmem:[%s2851 + $0x28] sm:$0xff]
  %v2858 = vld [vmem:[%s2851 + $0x30] sm:$0xff]
  %v2859 = vld [vmem:[%s2851 + $0x38] sm:$0xff]
  %2860 = vmatprep.subr.mxu0 %v943
  %2861 = vmatpush1.msra.mxu0 %v942
  %2862 = vmatprep.subr.mxu0 %v947
  %2863 = vmatpush1.msra.mxu0 %v946
  %2864 = vmatprep.subr.mxu0 %v951
  %2865 = vmatpush1.msra.mxu0 %v950
  %2866 = vmatprep.subr.mxu0 %v955
  %2867 = vmatpush1.msra.mxu0 %v954
  %2868 = vmatprep.subr.mxu0 %v959
  %2869 = vmatpush1.msra.mxu0 %v958
  %2870 = vmatprep.subr.mxu0 %v963
  %2871 = vmatpush1.msra.mxu0 %v962
  %2872 = vmatprep.subr.mxu0 %v967
  %2873 = vmatpush1.msra.mxu0 %v966
  %2874 = vmatprep.subr.mxu0 %v971
  %2875 = vmatpush1.msra.mxu0 %v970
  %2876 = vmatprep.subr.mxu0 %v975
  %2877 = vmatpush1.msra.mxu0 %v974
  %2878 = vmatprep.subr.mxu0 %v979
  %2879 = vmatpush1.msra.mxu0 %v978
  %2880 = vmatprep.subr.mxu0 %v983
  %2881 = vmatpush1.msra.mxu0 %v982
  %2882 = vmatprep.subr.mxu0 %v987
  %2883 = vmatpush1.msra.mxu0 %v986
  %2884 = vmatprep.subr.mxu0 %v991
  %2885 = vmatpush1.msra.mxu0 %v990
  %2886 = vmatprep.subr.mxu0 %v995
  %2887 = vmatpush1.msra.mxu0 %v994
  %2888 = vmatprep.subr.mxu0 %v999
  %2889 = vmatpush1.msra.mxu0 %v998
  %2890 = vmatprep.subr.mxu0 %v1003
  %2891 = vmatpush1.msra.mxu0 %v1002
  %2892 = vmatprep.subr.mxu0 0.0
  %2893 = vmatpush1.msra.mxu0 0.0
  %2894 = vmatprep.subr.mxu0 0.0
  %2895 = vmatpush1.msra.mxu0 0.0
  %2896 = vmatprep.subr.mxu0 0.0
  %2897 = vmatpush1.msra.mxu0 0.0
  %2898 = vmatprep.subr.mxu0 0.0
  %2899 = vmatpush1.msra.mxu0 0.0
  %2900 = vmatprep.subr.mxu0 0.0
  %2901 = vmatpush1.msra.mxu0 0.0
  %2902 = vmatprep.subr.mxu0 0.0
  %2903 = vmatpush1.msra.mxu0 0.0
  %2904 = vmatprep.subr.mxu0 0.0
  %2905 = vmatpush1.msra.mxu0 0.0
  %2906 = vmatprep.subr.mxu0 0.0
  %2907 = vmatpush1.msra.mxu0 0.0
  %2908 = vmatprep.subr.mxu0 0.0
  %2909 = vmatpush1.msra.mxu0 0.0
  %2910 = vmatprep.subr.mxu0 0.0
  %2911 = vmatpush1.msra.mxu0 0.0
  %2912 = vmatprep.subr.mxu0 0.0
  %2913 = vmatpush1.msra.mxu0 0.0
  %2914 = vmatprep.subr.mxu0 0.0
  %2915 = vmatpush1.msra.mxu0 0.0
  %2916 = vmatprep.subr.mxu0 0.0
  %2917 = vmatpush1.msra.mxu0 0.0
  %2918 = vmatprep.subr.mxu0 0.0
  %2919 = vmatpush1.msra.mxu0 0.0
  %2920 = vmatprep.subr.mxu0 0.0
  %2921 = vmatpush1.msra.mxu0 0.0
  %2922 = vmatprep.subr.mxu0 0.0
  %2923 = vmatpush1.msra.mxu0 0.0
  %2924 = vmatprep.mubr.f32.mxu0 0.0
  %2925 = vmatmul.mubr.f32.gmra.mrb[0].mxu0 %v2623
  %v2926 = vpop.f32.mrb[0].mxu0
  %v2927 = vadd.f32 0.0, %v2926
  %v2928 = vpop.f32.mrb[0].mxu0
  %v2929 = vadd.f32 0.0, %v2928
  %2930 = vmatprep.mubr.f32.mxu0 0.0
  %2931 = vmatmul.mubr.f32.gmra.mrb[0].mxu0 %v2624
  %v2932 = vpop.f32.mrb[0].mxu0
  %v2933 = vadd.f32 0.0, %v2932
  %v2934 = vpop.f32.mrb[0].mxu0
  %v2935 = vadd.f32 0.0, %v2934
  %2936 = vdwg.mxu0
  %2937 = vmatprep.subr.mxu0 %v945
  %2938 = vmatpush1.msra.mxu0 %v944
  %2939 = vmatprep.subr.mxu0 %v949
  %2940 = vmatpush1.msra.mxu0 %v948
  %2941 = vmatprep.subr.mxu0 %v953
  %2942 = vmatpush1.msra.mxu0 %v952
  %2943 = vmatprep.subr.mxu0 %v957
  %2944 = vmatpush1.msra.mxu0 %v956
  %2945 = vmatprep.subr.mxu0 %v961
  %2946 = vmatpush1.msra.mxu0 %v960
  %2947 = vmatprep.subr.mxu0 %v965
  %2948 = vmatpush1.msra.mxu0 %v964
  %2949 = vmatprep.subr.mxu0 %v969
  %2950 = vmatpush1.msra.mxu0 %v968
  %2951 = vmatprep.subr.mxu0 %v973
  %2952 = vmatpush1.msra.mxu0 %v972
  %2953 = vmatprep.subr.mxu0 %v977
  %2954 = vmatpush1.msra.mxu0 %v976
  %2955 = vmatprep.subr.mxu0 %v981
  %2956 = vmatpush1.msra.mxu0 %v980
  %2957 = vmatprep.subr.mxu0 %v985
  %2958 = vmatpush1.msra.mxu0 %v984
  %2959 = vmatprep.subr.mxu0 %v989
  %2960 = vmatpush1.msra.mxu0 %v988
  %2961 = vmatprep.subr.mxu0 %v993
  %2962 = vmatpush1.msra.mxu0 %v992
  %2963 = vmatprep.subr.mxu0 %v997
  %2964 = vmatpush1.msra.mxu0 %v996
  %2965 = vmatprep.subr.mxu0 %v1001
  %2966 = vmatpush1.msra.mxu0 %v1000
  %2967 = vmatprep.subr.mxu0 %v1005
  %2968 = vmatpush1.msra.mxu0 %v1004
  %2969 = vmatprep.subr.mxu0 0.0
  %2970 = vmatpush1.msra.mxu0 0.0
  %2971 = vmatprep.subr.mxu0 0.0
  %2972 = vmatpush1.msra.mxu0 0.0
  %2973 = vmatprep.subr.mxu0 0.0
  %2974 = vmatpush1.msra.mxu0 0.0
  %2975 = vmatprep.subr.mxu0 0.0
  %2976 = vmatpush1.msra.mxu0 0.0
  %2977 = vmatprep.subr.mxu0 0.0
  %2978 = vmatpush1.msra.mxu0 0.0
  %2979 = vmatprep.subr.mxu0 0.0
  %2980 = vmatpush1.msra.mxu0 0.0
  %2981 = vmatprep.subr.mxu0 0.0
  %2982 = vmatpush1.msra.mxu0 0.0
  %2983 = vmatprep.subr.mxu0 0.0
  %2984 = vmatpush1.msra.mxu0 0.0
  %2985 = vmatprep.subr.mxu0 0.0
  %2986 = vmatpush1.msra.mxu0 0.0
  %2987 = vmatprep.subr.mxu0 0.0
  %2988 = vmatpush1.msra.mxu0 0.0
  %2989 = vmatprep.subr.mxu0 0.0
  %2990 = vmatpush1.msra.mxu0 0.0
  %2991 = vmatprep.subr.mxu0 0.0
  %2992 = vmatpush1.msra.mxu0 0.0
  %2993 = vmatprep.subr.mxu0 0.0
  %2994 = vmatpush1.msra.mxu0 0.0
  %2995 = vmatprep.subr.mxu0 0.0
  %2996 = vmatpush1.msra.mxu0 0.0
  %2997 = vmatprep.subr.mxu0 0.0
  %2998 = vmatpush1.msra.mxu0 0.0
  %2999 = vmatprep.subr.mxu0 0.0
  %3000 = vmatpush1.msra.mxu0 0.0
  %3001 = vmatprep.mubr.f32.mxu0 0.0
  %3002 = vmatmul.mubr.f32.gmra.mrb[0].mxu0 %v2623
  %v3003 = vpop.f32.mrb[0].mxu0
  %v3004 = vadd.f32 0.0, %v3003
  %v3005 = vpop.f32.mrb[0].mxu0
  %v3006 = vadd.f32 0.0, %v3005
  %3007 = vmatprep.mubr.f32.mxu0 0.0
  %3008 = vmatmul.mubr.f32.gmra.mrb[0].mxu0 %v2624
  %v3009 = vpop.f32.mrb[0].mxu0
  %v3010 = vadd.f32 0.0, %v3009
  %v3011 = vpop.f32.mrb[0].mxu0
  %v3012 = vadd.f32 0.0, %v3011
  %3013 = vdwg.mxu0
  %v3014 = vadd.f32 %v2852, %v2927
  %v3015 = vadd.f32 %v2853, %v2929
  %v3016 = vadd.f32 %v2854, %v3004
  %v3017 = vadd.f32 %v2855, %v3006
  %v3018 = vadd.f32 %v2856, %v2933
  %v3019 = vadd.f32 %v2857, %v2935
  %v3020 = vadd.f32 %v2858, %v3010
  %v3021 = vadd.f32 %v2859, %v3012
  %v3022 = vxor.u32 %v3014, 2147483648
  %v3023 = vxor.u32 %v3018, 2147483648
  %v3024 = vmul.f32 %v3022, 1.442695
  %v3025 = vpow.pop %v3024
  %v3026 = vmul.f32 %v3023, 1.442695
  %v3027 = vpow.pop %v3026
  %v3028 = vadd.f32 %v3025, 1.0
  %v3029 = vadd.f32 %v3027, 1.0
  %v3030 = vrcp.pop %v3028
  %v3031 = vmul.f32 1.0, %v3030
  %v3032 = vrcp.pop %v3029
  %v3033 = vmul.f32 1.0, %v3032
  %v3034 = vxor.u32 %v3015, 2147483648
  %v3035 = vxor.u32 %v3019, 2147483648
  %v3036 = vmul.f32 %v3034, 1.442695
  %v3037 = vpow.pop %v3036
  %v3038 = vmul.f32 %v3035, 1.442695
  %v3039 = vpow.pop %v3038
  %v3040 = vadd.f32 %v3037, 1.0
  %v3041 = vadd.f32 %v3039, 1.0
  %v3042 = vrcp.pop %v3040
  %v3043 = vmul.f32 1.0, %v3042
  %v3044 = vrcp.pop %v3041
  %v3045 = vmul.f32 1.0, %v3044
  %v3046 = vtanh.pop %v3016
  %v3047 = vtanh.pop %v3020
  %v3048 = vxor.u32 %v3017, 2147483648
  %v3049 = vxor.u32 %v3021, 2147483648
  %v3050 = vmul.f32 %v3048, 1.442695
  %v3051 = vpow.pop %v3050
  %v3052 = vmul.f32 %v3049, 1.442695
  %v3053 = vpow.pop %v3052
  %v3054 = vadd.f32 %v3051, 1.0
  %v3055 = vadd.f32 %v3053, 1.0
  %v3056 = vrcp.pop %v3054
  %v3057 = vmul.f32 1.0, %v3056
  %v3058 = vrcp.pop %v3055
  %v3059 = vmul.f32 1.0, %v3058
  %v3060 = vmul.f32 %v3043, %v2619
  %v3061 = vmul.f32 %v3045, %v2620
  %v3062 = vmul.f32 %v3031, %v3046
  %v3063 = vmul.f32 %v3033, %v3047
  %v3064 = vadd.f32 %v3060, %v3062
  %v3065 = vadd.f32 %v3061, %v3063
  %v3066 = vtanh.pop %v3064
  %v3067 = vtanh.pop %v3065
  %v3068 = vmul.f32 %v3057, %v3066
  %v3069 = vmul.f32 %v3059, %v3067
  %s3070 = smul.addr %s2404, 8
  %s3071 = scalar_lea.vmem [#allocation3], %s3070
  %v3072 = vld [vmem:[%s3071] sm:$0xff]
  %v3073 = vld [vmem:[%s3071 + $0x8] sm:$0xff]
  %v3074 = vld [vmem:[%s3071 + $0x10] sm:$0xff]
  %v3075 = vld [vmem:[%s3071 + $0x18] sm:$0xff]
  %v3076 = vld [vmem:[%s3071 + $0x20] sm:$0xff]
  %v3077 = vld [vmem:[%s3071 + $0x28] sm:$0xff]
  %v3078 = vld [vmem:[%s3071 + $0x30] sm:$0xff]
  %v3079 = vld [vmem:[%s3071 + $0x38] sm:$0xff]
  %3080 = vmatprep.subr.mxu0 %v1007
  %3081 = vmatpush1.msra.mxu0 %v1006
  %3082 = vmatprep.subr.mxu0 %v1011
  %3083 = vmatpush1.msra.mxu0 %v1010
  %3084 = vmatprep.subr.mxu0 %v1015
  %3085 = vmatpush1.msra.mxu0 %v1014
  %3086 = vmatprep.subr.mxu0 %v1019
  %3087 = vmatpush1.msra.mxu0 %v1018
  %3088 = vmatprep.subr.mxu0 %v1023
  %3089 = vmatpush1.msra.mxu0 %v1022
  %3090 = vmatprep.subr.mxu0 %v1027
  %3091 = vmatpush1.msra.mxu0 %v1026
  %3092 = vmatprep.subr.mxu0 %v1031
  %3093 = vmatpush1.msra.mxu0 %v1030
  %3094 = vmatprep.subr.mxu0 %v1035
  %3095 = vmatpush1.msra.mxu0 %v1034
  %3096 = vmatprep.subr.mxu0 %v1039
  %3097 = vmatpush1.msra.mxu0 %v1038
  %3098 = vmatprep.subr.mxu0 %v1043
  %3099 = vmatpush1.msra.mxu0 %v1042
  %3100 = vmatprep.subr.mxu0 %v1047
  %3101 = vmatpush1.msra.mxu0 %v1046
  %3102 = vmatprep.subr.mxu0 %v1051
  %3103 = vmatpush1.msra.mxu0 %v1050
  %3104 = vmatprep.subr.mxu0 %v1055
  %3105 = vmatpush1.msra.mxu0 %v1054
  %3106 = vmatprep.subr.mxu0 %v1059
  %3107 = vmatpush1.msra.mxu0 %v1058
  %3108 = vmatprep.subr.mxu0 %v1063
  %3109 = vmatpush1.msra.mxu0 %v1062
  %3110 = vmatprep.subr.mxu0 %v1067
  %3111 = vmatpush1.msra.mxu0 %v1066
  %3112 = vmatprep.subr.mxu0 0.0
  %3113 = vmatpush1.msra.mxu0 0.0
  %3114 = vmatprep.subr.mxu0 0.0
  %3115 = vmatpush1.msra.mxu0 0.0
  %3116 = vmatprep.subr.mxu0 0.0
  %3117 = vmatpush1.msra.mxu0 0.0
  %3118 = vmatprep.subr.mxu0 0.0
  %3119 = vmatpush1.msra.mxu0 0.0
  %3120 = vmatprep.subr.mxu0 0.0
  %3121 = vmatpush1.msra.mxu0 0.0
  %3122 = vmatprep.subr.mxu0 0.0
  %3123 = vmatpush1.msra.mxu0 0.0
  %3124 = vmatprep.subr.mxu0 0.0
  %3125 = vmatpush1.msra.mxu0 0.0
  %3126 = vmatprep.subr.mxu0 0.0
  %3127 = vmatpush1.msra.mxu0 0.0
  %3128 = vmatprep.subr.mxu0 0.0
  %3129 = vmatpush1.msra.mxu0 0.0
  %3130 = vmatprep.subr.mxu0 0.0
  %3131 = vmatpush1.msra.mxu0 0.0
  %3132 = vmatprep.subr.mxu0 0.0
  %3133 = vmatpush1.msra.mxu0 0.0
  %3134 = vmatprep.subr.mxu0 0.0
  %3135 = vmatpush1.msra.mxu0 0.0
  %3136 = vmatprep.subr.mxu0 0.0
  %3137 = vmatpush1.msra.mxu0 0.0
  %3138 = vmatprep.subr.mxu0 0.0
  %3139 = vmatpush1.msra.mxu0 0.0
  %3140 = vmatprep.subr.mxu0 0.0
  %3141 = vmatpush1.msra.mxu0 0.0
  %3142 = vmatprep.subr.mxu0 0.0
  %3143 = vmatpush1.msra.mxu0 0.0
  %3144 = vmatprep.mubr.f32.mxu0 0.0
  %3145 = vmatmul.mubr.f32.gmra.mrb[0].mxu0 %v2844
  %v3146 = vpop.f32.mrb[0].mxu0
  %v3147 = vadd.f32 0.0, %v3146
  %v3148 = vpop.f32.mrb[0].mxu0
  %v3149 = vadd.f32 0.0, %v3148
  %3150 = vmatprep.mubr.f32.mxu0 0.0
  %3151 = vmatmul.mubr.f32.gmra.mrb[0].mxu0 %v2845
  %v3152 = vpop.f32.mrb[0].mxu0
  %v3153 = vadd.f32 0.0, %v3152
  %v3154 = vpop.f32.mrb[0].mxu0
  %v3155 = vadd.f32 0.0, %v3154
  %3156 = vdwg.mxu0
  %3157 = vmatprep.subr.mxu0 %v1009
  %3158 = vmatpush1.msra.mxu0 %v1008
  %3159 = vmatprep.subr.mxu0 %v1013
  %3160 = vmatpush1.msra.mxu0 %v1012
  %3161 = vmatprep.subr.mxu0 %v1017
  %3162 = vmatpush1.msra.mxu0 %v1016
  %3163 = vmatprep.subr.mxu0 %v1021
  %3164 = vmatpush1.msra.mxu0 %v1020
  %3165 = vmatprep.subr.mxu0 %v1025
  %3166 = vmatpush1.msra.mxu0 %v1024
  %3167 = vmatprep.subr.mxu0 %v1029
  %3168 = vmatpush1.msra.mxu0 %v1028
  %3169 = vmatprep.subr.mxu0 %v1033
  %3170 = vmatpush1.msra.mxu0 %v1032
  %3171 = vmatprep.subr.mxu0 %v1037
  %3172 = vmatpush1.msra.mxu0 %v1036
  %3173 = vmatprep.subr.mxu0 %v1041
  %3174 = vmatpush1.msra.mxu0 %v1040
  %3175 = vmatprep.subr.mxu0 %v1045
  %3176 = vmatpush1.msra.mxu0 %v1044
  %3177 = vmatprep.subr.mxu0 %v1049
  %3178 = vmatpush1.msra.mxu0 %v1048
  %3179 = vmatprep.subr.mxu0 %v1053
  %3180 = vmatpush1.msra.mxu0 %v1052
  %3181 = vmatprep.subr.mxu0 %v1057
  %3182 = vmatpush1.msra.mxu0 %v1056
  %3183 = vmatprep.subr.mxu0 %v1061
  %3184 = vmatpush1.msra.mxu0 %v1060
  %3185 = vmatprep.subr.mxu0 %v1065
  %3186 = vmatpush1.msra.mxu0 %v1064
  %3187 = vmatprep.subr.mxu0 %v1069
  %3188 = vmatpush1.msra.mxu0 %v1068
  %3189 = vmatprep.subr.mxu0 0.0
  %3190 = vmatpush1.msra.mxu0 0.0
  %3191 = vmatprep.subr.mxu0 0.0
  %3192 = vmatpush1.msra.mxu0 0.0
  %3193 = vmatprep.subr.mxu0 0.0
  %3194 = vmatpush1.msra.mxu0 0.0
  %3195 = vmatprep.subr.mxu0 0.0
  %3196 = vmatpush1.msra.mxu0 0.0
  %3197 = vmatprep.subr.mxu0 0.0
  %3198 = vmatpush1.msra.mxu0 0.0
  %3199 = vmatprep.subr.mxu0 0.0
  %3200 = vmatpush1.msra.mxu0 0.0
  %3201 = vmatprep.subr.mxu0 0.0
  %3202 = vmatpush1.msra.mxu0 0.0
  %3203 = vmatprep.subr.mxu0 0.0
  %3204 = vmatpush1.msra.mxu0 0.0
  %3205 = vmatprep.subr.mxu0 0.0
  %3206 = vmatpush1.msra.mxu0 0.0
  %3207 = vmatprep.subr.mxu0 0.0
  %3208 = vmatpush1.msra.mxu0 0.0
  %3209 = vmatprep.subr.mxu0 0.0
  %3210 = vmatpush1.msra.mxu0 0.0
  %3211 = vmatprep.subr.mxu0 0.0
  %3212 = vmatpush1.msra.mxu0 0.0
  %3213 = vmatprep.subr.mxu0 0.0
  %3214 = vmatpush1.msra.mxu0 0.0
  %3215 = vmatprep.subr.mxu0 0.0
  %3216 = vmatpush1.msra.mxu0 0.0
  %3217 = vmatprep.subr.mxu0 0.0
  %3218 = vmatpush1.msra.mxu0 0.0
  %3219 = vmatprep.subr.mxu0 0.0
  %3220 = vmatpush1.msra.mxu0 0.0
  %3221 = vmatprep.mubr.f32.mxu0 0.0
  %3222 = vmatmul.mubr.f32.gmra.mrb[0].mxu0 %v2844
  %v3223 = vpop.f32.mrb[0].mxu0
  %v3224 = vadd.f32 0.0, %v3223
  %v3225 = vpop.f32.mrb[0].mxu0
  %v3226 = vadd.f32 0.0, %v3225
  %3227 = vmatprep.mubr.f32.mxu0 0.0
  %3228 = vmatmul.mubr.f32.gmra.mrb[0].mxu0 %v2845
  %v3229 = vpop.f32.mrb[0].mxu0
  %v3230 = vadd.f32 0.0, %v3229
  %v3231 = vpop.f32.mrb[0].mxu0
  %v3232 = vadd.f32 0.0, %v3231
  %3233 = vdwg.mxu0
  %v3234 = vadd.f32 %v3072, %v3147
  %v3235 = vadd.f32 %v3073, %v3149
  %v3236 = vadd.f32 %v3074, %v3224
  %v3237 = vadd.f32 %v3075, %v3226
  %v3238 = vadd.f32 %v3076, %v3153
  %v3239 = vadd.f32 %v3077, %v3155
  %v3240 = vadd.f32 %v3078, %v3230
  %v3241 = vadd.f32 %v3079, %v3232
  %v3242 = vxor.u32 %v3234, 2147483648
  %v3243 = vxor.u32 %v3238, 2147483648
  %v3244 = vmul.f32 %v3242, 1.442695
  %v3245 = vpow.pop %v3244
  %v3246 = vmul.f32 %v3243, 1.442695
  %v3247 = vpow.pop %v3246
  %v3248 = vadd.f32 %v3245, 1.0
  %v3249 = vadd.f32 %v3247, 1.0
  %v3250 = vrcp.pop %v3248
  %v3251 = vmul.f32 1.0, %v3250
  %v3252 = vrcp.pop %v3249
  %v3253 = vmul.f32 1.0, %v3252
  %v3254 = vxor.u32 %v3235, 2147483648
  %v3255 = vxor.u32 %v3239, 2147483648
  %v3256 = vmul.f32 %v3254, 1.442695
  %v3257 = vpow.pop %v3256
  %v3258 = vmul.f32 %v3255, 1.442695
  %v3259 = vpow.pop %v3258
  %v3260 = vadd.f32 %v3257, 1.0
  %v3261 = vadd.f32 %v3259, 1.0
  %v3262 = vrcp.pop %v3260
  %v3263 = vmul.f32 1.0, %v3262
  %v3264 = vrcp.pop %v3261
  %v3265 = vmul.f32 1.0, %v3264
  %v3266 = vtanh.pop %v3236
  %v3267 = vtanh.pop %v3240
  %v3268 = vxor.u32 %v3237, 2147483648
  %v3269 = vxor.u32 %v3241, 2147483648
  %v3270 = vmul.f32 %v3268, 1.442695
  %v3271 = vpow.pop %v3270
  %v3272 = vmul.f32 %v3269, 1.442695
  %v3273 = vpow.pop %v3272
  %v3274 = vadd.f32 %v3271, 1.0
  %v3275 = vadd.f32 %v3273, 1.0
  %v3276 = vrcp.pop %v3274
  %v3277 = vmul.f32 1.0, %v3276
  %v3278 = vrcp.pop %v3275
  %v3279 = vmul.f32 1.0, %v3278
  %v3280 = vmul.f32 %v3263, %v2840
  %v3281 = vmul.f32 %v3265, %v2841
  %v3282 = vmul.f32 %v3251, %v3266
  %v3283 = vmul.f32 %v3253, %v3267
  %v3284 = vadd.f32 %v3280, %v3282
  %v3285 = vadd.f32 %v3281, %v3283
  %v3286 = vtanh.pop %v3284
  %v3287 = vtanh.pop %v3285
  %v3288 = vmul.f32 %v3277, %v3286
  %v3289 = vmul.f32 %v3279, %v3287
  %v3290 = vmax.f32 %v2846, %v3068
  %v3291 = vmax.f32 %v2847, %v3069
  %v3292 = vmax.f32 %v2848, %v3288
  %v3293 = vmax.f32 %v2849, %v3289
  %s3294 = smul.addr %s2179, 8
  %s3295 = scalar_lea.vmem [#allocation2], %s3294
  %v3296 = vld [vmem:[%s3295] sm:$0xff]
  %v3297 = vld [vmem:[%s3295 + $0x8] sm:$0xff]
  %v3298 = vld [vmem:[%s3295 + $0x10] sm:$0xff]
  %v3299 = vld [vmem:[%s3295 + $0x18] sm:$0xff]
  %v3300 = vld [vmem:[%s3295 + $0x20] sm:$0xff]
  %v3301 = vld [vmem:[%s3295 + $0x28] sm:$0xff]
  %v3302 = vld [vmem:[%s3295 + $0x30] sm:$0xff]
  %v3303 = vld [vmem:[%s3295 + $0x38] sm:$0xff]
  %3304 = vmatprep.subr.mxu0 %v943
  %3305 = vmatpush1.msra.mxu0 %v942
  %3306 = vmatprep.subr.mxu0 %v947
  %3307 = vmatpush1.msra.mxu0 %v946
  %3308 = vmatprep.subr.mxu0 %v951
  %3309 = vmatpush1.msra.mxu0 %v950
  %3310 = vmatprep.subr.mxu0 %v955
  %3311 = vmatpush1.msra.mxu0 %v954
  %3312 = vmatprep.subr.mxu0 %v959
  %3313 = vmatpush1.msra.mxu0 %v958
  %3314 = vmatprep.subr.mxu0 %v963
  %3315 = vmatpush1.msra.mxu0 %v962
  %3316 = vmatprep.subr.mxu0 %v967
  %3317 = vmatpush1.msra.mxu0 %v966
  %3318 = vmatprep.subr.mxu0 %v971
  %3319 = vmatpush1.msra.mxu0 %v970
  %3320 = vmatprep.subr.mxu0 %v975
  %3321 = vmatpush1.msra.mxu0 %v974
  %3322 = vmatprep.subr.mxu0 %v979
  %3323 = vmatpush1.msra.mxu0 %v978
  %3324 = vmatprep.subr.mxu0 %v983
  %3325 = vmatpush1.msra.mxu0 %v982
  %3326 = vmatprep.subr.mxu0 %v987
  %3327 = vmatpush1.msra.mxu0 %v986
  %3328 = vmatprep.subr.mxu0 %v991
  %3329 = vmatpush1.msra.mxu0 %v990
  %3330 = vmatprep.subr.mxu0 %v995
  %3331 = vmatpush1.msra.mxu0 %v994
  %3332 = vmatprep.subr.mxu0 %v999
  %3333 = vmatpush1.msra.mxu0 %v998
  %3334 = vmatprep.subr.mxu0 %v1003
  %3335 = vmatpush1.msra.mxu0 %v1002
  %3336 = vmatprep.subr.mxu0 0.0
  %3337 = vmatpush1.msra.mxu0 0.0
  %3338 = vmatprep.subr.mxu0 0.0
  %3339 = vmatpush1.msra.mxu0 0.0
  %3340 = vmatprep.subr.mxu0 0.0
  %3341 = vmatpush1.msra.mxu0 0.0
  %3342 = vmatprep.subr.mxu0 0.0
  %3343 = vmatpush1.msra.mxu0 0.0
  %3344 = vmatprep.subr.mxu0 0.0
  %3345 = vmatpush1.msra.mxu0 0.0
  %3346 = vmatprep.subr.mxu0 0.0
  %3347 = vmatpush1.msra.mxu0 0.0
  %3348 = vmatprep.subr.mxu0 0.0
  %3349 = vmatpush1.msra.mxu0 0.0
  %3350 = vmatprep.subr.mxu0 0.0
  %3351 = vmatpush1.msra.mxu0 0.0
  %3352 = vmatprep.subr.mxu0 0.0
  %3353 = vmatpush1.msra.mxu0 0.0
  %3354 = vmatprep.subr.mxu0 0.0
  %3355 = vmatpush1.msra.mxu0 0.0
  %3356 = vmatprep.subr.mxu0 0.0
  %3357 = vmatpush1.msra.mxu0 0.0
  %3358 = vmatprep.subr.mxu0 0.0
  %3359 = vmatpush1.msra.mxu0 0.0
  %3360 = vmatprep.subr.mxu0 0.0
  %3361 = vmatpush1.msra.mxu0 0.0
  %3362 = vmatprep.subr.mxu0 0.0
  %3363 = vmatpush1.msra.mxu0 0.0
  %3364 = vmatprep.subr.mxu0 0.0
  %3365 = vmatpush1.msra.mxu0 0.0
  %3366 = vmatprep.subr.mxu0 0.0
  %3367 = vmatpush1.msra.mxu0 0.0
  %3368 = vmatprep.mubr.f32.mxu0 0.0
  %3369 = vmatmul.mubr.f32.gmra.mrb[0].mxu0 %v3068
  %v3370 = vpop.f32.mrb[0].mxu0
  %v3371 = vadd.f32 0.0, %v3370
  %v3372 = vpop.f32.mrb[0].mxu0
  %v3373 = vadd.f32 0.0, %v3372
  %3374 = vmatprep.mubr.f32.mxu0 0.0
  %3375 = vmatmul.mubr.f32.gmra.mrb[0].mxu0 %v3069
  %v3376 = vpop.f32.mrb[0].mxu0
  %v3377 = vadd.f32 0.0, %v3376
  %v3378 = vpop.f32.mrb[0].mxu0
  %v3379 = vadd.f32 0.0, %v3378
  %3380 = vdwg.mxu0
  %3381 = vmatprep.subr.mxu0 %v945
  %3382 = vmatpush1.msra.mxu0 %v944
  %3383 = vmatprep.subr.mxu0 %v949
  %3384 = vmatpush1.msra.mxu0 %v948
  %3385 = vmatprep.subr.mxu0 %v953
  %3386 = vmatpush1.msra.mxu0 %v952
  %3387 = vmatprep.subr.mxu0 %v957
  %3388 = vmatpush1.msra.mxu0 %v956
  %3389 = vmatprep.subr.mxu0 %v961
  %3390 = vmatpush1.msra.mxu0 %v960
  %3391 = vmatprep.subr.mxu0 %v965
  %3392 = vmatpush1.msra.mxu0 %v964
  %3393 = vmatprep.subr.mxu0 %v969
  %3394 = vmatpush1.msra.mxu0 %v968
  %3395 = vmatprep.subr.mxu0 %v973
  %3396 = vmatpush1.msra.mxu0 %v972
  %3397 = vmatprep.subr.mxu0 %v977
  %3398 = vmatpush1.msra.mxu0 %v976
  %3399 = vmatprep.subr.mxu0 %v981
  %3400 = vmatpush1.msra.mxu0 %v980
  %3401 = vmatprep.subr.mxu0 %v985
  %3402 = vmatpush1.msra.mxu0 %v984
  %3403 = vmatprep.subr.mxu0 %v989
  %3404 = vmatpush1.msra.mxu0 %v988
  %3405 = vmatprep.subr.mxu0 %v993
  %3406 = vmatpush1.msra.mxu0 %v992
  %3407 = vmatprep.subr.mxu0 %v997
  %3408 = vmatpush1.msra.mxu0 %v996
  %3409 = vmatprep.subr.mxu0 %v1001
  %3410 = vmatpush1.msra.mxu0 %v1000
  %3411 = vmatprep.subr.mxu0 %v1005
  %3412 = vmatpush1.msra.mxu0 %v1004
  %3413 = vmatprep.subr.mxu0 0.0
  %3414 = vmatpush1.msra.mxu0 0.0
  %3415 = vmatprep.subr.mxu0 0.0
  %3416 = vmatpush1.msra.mxu0 0.0
  %3417 = vmatprep.subr.mxu0 0.0
  %3418 = vmatpush1.msra.mxu0 0.0
  %3419 = vmatprep.subr.mxu0 0.0
  %3420 = vmatpush1.msra.mxu0 0.0
  %3421 = vmatprep.subr.mxu0 0.0
  %3422 = vmatpush1.msra.mxu0 0.0
  %3423 = vmatprep.subr.mxu0 0.0
  %3424 = vmatpush1.msra.mxu0 0.0
  %3425 = vmatprep.subr.mxu0 0.0
  %3426 = vmatpush1.msra.mxu0 0.0
  %3427 = vmatprep.subr.mxu0 0.0
  %3428 = vmatpush1.msra.mxu0 0.0
  %3429 = vmatprep.subr.mxu0 0.0
  %3430 = vmatpush1.msra.mxu0 0.0
  %3431 = vmatprep.subr.mxu0 0.0
  %3432 = vmatpush1.msra.mxu0 0.0
  %3433 = vmatprep.subr.mxu0 0.0
  %3434 = vmatpush1.msra.mxu0 0.0
  %3435 = vmatprep.subr.mxu0 0.0
  %3436 = vmatpush1.msra.mxu0 0.0
  %3437 = vmatprep.subr.mxu0 0.0
  %3438 = vmatpush1.msra.mxu0 0.0
  %3439 = vmatprep.subr.mxu0 0.0
  %3440 = vmatpush1.msra.mxu0 0.0
  %3441 = vmatprep.subr.mxu0 0.0
  %3442 = vmatpush1.msra.mxu0 0.0
  %3443 = vmatprep.subr.mxu0 0.0
  %3444 = vmatpush1.msra.mxu0 0.0
  %3445 = vmatprep.mubr.f32.mxu0 0.0
  %3446 = vmatmul.mubr.f32.gmra.mrb[0].mxu0 %v3068
  %v3447 = vpop.f32.mrb[0].mxu0
  %v3448 = vadd.f32 0.0, %v3447
  %v3449 = vpop.f32.mrb[0].mxu0
  %v3450 = vadd.f32 0.0, %v3449
  %3451 = vmatprep.mubr.f32.mxu0 0.0
  %3452 = vmatmul.mubr.f32.gmra.mrb[0].mxu0 %v3069
  %v3453 = vpop.f32.mrb[0].mxu0
  %v3454 = vadd.f32 0.0, %v3453
  %v3455 = vpop.f32.mrb[0].mxu0
  %v3456 = vadd.f32 0.0, %v3455
  %3457 = vdwg.mxu0
  %v3458 = vadd.f32 %v3296, %v3371
  %v3459 = vadd.f32 %v3297, %v3373
  %v3460 = vadd.f32 %v3298, %v3448
  %v3461 = vadd.f32 %v3299, %v3450
  %v3462 = vadd.f32 %v3300, %v3377
  %v3463 = vadd.f32 %v3301, %v3379
  %v3464 = vadd.f32 %v3302, %v3454
  %v3465 = vadd.f32 %v3303, %v3456
  %v3466 = vxor.u32 %v3458, 2147483648
  %v3467 = vxor.u32 %v3462, 2147483648
  %v3468 = vmul.f32 %v3466, 1.442695
  %v3469 = vpow.pop %v3468
  %v3470 = vmul.f32 %v3467, 1.442695
  %v3471 = vpow.pop %v3470
  %v3472 = vadd.f32 %v3469, 1.0
  %v3473 = vadd.f32 %v3471, 1.0
  %v3474 = vrcp.pop %v3472
  %v3475 = vmul.f32 1.0, %v3474
  %v3476 = vrcp.pop %v3473
  %v3477 = vmul.f32 1.0, %v3476
  %v3478 = vxor.u32 %v3459, 2147483648
  %v3479 = vxor.u32 %v3463, 2147483648
  %v3480 = vmul.f32 %v3478, 1.442695
  %v3481 = vpow.pop %v3480
  %v3482 = vmul.f32 %v3479, 1.442695
  %v3483 = vpow.pop %v3482
  %v3484 = vadd.f32 %v3481, 1.0
  %v3485 = vadd.f32 %v3483, 1.0
  %v3486 = vrcp.pop %v3484
  %v3487 = vmul.f32 1.0, %v3486
  %v3488 = vrcp.pop %v3485
  %v3489 = vmul.f32 1.0, %v3488
  %v3490 = vtanh.pop %v3460
  %v3491 = vtanh.pop %v3464
  %v3492 = vxor.u32 %v3461, 2147483648
  %v3493 = vxor.u32 %v3465, 2147483648
  %v3494 = vmul.f32 %v3492, 1.442695
  %v3495 = vpow.pop %v3494
  %v3496 = vmul.f32 %v3493, 1.442695
  %v3497 = vpow.pop %v3496
  %v3498 = vadd.f32 %v3495, 1.0
  %v3499 = vadd.f32 %v3497, 1.0
  %v3500 = vrcp.pop %v3498
  %v3501 = vmul.f32 1.0, %v3500
  %v3502 = vrcp.pop %v3499
  %v3503 = vmul.f32 1.0, %v3502
  %v3504 = vmul.f32 %v3487, %v3064
  %v3505 = vmul.f32 %v3489, %v3065
  %v3506 = vmul.f32 %v3475, %v3490
  %v3507 = vmul.f32 %v3477, %v3491
  %v3508 = vadd.f32 %v3504, %v3506
  %v3509 = vadd.f32 %v3505, %v3507
  %v3510 = vtanh.pop %v3508
  %v3511 = vtanh.pop %v3509
  %v3512 = vmul.f32 %v3501, %v3510
  %v3513 = vmul.f32 %v3503, %v3511
  %s3514 = smul.addr %s1958, 8
  %s3515 = scalar_lea.vmem [#allocation3], %s3514
  %v3516 = vld [vmem:[%s3515] sm:$0xff]
  %v3517 = vld [vmem:[%s3515 + $0x8] sm:$0xff]
  %v3518 = vld [vmem:[%s3515 + $0x10] sm:$0xff]
  %v3519 = vld [vmem:[%s3515 + $0x18] sm:$0xff]
  %v3520 = vld [vmem:[%s3515 + $0x20] sm:$0xff]
  %v3521 = vld [vmem:[%s3515 + $0x28] sm:$0xff]
  %v3522 = vld [vmem:[%s3515 + $0x30] sm:$0xff]
  %v3523 = vld [vmem:[%s3515 + $0x38] sm:$0xff]
  %3524 = vmatprep.subr.mxu0 %v1007
  %3525 = vmatpush1.msra.mxu0 %v1006
  %3526 = vmatprep.subr.mxu0 %v1011
  %3527 = vmatpush1.msra.mxu0 %v1010
  %3528 = vmatprep.subr.mxu0 %v1015
  %3529 = vmatpush1.msra.mxu0 %v1014
  %3530 = vmatprep.subr.mxu0 %v1019
  %3531 = vmatpush1.msra.mxu0 %v1018
  %3532 = vmatprep.subr.mxu0 %v1023
  %3533 = vmatpush1.msra.mxu0 %v1022
  %3534 = vmatprep.subr.mxu0 %v1027
  %3535 = vmatpush1.msra.mxu0 %v1026
  %3536 = vmatprep.subr.mxu0 %v1031
  %3537 = vmatpush1.msra.mxu0 %v1030
  %3538 = vmatprep.subr.mxu0 %v1035
  %3539 = vmatpush1.msra.mxu0 %v1034
  %3540 = vmatprep.subr.mxu0 %v1039
  %3541 = vmatpush1.msra.mxu0 %v1038
  %3542 = vmatprep.subr.mxu0 %v1043
  %3543 = vmatpush1.msra.mxu0 %v1042
  %3544 = vmatprep.subr.mxu0 %v1047
  %3545 = vmatpush1.msra.mxu0 %v1046
  %3546 = vmatprep.subr.mxu0 %v1051
  %3547 = vmatpush1.msra.mxu0 %v1050
  %3548 = vmatprep.subr.mxu0 %v1055
  %3549 = vmatpush1.msra.mxu0 %v1054
  %3550 = vmatprep.subr.mxu0 %v1059
  %3551 = vmatpush1.msra.mxu0 %v1058
  %3552 = vmatprep.subr.mxu0 %v1063
  %3553 = vmatpush1.msra.mxu0 %v1062
  %3554 = vmatprep.subr.mxu0 %v1067
  %3555 = vmatpush1.msra.mxu0 %v1066
  %3556 = vmatprep.subr.mxu0 0.0
  %3557 = vmatpush1.msra.mxu0 0.0
  %3558 = vmatprep.subr.mxu0 0.0
  %3559 = vmatpush1.msra.mxu0 0.0
  %3560 = vmatprep.subr.mxu0 0.0
  %3561 = vmatpush1.msra.mxu0 0.0
  %3562 = vmatprep.subr.mxu0 0.0
  %3563 = vmatpush1.msra.mxu0 0.0
  %3564 = vmatprep.subr.mxu0 0.0
  %3565 = vmatpush1.msra.mxu0 0.0
  %3566 = vmatprep.subr.mxu0 0.0
  %3567 = vmatpush1.msra.mxu0 0.0
  %3568 = vmatprep.subr.mxu0 0.0
  %3569 = vmatpush1.msra.mxu0 0.0
  %3570 = vmatprep.subr.mxu0 0.0
  %3571 = vmatpush1.msra.mxu0 0.0
  %3572 = vmatprep.subr.mxu0 0.0
  %3573 = vmatpush1.msra.mxu0 0.0
  %3574 = vmatprep.subr.mxu0 0.0
  %3575 = vmatpush1.msra.mxu0 0.0
  %3576 = vmatprep.subr.mxu0 0.0
  %3577 = vmatpush1.msra.mxu0 0.0
  %3578 = vmatprep.subr.mxu0 0.0
  %3579 = vmatpush1.msra.mxu0 0.0
  %3580 = vmatprep.subr.mxu0 0.0
  %3581 = vmatpush1.msra.mxu0 0.0
  %3582 = vmatprep.subr.mxu0 0.0
  %3583 = vmatpush1.msra.mxu0 0.0
  %3584 = vmatprep.subr.mxu0 0.0
  %3585 = vmatpush1.msra.mxu0 0.0
  %3586 = vmatprep.subr.mxu0 0.0
  %3587 = vmatpush1.msra.mxu0 0.0
  %3588 = vmatprep.mubr.f32.mxu0 0.0
  %3589 = vmatmul.mubr.f32.gmra.mrb[0].mxu0 %v3288
  %v3590 = vpop.f32.mrb[0].mxu0
  %v3591 = vadd.f32 0.0, %v3590
  %v3592 = vpop.f32.mrb[0].mxu0
  %v3593 = vadd.f32 0.0, %v3592
  %3594 = vmatprep.mubr.f32.mxu0 0.0
  %3595 = vmatmul.mubr.f32.gmra.mrb[0].mxu0 %v3289
  %v3596 = vpop.f32.mrb[0].mxu0
  %v3597 = vadd.f32 0.0, %v3596
  %v3598 = vpop.f32.mrb[0].mxu0
  %v3599 = vadd.f32 0.0, %v3598
  %3600 = vdwg.mxu0
  %3601 = vmatprep.subr.mxu0 %v1009
  %3602 = vmatpush1.msra.mxu0 %v1008
  %3603 = vmatprep.subr.mxu0 %v1013
  %3604 = vmatpush1.msra.mxu0 %v1012
  %3605 = vmatprep.subr.mxu0 %v1017
  %3606 = vmatpush1.msra.mxu0 %v1016
  %3607 = vmatprep.subr.mxu0 %v1021
  %3608 = vmatpush1.msra.mxu0 %v1020
  %3609 = vmatprep.subr.mxu0 %v1025
  %3610 = vmatpush1.msra.mxu0 %v1024
  %3611 = vmatprep.subr.mxu0 %v1029
  %3612 = vmatpush1.msra.mxu0 %v1028
  %3613 = vmatprep.subr.mxu0 %v1033
  %3614 = vmatpush1.msra.mxu0 %v1032
  %3615 = vmatprep.subr.mxu0 %v1037
  %3616 = vmatpush1.msra.mxu0 %v1036
  %3617 = vmatprep.subr.mxu0 %v1041
  %3618 = vmatpush1.msra.mxu0 %v1040
  %3619 = vmatprep.subr.mxu0 %v1045
  %3620 = vmatpush1.msra.mxu0 %v1044
  %3621 = vmatprep.subr.mxu0 %v1049
  %3622 = vmatpush1.msra.mxu0 %v1048
  %3623 = vmatprep.subr.mxu0 %v1053
  %3624 = vmatpush1.msra.mxu0 %v1052
  %3625 = vmatprep.subr.mxu0 %v1057
  %3626 = vmatpush1.msra.mxu0 %v1056
  %3627 = vmatprep.subr.mxu0 %v1061
  %3628 = vmatpush1.msra.mxu0 %v1060
  %3629 = vmatprep.subr.mxu0 %v1065
  %3630 = vmatpush1.msra.mxu0 %v1064
  %3631 = vmatprep.subr.mxu0 %v1069
  %3632 = vmatpush1.msra.mxu0 %v1068
  %3633 = vmatprep.subr.mxu0 0.0
  %3634 = vmatpush1.msra.mxu0 0.0
  %3635 = vmatprep.subr.mxu0 0.0
  %3636 = vmatpush1.msra.mxu0 0.0
  %3637 = vmatprep.subr.mxu0 0.0
  %3638 = vmatpush1.msra.mxu0 0.0
  %3639 = vmatprep.subr.mxu0 0.0
  %3640 = vmatpush1.msra.mxu0 0.0
  %3641 = vmatprep.subr.mxu0 0.0
  %3642 = vmatpush1.msra.mxu0 0.0
  %3643 = vmatprep.subr.mxu0 0.0
  %3644 = vmatpush1.msra.mxu0 0.0
  %3645 = vmatprep.subr.mxu0 0.0
  %3646 = vmatpush1.msra.mxu0 0.0
  %3647 = vmatprep.subr.mxu0 0.0
  %3648 = vmatpush1.msra.mxu0 0.0
  %3649 = vmatprep.subr.mxu0 0.0
  %3650 = vmatpush1.msra.mxu0 0.0
  %3651 = vmatprep.subr.mxu0 0.0
  %3652 = vmatpush1.msra.mxu0 0.0
  %3653 = vmatprep.subr.mxu0 0.0
  %3654 = vmatpush1.msra.mxu0 0.0
  %3655 = vmatprep.subr.mxu0 0.0
  %3656 = vmatpush1.msra.mxu0 0.0
  %3657 = vmatprep.subr.mxu0 0.0
  %3658 = vmatpush1.msra.mxu0 0.0
  %3659 = vmatprep.subr.mxu0 0.0
  %3660 = vmatpush1.msra.mxu0 0.0
  %3661 = vmatprep.subr.mxu0 0.0
  %3662 = vmatpush1.msra.mxu0 0.0
  %3663 = vmatprep.subr.mxu0 0.0
  %3664 = vmatpush1.msra.mxu0 0.0
  %3665 = vmatprep.mubr.f32.mxu0 0.0
  %3666 = vmatmul.mubr.f32.gmra.mrb[0].mxu0 %v3288
  %v3667 = vpop.f32.mrb[0].mxu0
  %v3668 = vadd.f32 0.0, %v3667
  %v3669 = vpop.f32.mrb[0].mxu0
  %v3670 = vadd.f32 0.0, %v3669
  %3671 = vmatprep.mubr.f32.mxu0 0.0
  %3672 = vmatmul.mubr.f32.gmra.mrb[0].mxu0 %v3289
  %v3673 = vpop.f32.mrb[0].mxu0
  %v3674 = vadd.f32 0.0, %v3673
  %v3675 = vpop.f32.mrb[0].mxu0
  %v3676 = vadd.f32 0.0, %v3675
  %3677 = vdwg.mxu0
  %v3678 = vadd.f32 %v3516, %v3591
  %v3679 = vadd.f32 %v3517, %v3593
  %v3680 = vadd.f32 %v3518, %v3668
  %v3681 = vadd.f32 %v3519, %v3670
  %v3682 = vadd.f32 %v3520, %v3597
  %v3683 = vadd.f32 %v3521, %v3599
  %v3684 = vadd.f32 %v3522, %v3674
  %v3685 = vadd.f32 %v3523, %v3676
  %v3686 = vxor.u32 %v3678, 2147483648
  %v3687 = vxor.u32 %v3682, 2147483648
  %v3688 = vmul.f32 %v3686, 1.442695
  %v3689 = vpow.pop %v3688
  %v3690 = vmul.f32 %v3687, 1.442695
  %v3691 = vpow.pop %v3690
  %v3692 = vadd.f32 %v3689, 1.0
  %v3693 = vadd.f32 %v3691, 1.0
  %v3694 = vrcp.pop %v3692
  %v3695 = vmul.f32 1.0, %v3694
  %v3696 = vrcp.pop %v3693
  %v3697 = vmul.f32 1.0, %v3696
  %v3698 = vxor.u32 %v3679, 2147483648
  %v3699 = vxor.u32 %v3683, 2147483648
  %v3700 = vmul.f32 %v3698, 1.442695
  %v3701 = vpow.pop %v3700
  %v3702 = vmul.f32 %v3699, 1.442695
  %v3703 = vpow.pop %v3702
  %v3704 = vadd.f32 %v3701, 1.0
  %v3705 = vadd.f32 %v3703, 1.0
  %v3706 = vrcp.pop %v3704
  %v3707 = vmul.f32 1.0, %v3706
  %v3708 = vrcp.pop %v3705
  %v3709 = vmul.f32 1.0, %v3708
  %v3710 = vtanh.pop %v3680
  %v3711 = vtanh.pop %v3684
  %v3712 = vxor.u32 %v3681, 2147483648
  %v3713 = vxor.u32 %v3685, 2147483648
  %v3714 = vmul.f32 %v3712, 1.442695
  %v3715 = vpow.pop %v3714
  %v3716 = vmul.f32 %v3713, 1.442695
  %v3717 = vpow.pop %v3716
  %v3718 = vadd.f32 %v3715, 1.0
  %v3719 = vadd.f32 %v3717, 1.0
  %v3720 = vrcp.pop %v3718
  %v3721 = vmul.f32 1.0, %v3720
  %v3722 = vrcp.pop %v3719
  %v3723 = vmul.f32 1.0, %v3722
  %v3724 = vmul.f32 %v3707, %v3284
  %v3725 = vmul.f32 %v3709, %v3285
  %v3726 = vmul.f32 %v3695, %v3710
  %v3727 = vmul.f32 %v3697, %v3711
  %v3728 = vadd.f32 %v3724, %v3726
  %v3729 = vadd.f32 %v3725, %v3727
  %v3730 = vtanh.pop %v3728
  %v3731 = vtanh.pop %v3729
  %v3732 = vmul.f32 %v3721, %v3730
  %v3733 = vmul.f32 %v3723, %v3731
  %v3734 = vmax.f32 %v3290, %v3512
  %v3735 = vmax.f32 %v3291, %v3513
  %v3736 = vmax.f32 %v3292, %v3732
  %v3737 = vmax.f32 %v3293, %v3733
  %s3738 = smul.addr %s1733, 8
  %s3739 = scalar_lea.vmem [#allocation2], %s3738
  %v3740 = vld [vmem:[%s3739] sm:$0xff]
  %v3741 = vld [vmem:[%s3739 + $0x8] sm:$0xff]
  %v3742 = vld [vmem:[%s3739 + $0x10] sm:$0xff]
  %v3743 = vld [vmem:[%s3739 + $0x18] sm:$0xff]
  %v3744 = vld [vmem:[%s3739 + $0x20] sm:$0xff]
  %v3745 = vld [vmem:[%s3739 + $0x28] sm:$0xff]
  %v3746 = vld [vmem:[%s3739 + $0x30] sm:$0xff]
  %v3747 = vld [vmem:[%s3739 + $0x38] sm:$0xff]
  %3748 = vmatprep.subr.mxu0 %v943
  %3749 = vmatpush1.msra.mxu0 %v942
  %3750 = vmatprep.subr.mxu0 %v947
  %3751 = vmatpush1.msra.mxu0 %v946
  %3752 = vmatprep.subr.mxu0 %v951
  %3753 = vmatpush1.msra.mxu0 %v950
  %3754 = vmatprep.subr.mxu0 %v955
  %3755 = vmatpush1.msra.mxu0 %v954
  %3756 = vmatprep.subr.mxu0 %v959
  %3757 = vmatpush1.msra.mxu0 %v958
  %3758 = vmatprep.subr.mxu0 %v963
  %3759 = vmatpush1.msra.mxu0 %v962
  %3760 = vmatprep.subr.mxu0 %v967
  %3761 = vmatpush1.msra.mxu0 %v966
  %3762 = vmatprep.subr.mxu0 %v971
  %3763 = vmatpush1.msra.mxu0 %v970
  %3764 = vmatprep.subr.mxu0 %v975
  %3765 = vmatpush1.msra.mxu0 %v974
  %3766 = vmatprep.subr.mxu0 %v979
  %3767 = vmatpush1.msra.mxu0 %v978
  %3768 = vmatprep.subr.mxu0 %v983
  %3769 = vmatpush1.msra.mxu0 %v982
  %3770 = vmatprep.subr.mxu0 %v987
  %3771 = vmatpush1.msra.mxu0 %v986
  %3772 = vmatprep.subr.mxu0 %v991
  %3773 = vmatpush1.msra.mxu0 %v990
  %3774 = vmatprep.subr.mxu0 %v995
  %3775 = vmatpush1.msra.mxu0 %v994
  %3776 = vmatprep.subr.mxu0 %v999
  %3777 = vmatpush1.msra.mxu0 %v998
  %3778 = vmatprep.subr.mxu0 %v1003
  %3779 = vmatpush1.msra.mxu0 %v1002
  %3780 = vmatprep.subr.mxu0 0.0
  %3781 = vmatpush1.msra.mxu0 0.0
  %3782 = vmatprep.subr.mxu0 0.0
  %3783 = vmatpush1.msra.mxu0 0.0
  %3784 = vmatprep.subr.mxu0 0.0
  %3785 = vmatpush1.msra.mxu0 0.0
  %3786 = vmatprep.subr.mxu0 0.0
  %3787 = vmatpush1.msra.mxu0 0.0
  %3788 = vmatprep.subr.mxu0 0.0
  %3789 = vmatpush1.msra.mxu0 0.0
  %3790 = vmatprep.subr.mxu0 0.0
  %3791 = vmatpush1.msra.mxu0 0.0
  %3792 = vmatprep.subr.mxu0 0.0
  %3793 = vmatpush1.msra.mxu0 0.0
  %3794 = vmatprep.subr.mxu0 0.0
  %3795 = vmatpush1.msra.mxu0 0.0
  %3796 = vmatprep.subr.mxu0 0.0
  %3797 = vmatpush1.msra.mxu0 0.0
  %3798 = vmatprep.subr.mxu0 0.0
  %3799 = vmatpush1.msra.mxu0 0.0
  %3800 = vmatprep.subr.mxu0 0.0
  %3801 = vmatpush1.msra.mxu0 0.0
  %3802 = vmatprep.subr.mxu0 0.0
  %3803 = vmatpush1.msra.mxu0 0.0
  %3804 = vmatprep.subr.mxu0 0.0
  %3805 = vmatpush1.msra.mxu0 0.0
  %3806 = vmatprep.subr.mxu0 0.0
  %3807 = vmatpush1.msra.mxu0 0.0
  %3808 = vmatprep.subr.mxu0 0.0
  %3809 = vmatpush1.msra.mxu0 0.0
  %3810 = vmatprep.subr.mxu0 0.0
  %3811 = vmatpush1.msra.mxu0 0.0
  %3812 = vmatprep.mubr.f32.mxu0 0.0
  %3813 = vmatmul.mubr.f32.gmra.mrb[0].mxu0 %v3512
  %v3814 = vpop.f32.mrb[0].mxu0
  %v3815 = vadd.f32 0.0, %v3814
  %v3816 = vpop.f32.mrb[0].mxu0
  %v3817 = vadd.f32 0.0, %v3816
  %3818 = vmatprep.mubr.f32.mxu0 0.0
  %3819 = vmatmul.mubr.f32.gmra.mrb[0].mxu0 %v3513
  %v3820 = vpop.f32.mrb[0].mxu0
  %v3821 = vadd.f32 0.0, %v3820
  %v3822 = vpop.f32.mrb[0].mxu0
  %v3823 = vadd.f32 0.0, %v3822
  %3824 = vdwg.mxu0
  %3825 = vmatprep.subr.mxu0 %v945
  %3826 = vmatpush1.msra.mxu0 %v944
  %3827 = vmatprep.subr.mxu0 %v949
  %3828 = vmatpush1.msra.mxu0 %v948
  %3829 = vmatprep.subr.mxu0 %v953
  %3830 = vmatpush1.msra.mxu0 %v952
  %3831 = vmatprep.subr.mxu0 %v957
  %3832 = vmatpush1.msra.mxu0 %v956
  %3833 = vmatprep.subr.mxu0 %v961
  %3834 = vmatpush1.msra.mxu0 %v960
  %3835 = vmatprep.subr.mxu0 %v965
  %3836 = vmatpush1.msra.mxu0 %v964
  %3837 = vmatprep.subr.mxu0 %v969
  %3838 = vmatpush1.msra.mxu0 %v968
  %3839 = vmatprep.subr.mxu0 %v973
  %3840 = vmatpush1.msra.mxu0 %v972
  %3841 = vmatprep.subr.mxu0 %v977
  %3842 = vmatpush1.msra.mxu0 %v976
  %3843 = vmatprep.subr.mxu0 %v981
  %3844 = vmatpush1.msra.mxu0 %v980
  %3845 = vmatprep.subr.mxu0 %v985
  %3846 = vmatpush1.msra.mxu0 %v984
  %3847 = vmatprep.subr.mxu0 %v989
  %3848 = vmatpush1.msra.mxu0 %v988
  %3849 = vmatprep.subr.mxu0 %v993
  %3850 = vmatpush1.msra.mxu0 %v992
  %3851 = vmatprep.subr.mxu0 %v997
  %3852 = vmatpush1.msra.mxu0 %v996
  %3853 = vmatprep.subr.mxu0 %v1001
  %3854 = vmatpush1.msra.mxu0 %v1000
  %3855 = vmatprep.subr.mxu0 %v1005
  %3856 = vmatpush1.msra.mxu0 %v1004
  %3857 = vmatprep.subr.mxu0 0.0
  %3858 = vmatpush1.msra.mxu0 0.0
  %3859 = vmatprep.subr.mxu0 0.0
  %3860 = vmatpush1.msra.mxu0 0.0
  %3861 = vmatprep.subr.mxu0 0.0
  %3862 = vmatpush1.msra.mxu0 0.0
  %3863 = vmatprep.subr.mxu0 0.0
  %3864 = vmatpush1.msra.mxu0 0.0
  %3865 = vmatprep.subr.mxu0 0.0
  %3866 = vmatpush1.msra.mxu0 0.0
  %3867 = vmatprep.subr.mxu0 0.0
  %3868 = vmatpush1.msra.mxu0 0.0
  %3869 = vmatprep.subr.mxu0 0.0
  %3870 = vmatpush1.msra.mxu0 0.0
  %3871 = vmatprep.subr.mxu0 0.0
  %3872 = vmatpush1.msra.mxu0 0.0
  %3873 = vmatprep.subr.mxu0 0.0
  %3874 = vmatpush1.msra.mxu0 0.0
  %3875 = vmatprep.subr.mxu0 0.0
  %3876 = vmatpush1.msra.mxu0 0.0
  %3877 = vmatprep.subr.mxu0 0.0
  %3878 = vmatpush1.msra.mxu0 0.0
  %3879 = vmatprep.subr.mxu0 0.0
  %3880 = vmatpush1.msra.mxu0 0.0
  %3881 = vmatprep.subr.mxu0 0.0
  %3882 = vmatpush1.msra.mxu0 0.0
  %3883 = vmatprep.subr.mxu0 0.0
  %3884 = vmatpush1.msra.mxu0 0.0
  %3885 = vmatprep.subr.mxu0 0.0
  %3886 = vmatpush1.msra.mxu0 0.0
  %3887 = vmatprep.subr.mxu0 0.0
  %3888 = vmatpush1.msra.mxu0 0.0
  %3889 = vmatprep.mubr.f32.mxu0 0.0
  %3890 = vmatmul.mubr.f32.gmra.mrb[0].mxu0 %v3512
  %v3891 = vpop.f32.mrb[0].mxu0
  %v3892 = vadd.f32 0.0, %v3891
  %v3893 = vpop.f32.mrb[0].mxu0
  %v3894 = vadd.f32 0.0, %v3893
  %3895 = vmatprep.mubr.f32.mxu0 0.0
  %3896 = vmatmul.mubr.f32.gmra.mrb[0].mxu0 %v3513
  %v3897 = vpop.f32.mrb[0].mxu0
  %v3898 = vadd.f32 0.0, %v3897
  %v3899 = vpop.f32.mrb[0].mxu0
  %v3900 = vadd.f32 0.0, %v3899
  %3901 = vdwg.mxu0
  %v3902 = vadd.f32 %v3740, %v3815
  %v3903 = vadd.f32 %v3741, %v3817
  %v3904 = vadd.f32 %v3742, %v3892
  %v3905 = vadd.f32 %v3743, %v3894
  %v3906 = vadd.f32 %v3744, %v3821
  %v3907 = vadd.f32 %v3745, %v3823
  %v3908 = vadd.f32 %v3746, %v3898
  %v3909 = vadd.f32 %v3747, %v3900
  %v3910 = vxor.u32 %v3902, 2147483648
  %v3911 = vxor.u32 %v3906, 2147483648
  %v3912 = vmul.f32 %v3910, 1.442695
  %v3913 = vpow.pop %v3912
  %v3914 = vmul.f32 %v3911, 1.442695
  %v3915 = vpow.pop %v3914
  %v3916 = vadd.f32 %v3913, 1.0
  %v3917 = vadd.f32 %v3915, 1.0
  %v3918 = vrcp.pop %v3916
  %v3919 = vmul.f32 1.0, %v3918
  %v3920 = vrcp.pop %v3917
  %v3921 = vmul.f32 1.0, %v3920
  %v3922 = vxor.u32 %v3903, 2147483648
  %v3923 = vxor.u32 %v3907, 2147483648
  %v3924 = vmul.f32 %v3922, 1.442695
  %v3925 = vpow.pop %v3924
  %v3926 = vmul.f32 %v3923, 1.442695
  %v3927 = vpow.pop %v3926
  %v3928 = vadd.f32 %v3925, 1.0
  %v3929 = vadd.f32 %v3927, 1.0
  %v3930 = vrcp.pop %v3928
  %v3931 = vmul.f32 1.0, %v3930
  %v3932 = vrcp.pop %v3929
  %v3933 = vmul.f32 1.0, %v3932
  %v3934 = vtanh.pop %v3904
  %v3935 = vtanh.pop %v3908
  %v3936 = vxor.u32 %v3905, 2147483648
  %v3937 = vxor.u32 %v3909, 2147483648
  %v3938 = vmul.f32 %v3936, 1.442695
  %v3939 = vpow.pop %v3938
  %v3940 = vmul.f32 %v3937, 1.442695
  %v3941 = vpow.pop %v3940
  %v3942 = vadd.f32 %v3939, 1.0
  %v3943 = vadd.f32 %v3941, 1.0
  %v3944 = vrcp.pop %v3942
  %v3945 = vmul.f32 1.0, %v3944
  %v3946 = vrcp.pop %v3943
  %v3947 = vmul.f32 1.0, %v3946
  %v3948 = vmul.f32 %v3931, %v3508
  %v3949 = vmul.f32 %v3933, %v3509
  %v3950 = vmul.f32 %v3919, %v3934
  %v3951 = vmul.f32 %v3921, %v3935
  %v3952 = vadd.f32 %v3948, %v3950
  %v3953 = vadd.f32 %v3949, %v3951
  %v3954 = vtanh.pop %v3952
  %v3955 = vtanh.pop %v3953
  %v3956 = vmul.f32 %v3945, %v3954
  %v3957 = vmul.f32 %v3947, %v3955
  %s3958 = smul.addr %s1512, 8
  %s3959 = scalar_lea.vmem [#allocation3], %s3958
  %v3960 = vld [vmem:[%s3959] sm:$0xff]
  %v3961 = vld [vmem:[%s3959 + $0x8] sm:$0xff]
  %v3962 = vld [vmem:[%s3959 + $0x10] sm:$0xff]
  %v3963 = vld [vmem:[%s3959 + $0x18] sm:$0xff]
  %v3964 = vld [vmem:[%s3959 + $0x20] sm:$0xff]
  %v3965 = vld [vmem:[%s3959 + $0x28] sm:$0xff]
  %v3966 = vld [vmem:[%s3959 + $0x30] sm:$0xff]
  %v3967 = vld [vmem:[%s3959 + $0x38] sm:$0xff]
  %3968 = vmatprep.subr.mxu0 %v1007
  %3969 = vmatpush1.msra.mxu0 %v1006
  %3970 = vmatprep.subr.mxu0 %v1011
  %3971 = vmatpush1.msra.mxu0 %v1010
  %3972 = vmatprep.subr.mxu0 %v1015
  %3973 = vmatpush1.msra.mxu0 %v1014
  %3974 = vmatprep.subr.mxu0 %v1019
  %3975 = vmatpush1.msra.mxu0 %v1018
  %3976 = vmatprep.subr.mxu0 %v1023
  %3977 = vmatpush1.msra.mxu0 %v1022
  %3978 = vmatprep.subr.mxu0 %v1027
  %3979 = vmatpush1.msra.mxu0 %v1026
  %3980 = vmatprep.subr.mxu0 %v1031
  %3981 = vmatpush1.msra.mxu0 %v1030
  %3982 = vmatprep.subr.mxu0 %v1035
  %3983 = vmatpush1.msra.mxu0 %v1034
  %3984 = vmatprep.subr.mxu0 %v1039
  %3985 = vmatpush1.msra.mxu0 %v1038
  %3986 = vmatprep.subr.mxu0 %v1043
  %3987 = vmatpush1.msra.mxu0 %v1042
  %3988 = vmatprep.subr.mxu0 %v1047
  %3989 = vmatpush1.msra.mxu0 %v1046
  %3990 = vmatprep.subr.mxu0 %v1051
  %3991 = vmatpush1.msra.mxu0 %v1050
  %3992 = vmatprep.subr.mxu0 %v1055
  %3993 = vmatpush1.msra.mxu0 %v1054
  %3994 = vmatprep.subr.mxu0 %v1059
  %3995 = vmatpush1.msra.mxu0 %v1058
  %3996 = vmatprep.subr.mxu0 %v1063
  %3997 = vmatpush1.msra.mxu0 %v1062
  %3998 = vmatprep.subr.mxu0 %v1067
  %3999 = vmatpush1.msra.mxu0 %v1066
  %4000 = vmatprep.subr.mxu0 0.0
  %4001 = vmatpush1.msra.mxu0 0.0
  %4002 = vmatprep.subr.mxu0 0.0
  %4003 = vmatpush1.msra.mxu0 0.0
  %4004 = vmatprep.subr.mxu0 0.0
  %4005 = vmatpush1.msra.mxu0 0.0
  %4006 = vmatprep.subr.mxu0 0.0
  %4007 = vmatpush1.msra.mxu0 0.0
  %4008 = vmatprep.subr.mxu0 0.0
  %4009 = vmatpush1.msra.mxu0 0.0
  %4010 = vmatprep.subr.mxu0 0.0
  %4011 = vmatpush1.msra.mxu0 0.0
  %4012 = vmatprep.subr.mxu0 0.0
  %4013 = vmatpush1.msra.mxu0 0.0
  %4014 = vmatprep.subr.mxu0 0.0
  %4015 = vmatpush1.msra.mxu0 0.0
  %4016 = vmatprep.subr.mxu0 0.0
  %4017 = vmatpush1.msra.mxu0 0.0
  %4018 = vmatprep.subr.mxu0 0.0
  %4019 = vmatpush1.msra.mxu0 0.0
  %4020 = vmatprep.subr.mxu0 0.0
  %4021 = vmatpush1.msra.mxu0 0.0
  %4022 = vmatprep.subr.mxu0 0.0
  %4023 = vmatpush1.msra.mxu0 0.0
  %4024 = vmatprep.subr.mxu0 0.0
  %4025 = vmatpush1.msra.mxu0 0.0
  %4026 = vmatprep.subr.mxu0 0.0
  %4027 = vmatpush1.msra.mxu0 0.0
  %4028 = vmatprep.subr.mxu0 0.0
  %4029 = vmatpush1.msra.mxu0 0.0
  %4030 = vmatprep.subr.mxu0 0.0
  %4031 = vmatpush1.msra.mxu0 0.0
  %4032 = vmatprep.mubr.f32.mxu0 0.0
  %4033 = vmatmul.mubr.f32.gmra.mrb[0].mxu0 %v3732
  %v4034 = vpop.f32.mrb[0].mxu0
  %v4035 = vadd.f32 0.0, %v4034
  %v4036 = vpop.f32.mrb[0].mxu0
  %v4037 = vadd.f32 0.0, %v4036
  %4038 = vmatprep.mubr.f32.mxu0 0.0
  %4039 = vmatmul.mubr.f32.gmra.mrb[0].mxu0 %v3733
  %v4040 = vpop.f32.mrb[0].mxu0
  %v4041 = vadd.f32 0.0, %v4040
  %v4042 = vpop.f32.mrb[0].mxu0
  %v4043 = vadd.f32 0.0, %v4042
  %4044 = vdwg.mxu0
  %4045 = vmatprep.subr.mxu0 %v1009
  %4046 = vmatpush1.msra.mxu0 %v1008
  %4047 = vmatprep.subr.mxu0 %v1013
  %4048 = vmatpush1.msra.mxu0 %v1012
  %4049 = vmatprep.subr.mxu0 %v1017
  %4050 = vmatpush1.msra.mxu0 %v1016
  %4051 = vmatprep.subr.mxu0 %v1021
  %4052 = vmatpush1.msra.mxu0 %v1020
  %4053 = vmatprep.subr.mxu0 %v1025
  %4054 = vmatpush1.msra.mxu0 %v1024
  %4055 = vmatprep.subr.mxu0 %v1029
  %4056 = vmatpush1.msra.mxu0 %v1028
  %4057 = vmatprep.subr.mxu0 %v1033
  %4058 = vmatpush1.msra.mxu0 %v1032
  %4059 = vmatprep.subr.mxu0 %v1037
  %4060 = vmatpush1.msra.mxu0 %v1036
  %4061 = vmatprep.subr.mxu0 %v1041
  %4062 = vmatpush1.msra.mxu0 %v1040
  %4063 = vmatprep.subr.mxu0 %v1045
  %4064 = vmatpush1.msra.mxu0 %v1044
  %4065 = vmatprep.subr.mxu0 %v1049
  %4066 = vmatpush1.msra.mxu0 %v1048
  %4067 = vmatprep.subr.mxu0 %v1053
  %4068 = vmatpush1.msra.mxu0 %v1052
  %4069 = vmatprep.subr.mxu0 %v1057
  %4070 = vmatpush1.msra.mxu0 %v1056
  %4071 = vmatprep.subr.mxu0 %v1061
  %4072 = vmatpush1.msra.mxu0 %v1060
  %4073 = vmatprep.subr.mxu0 %v1065
  %4074 = vmatpush1.msra.mxu0 %v1064
  %4075 = vmatprep.subr.mxu0 %v1069
  %4076 = vmatpush1.msra.mxu0 %v1068
  %4077 = vmatprep.subr.mxu0 0.0
  %4078 = vmatpush1.msra.mxu0 0.0
  %4079 = vmatprep.subr.mxu0 0.0
  %4080 = vmatpush1.msra.mxu0 0.0
  %4081 = vmatprep.subr.mxu0 0.0
  %4082 = vmatpush1.msra.mxu0 0.0
  %4083 = vmatprep.subr.mxu0 0.0
  %4084 = vmatpush1.msra.mxu0 0.0
  %4085 = vmatprep.subr.mxu0 0.0
  %4086 = vmatpush1.msra.mxu0 0.0
  %4087 = vmatprep.subr.mxu0 0.0
  %4088 = vmatpush1.msra.mxu0 0.0
  %4089 = vmatprep.subr.mxu0 0.0
  %4090 = vmatpush1.msra.mxu0 0.0
  %4091 = vmatprep.subr.mxu0 0.0
  %4092 = vmatpush1.msra.mxu0 0.0
  %4093 = vmatprep.subr.mxu0 0.0
  %4094 = vmatpush1.msra.mxu0 0.0
  %4095 = vmatprep.subr.mxu0 0.0
  %4096 = vmatpush1.msra.mxu0 0.0
  %4097 = vmatprep.subr.mxu0 0.0
  %4098 = vmatpush1.msra.mxu0 0.0
  %4099 = vmatprep.subr.mxu0 0.0
  %4100 = vmatpush1.msra.mxu0 0.0
  %4101 = vmatprep.subr.mxu0 0.0
  %4102 = vmatpush1.msra.mxu0 0.0
  %4103 = vmatprep.subr.mxu0 0.0
  %4104 = vmatpush1.msra.mxu0 0.0
  %4105 = vmatprep.subr.mxu0 0.0
  %4106 = vmatpush1.msra.mxu0 0.0
  %4107 = vmatprep.subr.mxu0 0.0
  %4108 = vmatpush1.msra.mxu0 0.0
  %4109 = vmatprep.mubr.f32.mxu0 0.0
  %4110 = vmatmul.mubr.f32.gmra.mrb[0].mxu0 %v3732
  %v4111 = vpop.f32.mrb[0].mxu0
  %v4112 = vadd.f32 0.0, %v4111
  %v4113 = vpop.f32.mrb[0].mxu0
  %v4114 = vadd.f32 0.0, %v4113
  %4115 = vmatprep.mubr.f32.mxu0 0.0
  %4116 = vmatmul.mubr.f32.gmra.mrb[0].mxu0 %v3733
  %v4117 = vpop.f32.mrb[0].mxu0
  %v4118 = vadd.f32 0.0, %v4117
  %v4119 = vpop.f32.mrb[0].mxu0
  %v4120 = vadd.f32 0.0, %v4119
  %4121 = vdwg.mxu0
  %v4122 = vadd.f32 %v3960, %v4035
  %v4123 = vadd.f32 %v3961, %v4037
  %v4124 = vadd.f32 %v3962, %v4112
  %v4125 = vadd.f32 %v3963, %v4114
  %v4126 = vadd.f32 %v3964, %v4041
  %v4127 = vadd.f32 %v3965, %v4043
  %v4128 = vadd.f32 %v3966, %v4118
  %v4129 = vadd.f32 %v3967, %v4120
  %v4130 = vxor.u32 %v4122, 2147483648
  %v4131 = vxor.u32 %v4126, 2147483648
  %v4132 = vmul.f32 %v4130, 1.442695
  %v4133 = vpow.pop %v4132
  %v4134 = vmul.f32 %v4131, 1.442695
  %v4135 = vpow.pop %v4134
  %v4136 = vadd.f32 %v4133, 1.0
  %v4137 = vadd.f32 %v4135, 1.0
  %v4138 = vrcp.pop %v4136
  %v4139 = vmul.f32 1.0, %v4138
  %v4140 = vrcp.pop %v4137
  %v4141 = vmul.f32 1.0, %v4140
  %v4142 = vxor.u32 %v4123, 2147483648
  %v4143 = vxor.u32 %v4127, 2147483648
  %v4144 = vmul.f32 %v4142, 1.442695
  %v4145 = vpow.pop %v4144
  %v4146 = vmul.f32 %v4143, 1.442695
  %v4147 = vpow.pop %v4146
  %v4148 = vadd.f32 %v4145, 1.0
  %v4149 = vadd.f32 %v4147, 1.0
  %v4150 = vrcp.pop %v4148
  %v4151 = vmul.f32 1.0, %v4150
  %v4152 = vrcp.pop %v4149
  %v4153 = vmul.f32 1.0, %v4152
  %v4154 = vtanh.pop %v4124
  %v4155 = vtanh.pop %v4128
  %v4156 = vxor.u32 %v4125, 2147483648
  %v4157 = vxor.u32 %v4129, 2147483648
  %v4158 = vmul.f32 %v4156, 1.442695
  %v4159 = vpow.pop %v4158
  %v4160 = vmul.f32 %v4157, 1.442695
  %v4161 = vpow.pop %v4160
  %v4162 = vadd.f32 %v4159, 1.0
  %v4163 = vadd.f32 %v4161, 1.0
  %v4164 = vrcp.pop %v4162
  %v4165 = vmul.f32 1.0, %v4164
  %v4166 = vrcp.pop %v4163
  %v4167 = vmul.f32 1.0, %v4166
  %v4168 = vmul.f32 %v4151, %v3728
  %v4169 = vmul.f32 %v4153, %v3729
  %v4170 = vmul.f32 %v4139, %v4154
  %v4171 = vmul.f32 %v4141, %v4155
  %v4172 = vadd.f32 %v4168, %v4170
  %v4173 = vadd.f32 %v4169, %v4171
  %v4174 = vtanh.pop %v4172
  %v4175 = vtanh.pop %v4173
  %v4176 = vmul.f32 %v4165, %v4174
  %v4177 = vmul.f32 %v4167, %v4175
  %v4178 = vmax.f32 %v3734, %v3956
  %v4179 = vmax.f32 %v3735, %v3957
  %v4180 = vmax.f32 %v3736, %v4176
  %v4181 = vmax.f32 %v3737, %v4177
  %s4182 = smul.addr %s1291, 8
  %s4183 = scalar_lea.vmem [#allocation2], %s4182
  %v4184 = vld [vmem:[%s4183] sm:$0xff]
  %v4185 = vld [vmem:[%s4183 + $0x8] sm:$0xff]
  %v4186 = vld [vmem:[%s4183 + $0x10] sm:$0xff]
  %v4187 = vld [vmem:[%s4183 + $0x18] sm:$0xff]
  %v4188 = vld [vmem:[%s4183 + $0x20] sm:$0xff]
  %v4189 = vld [vmem:[%s4183 + $0x28] sm:$0xff]
  %v4190 = vld [vmem:[%s4183 + $0x30] sm:$0xff]
  %v4191 = vld [vmem:[%s4183 + $0x38] sm:$0xff]
  %4192 = vmatprep.subr.mxu0 %v943
  %4193 = vmatpush1.msra.mxu0 %v942
  %4194 = vmatprep.subr.mxu0 %v947
  %4195 = vmatpush1.msra.mxu0 %v946
  %4196 = vmatprep.subr.mxu0 %v951
  %4197 = vmatpush1.msra.mxu0 %v950
  %4198 = vmatprep.subr.mxu0 %v955
  %4199 = vmatpush1.msra.mxu0 %v954
  %4200 = vmatprep.subr.mxu0 %v959
  %4201 = vmatpush1.msra.mxu0 %v958
  %4202 = vmatprep.subr.mxu0 %v963
  %4203 = vmatpush1.msra.mxu0 %v962
  %4204 = vmatprep.subr.mxu0 %v967
  %4205 = vmatpush1.msra.mxu0 %v966
  %4206 = vmatprep.subr.mxu0 %v971
  %4207 = vmatpush1.msra.mxu0 %v970
  %4208 = vmatprep.subr.mxu0 %v975
  %4209 = vmatpush1.msra.mxu0 %v974
  %4210 = vmatprep.subr.mxu0 %v979
  %4211 = vmatpush1.msra.mxu0 %v978
  %4212 = vmatprep.subr.mxu0 %v983
  %4213 = vmatpush1.msra.mxu0 %v982
  %4214 = vmatprep.subr.mxu0 %v987
  %4215 = vmatpush1.msra.mxu0 %v986
  %4216 = vmatprep.subr.mxu0 %v991
  %4217 = vmatpush1.msra.mxu0 %v990
  %4218 = vmatprep.subr.mxu0 %v995
  %4219 = vmatpush1.msra.mxu0 %v994
  %4220 = vmatprep.subr.mxu0 %v999
  %4221 = vmatpush1.msra.mxu0 %v998
  %4222 = vmatprep.subr.mxu0 %v1003
  %4223 = vmatpush1.msra.mxu0 %v1002
  %4224 = vmatprep.subr.mxu0 0.0
  %4225 = vmatpush1.msra.mxu0 0.0
  %4226 = vmatprep.subr.mxu0 0.0
  %4227 = vmatpush1.msra.mxu0 0.0
  %4228 = vmatprep.subr.mxu0 0.0
  %4229 = vmatpush1.msra.mxu0 0.0
  %4230 = vmatprep.subr.mxu0 0.0
  %4231 = vmatpush1.msra.mxu0 0.0
  %4232 = vmatprep.subr.mxu0 0.0
  %4233 = vmatpush1.msra.mxu0 0.0
  %4234 = vmatprep.subr.mxu0 0.0
  %4235 = vmatpush1.msra.mxu0 0.0
  %4236 = vmatprep.subr.mxu0 0.0
  %4237 = vmatpush1.msra.mxu0 0.0
  %4238 = vmatprep.subr.mxu0 0.0
  %4239 = vmatpush1.msra.mxu0 0.0
  %4240 = vmatprep.subr.mxu0 0.0
  %4241 = vmatpush1.msra.mxu0 0.0
  %4242 = vmatprep.subr.mxu0 0.0
  %4243 = vmatpush1.msra.mxu0 0.0
  %4244 = vmatprep.subr.mxu0 0.0
  %4245 = vmatpush1.msra.mxu0 0.0
  %4246 = vmatprep.subr.mxu0 0.0
  %4247 = vmatpush1.msra.mxu0 0.0
  %4248 = vmatprep.subr.mxu0 0.0
  %4249 = vmatpush1.msra.mxu0 0.0
  %4250 = vmatprep.subr.mxu0 0.0
  %4251 = vmatpush1.msra.mxu0 0.0
  %4252 = vmatprep.subr.mxu0 0.0
  %4253 = vmatpush1.msra.mxu0 0.0
  %4254 = vmatprep.subr.mxu0 0.0
  %4255 = vmatpush1.msra.mxu0 0.0
  %4256 = vmatprep.mubr.f32.mxu0 0.0
  %4257 = vmatmul.mubr.f32.gmra.mrb[0].mxu0 %v3956
  %v4258 = vpop.f32.mrb[0].mxu0
  %v4259 = vadd.f32 0.0, %v4258
  %v4260 = vpop.f32.mrb[0].mxu0
  %v4261 = vadd.f32 0.0, %v4260
  %4262 = vmatprep.mubr.f32.mxu0 0.0
  %4263 = vmatmul.mubr.f32.gmra.mrb[0].mxu0 %v3957
  %v4264 = vpop.f32.mrb[0].mxu0
  %v4265 = vadd.f32 0.0, %v4264
  %v4266 = vpop.f32.mrb[0].mxu0
  %v4267 = vadd.f32 0.0, %v4266
  %4268 = vdwg.mxu0
  %4269 = vmatprep.subr.mxu0 %v945
  %4270 = vmatpush1.msra.mxu0 %v944
  %4271 = vmatprep.subr.mxu0 %v949
  %4272 = vmatpush1.msra.mxu0 %v948
  %4273 = vmatprep.subr.mxu0 %v953
  %4274 = vmatpush1.msra.mxu0 %v952
  %4275 = vmatprep.subr.mxu0 %v957
  %4276 = vmatpush1.msra.mxu0 %v956
  %4277 = vmatprep.subr.mxu0 %v961
  %4278 = vmatpush1.msra.mxu0 %v960
  %4279 = vmatprep.subr.mxu0 %v965
  %4280 = vmatpush1.msra.mxu0 %v964
  %4281 = vmatprep.subr.mxu0 %v969
  %4282 = vmatpush1.msra.mxu0 %v968
  %4283 = vmatprep.subr.mxu0 %v973
  %4284 = vmatpush1.msra.mxu0 %v972
  %4285 = vmatprep.subr.mxu0 %v977
  %4286 = vmatpush1.msra.mxu0 %v976
  %4287 = vmatprep.subr.mxu0 %v981
  %4288 = vmatpush1.msra.mxu0 %v980
  %4289 = vmatprep.subr.mxu0 %v985
  %4290 = vmatpush1.msra.mxu0 %v984
  %4291 = vmatprep.subr.mxu0 %v989
  %4292 = vmatpush1.msra.mxu0 %v988
  %4293 = vmatprep.subr.mxu0 %v993
  %4294 = vmatpush1.msra.mxu0 %v992
  %4295 = vmatprep.subr.mxu0 %v997
  %4296 = vmatpush1.msra.mxu0 %v996
  %4297 = vmatprep.subr.mxu0 %v1001
  %4298 = vmatpush1.msra.mxu0 %v1000
  %4299 = vmatprep.subr.mxu0 %v1005
  %4300 = vmatpush1.msra.mxu0 %v1004
  %4301 = vmatprep.subr.mxu0 0.0
  %4302 = vmatpush1.msra.mxu0 0.0
  %4303 = vmatprep.subr.mxu0 0.0
  %4304 = vmatpush1.msra.mxu0 0.0
  %4305 = vmatprep.subr.mxu0 0.0
  %4306 = vmatpush1.msra.mxu0 0.0
  %4307 = vmatprep.subr.mxu0 0.0
  %4308 = vmatpush1.msra.mxu0 0.0
  %4309 = vmatprep.subr.mxu0 0.0
  %4310 = vmatpush1.msra.mxu0 0.0
  %4311 = vmatprep.subr.mxu0 0.0
  %4312 = vmatpush1.msra.mxu0 0.0
  %4313 = vmatprep.subr.mxu0 0.0
  %4314 = vmatpush1.msra.mxu0 0.0
  %4315 = vmatprep.subr.mxu0 0.0
  %4316 = vmatpush1.msra.mxu0 0.0
  %4317 = vmatprep.subr.mxu0 0.0
  %4318 = vmatpush1.msra.mxu0 0.0
  %4319 = vmatprep.subr.mxu0 0.0
  %4320 = vmatpush1.msra.mxu0 0.0
  %4321 = vmatprep.subr.mxu0 0.0
  %4322 = vmatpush1.msra.mxu0 0.0
  %4323 = vmatprep.subr.mxu0 0.0
  %4324 = vmatpush1.msra.mxu0 0.0
  %4325 = vmatprep.subr.mxu0 0.0
  %4326 = vmatpush1.msra.mxu0 0.0
  %4327 = vmatprep.subr.mxu0 0.0
  %4328 = vmatpush1.msra.mxu0 0.0
  %4329 = vmatprep.subr.mxu0 0.0
  %4330 = vmatpush1.msra.mxu0 0.0
  %4331 = vmatprep.subr.mxu0 0.0
  %4332 = vmatpush1.msra.mxu0 0.0
  %4333 = vmatprep.mubr.f32.mxu0 0.0
  %4334 = vmatmul.mubr.f32.gmra.mrb[0].mxu0 %v3956
  %v4335 = vpop.f32.mrb[0].mxu0
  %v4336 = vadd.f32 0.0, %v4335
  %v4337 = vpop.f32.mrb[0].mxu0
  %v4338 = vadd.f32 0.0, %v4337
  %4339 = vmatprep.mubr.f32.mxu0 0.0
  %4340 = vmatmul.mubr.f32.gmra.mrb[0].mxu0 %v3957
  %v4341 = vpop.f32.mrb[0].mxu0
  %v4342 = vadd.f32 0.0, %v4341
  %v4343 = vpop.f32.mrb[0].mxu0
  %v4344 = vadd.f32 0.0, %v4343
  %4345 = vdwg.mxu0
  %v4346 = vadd.f32 %v4184, %v4259
  %v4347 = vadd.f32 %v4185, %v4261
  %v4348 = vadd.f32 %v4186, %v4336
  %v4349 = vadd.f32 %v4187, %v4338
  %v4350 = vadd.f32 %v4188, %v4265
  %v4351 = vadd.f32 %v4189, %v4267
  %v4352 = vadd.f32 %v4190, %v4342
  %v4353 = vadd.f32 %v4191, %v4344
  %v4354 = vxor.u32 %v4346, 2147483648
  %v4355 = vxor.u32 %v4350, 2147483648
  %v4356 = vmul.f32 %v4354, 1.442695
  %v4357 = vpow.pop %v4356
  %v4358 = vmul.f32 %v4355, 1.442695
  %v4359 = vpow.pop %v4358
  %v4360 = vadd.f32 %v4357, 1.0
  %v4361 = vadd.f32 %v4359, 1.0
  %v4362 = vrcp.pop %v4360
  %v4363 = vmul.f32 1.0, %v4362
  %v4364 = vrcp.pop %v4361
  %v4365 = vmul.f32 1.0, %v4364
  %v4366 = vxor.u32 %v4347, 2147483648
  %v4367 = vxor.u32 %v4351, 2147483648
  %v4368 = vmul.f32 %v4366, 1.442695
  %v4369 = vpow.pop %v4368
  %v4370 = vmul.f32 %v4367, 1.442695
  %v4371 = vpow.pop %v4370
  %v4372 = vadd.f32 %v4369, 1.0
  %v4373 = vadd.f32 %v4371, 1.0
  %v4374 = vrcp.pop %v4372
  %v4375 = vmul.f32 1.0, %v4374
  %v4376 = vrcp.pop %v4373
  %v4377 = vmul.f32 1.0, %v4376
  %v4378 = vtanh.pop %v4348
  %v4379 = vtanh.pop %v4352
  %v4380 = vxor.u32 %v4349, 2147483648
  %v4381 = vxor.u32 %v4353, 2147483648
  %v4382 = vmul.f32 %v4380, 1.442695
  %v4383 = vpow.pop %v4382
  %v4384 = vmul.f32 %v4381, 1.442695
  %v4385 = vpow.pop %v4384
  %v4386 = vadd.f32 %v4383, 1.0
  %v4387 = vadd.f32 %v4385, 1.0
  %v4388 = vrcp.pop %v4386
  %v4389 = vmul.f32 1.0, %v4388
  %v4390 = vrcp.pop %v4387
  %v4391 = vmul.f32 1.0, %v4390
  %v4392 = vmul.f32 %v4375, %v3952
  %v4393 = vmul.f32 %v4377, %v3953
  %v4394 = vmul.f32 %v4363, %v4378
  %v4395 = vmul.f32 %v4365, %v4379
  %v4396 = vadd.f32 %v4392, %v4394
  %v4397 = vadd.f32 %v4393, %v4395
  %v4398 = vtanh.pop %v4396
  %v4399 = vtanh.pop %v4397
  %v4400 = vmul.f32 %v4389, %v4398
  %v4401 = vmul.f32 %v4391, %v4399
  %s4402 = smul.addr %s1070, 8
  %s4403 = scalar_lea.vmem [#allocation3], %s4402
  %v4404 = vld [vmem:[%s4403] sm:$0xff]
  %v4405 = vld [vmem:[%s4403 + $0x8] sm:$0xff]
  %v4406 = vld [vmem:[%s4403 + $0x10] sm:$0xff]
  %v4407 = vld [vmem:[%s4403 + $0x18] sm:$0xff]
  %v4408 = vld [vmem:[%s4403 + $0x20] sm:$0xff]
  %v4409 = vld [vmem:[%s4403 + $0x28] sm:$0xff]
  %v4410 = vld [vmem:[%s4403 + $0x30] sm:$0xff]
  %v4411 = vld [vmem:[%s4403 + $0x38] sm:$0xff]
  %4412 = vmatprep.subr.mxu0 %v1007
  %4413 = vmatpush1.msra.mxu0 %v1006
  %4414 = vmatprep.subr.mxu0 %v1011
  %4415 = vmatpush1.msra.mxu0 %v1010
  %4416 = vmatprep.subr.mxu0 %v1015
  %4417 = vmatpush1.msra.mxu0 %v1014
  %4418 = vmatprep.subr.mxu0 %v1019
  %4419 = vmatpush1.msra.mxu0 %v1018
  %4420 = vmatprep.subr.mxu0 %v1023
  %4421 = vmatpush1.msra.mxu0 %v1022
  %4422 = vmatprep.subr.mxu0 %v1027
  %4423 = vmatpush1.msra.mxu0 %v1026
  %4424 = vmatprep.subr.mxu0 %v1031
  %4425 = vmatpush1.msra.mxu0 %v1030
  %4426 = vmatprep.subr.mxu0 %v1035
  %4427 = vmatpush1.msra.mxu0 %v1034
  %4428 = vmatprep.subr.mxu0 %v1039
  %4429 = vmatpush1.msra.mxu0 %v1038
  %4430 = vmatprep.subr.mxu0 %v1043
  %4431 = vmatpush1.msra.mxu0 %v1042
  %4432 = vmatprep.subr.mxu0 %v1047
  %4433 = vmatpush1.msra.mxu0 %v1046
  %4434 = vmatprep.subr.mxu0 %v1051
  %4435 = vmatpush1.msra.mxu0 %v1050
  %4436 = vmatprep.subr.mxu0 %v1055
  %4437 = vmatpush1.msra.mxu0 %v1054
  %4438 = vmatprep.subr.mxu0 %v1059
  %4439 = vmatpush1.msra.mxu0 %v1058
  %4440 = vmatprep.subr.mxu0 %v1063
  %4441 = vmatpush1.msra.mxu0 %v1062
  %4442 = vmatprep.subr.mxu0 %v1067
  %4443 = vmatpush1.msra.mxu0 %v1066
  %4444 = vmatprep.subr.mxu0 0.0
  %4445 = vmatpush1.msra.mxu0 0.0
  %4446 = vmatprep.subr.mxu0 0.0
  %4447 = vmatpush1.msra.mxu0 0.0
  %4448 = vmatprep.subr.mxu0 0.0
  %4449 = vmatpush1.msra.mxu0 0.0
  %4450 = vmatprep.subr.mxu0 0.0
  %4451 = vmatpush1.msra.mxu0 0.0
  %4452 = vmatprep.subr.mxu0 0.0
  %4453 = vmatpush1.msra.mxu0 0.0
  %4454 = vmatprep.subr.mxu0 0.0
  %4455 = vmatpush1.msra.mxu0 0.0
  %4456 = vmatprep.subr.mxu0 0.0
  %4457 = vmatpush1.msra.mxu0 0.0
  %4458 = vmatprep.subr.mxu0 0.0
  %4459 = vmatpush1.msra.mxu0 0.0
  %4460 = vmatprep.subr.mxu0 0.0
  %4461 = vmatpush1.msra.mxu0 0.0
  %4462 = vmatprep.subr.mxu0 0.0
  %4463 = vmatpush1.msra.mxu0 0.0
  %4464 = vmatprep.subr.mxu0 0.0
  %4465 = vmatpush1.msra.mxu0 0.0
  %4466 = vmatprep.subr.mxu0 0.0
  %4467 = vmatpush1.msra.mxu0 0.0
  %4468 = vmatprep.subr.mxu0 0.0
  %4469 = vmatpush1.msra.mxu0 0.0
  %4470 = vmatprep.subr.mxu0 0.0
  %4471 = vmatpush1.msra.mxu0 0.0
  %4472 = vmatprep.subr.mxu0 0.0
  %4473 = vmatpush1.msra.mxu0 0.0
  %4474 = vmatprep.subr.mxu0 0.0
  %4475 = vmatpush1.msra.mxu0 0.0
  %4476 = vmatprep.mubr.f32.mxu0 0.0
  %4477 = vmatmul.mubr.f32.gmra.mrb[0].mxu0 %v4176
  %v4478 = vpop.f32.mrb[0].mxu0
  %v4479 = vadd.f32 0.0, %v4478
  %v4480 = vpop.f32.mrb[0].mxu0
  %v4481 = vadd.f32 0.0, %v4480
  %4482 = vmatprep.mubr.f32.mxu0 0.0
  %4483 = vmatmul.mubr.f32.gmra.mrb[0].mxu0 %v4177
  %v4484 = vpop.f32.mrb[0].mxu0
  %v4485 = vadd.f32 0.0, %v4484
  %v4486 = vpop.f32.mrb[0].mxu0
  %v4487 = vadd.f32 0.0, %v4486
  %4488 = vdwg.mxu0
  %4489 = vmatprep.subr.mxu0 %v1009
  %4490 = vmatpush1.msra.mxu0 %v1008
  %4491 = vmatprep.subr.mxu0 %v1013
  %4492 = vmatpush1.msra.mxu0 %v1012
  %4493 = vmatprep.subr.mxu0 %v1017
  %4494 = vmatpush1.msra.mxu0 %v1016
  %4495 = vmatprep.subr.mxu0 %v1021
  %4496 = vmatpush1.msra.mxu0 %v1020
  %4497 = vmatprep.subr.mxu0 %v1025
  %4498 = vmatpush1.msra.mxu0 %v1024
  %4499 = vmatprep.subr.mxu0 %v1029
  %4500 = vmatpush1.msra.mxu0 %v1028
  %4501 = vmatprep.subr.mxu0 %v1033
  %4502 = vmatpush1.msra.mxu0 %v1032
  %4503 = vmatprep.subr.mxu0 %v1037
  %4504 = vmatpush1.msra.mxu0 %v1036
  %4505 = vmatprep.subr.mxu0 %v1041
  %4506 = vmatpush1.msra.mxu0 %v1040
  %4507 = vmatprep.subr.mxu0 %v1045
  %4508 = vmatpush1.msra.mxu0 %v1044
  %4509 = vmatprep.subr.mxu0 %v1049
  %4510 = vmatpush1.msra.mxu0 %v1048
  %4511 = vmatprep.subr.mxu0 %v1053
  %4512 = vmatpush1.msra.mxu0 %v1052
  %4513 = vmatprep.subr.mxu0 %v1057
  %4514 = vmatpush1.msra.mxu0 %v1056
  %4515 = vmatprep.subr.mxu0 %v1061
  %4516 = vmatpush1.msra.mxu0 %v1060
  %4517 = vmatprep.subr.mxu0 %v1065
  %4518 = vmatpush1.msra.mxu0 %v1064
  %4519 = vmatprep.subr.mxu0 %v1069
  %4520 = vmatpush1.msra.mxu0 %v1068
  %4521 = vmatprep.subr.mxu0 0.0
  %4522 = vmatpush1.msra.mxu0 0.0
  %4523 = vmatprep.subr.mxu0 0.0
  %4524 = vmatpush1.msra.mxu0 0.0
  %4525 = vmatprep.subr.mxu0 0.0
  %4526 = vmatpush1.msra.mxu0 0.0
  %4527 = vmatprep.subr.mxu0 0.0
  %4528 = vmatpush1.msra.mxu0 0.0
  %4529 = vmatprep.subr.mxu0 0.0
  %4530 = vmatpush1.msra.mxu0 0.0
  %4531 = vmatprep.subr.mxu0 0.0
  %4532 = vmatpush1.msra.mxu0 0.0
  %4533 = vmatprep.subr.mxu0 0.0
  %4534 = vmatpush1.msra.mxu0 0.0
  %4535 = vmatprep.subr.mxu0 0.0
  %4536 = vmatpush1.msra.mxu0 0.0
  %4537 = vmatprep.subr.mxu0 0.0
  %4538 = vmatpush1.msra.mxu0 0.0
  %4539 = vmatprep.subr.mxu0 0.0
  %4540 = vmatpush1.msra.mxu0 0.0
  %4541 = vmatprep.subr.mxu0 0.0
  %4542 = vmatpush1.msra.mxu0 0.0
  %4543 = vmatprep.subr.mxu0 0.0
  %4544 = vmatpush1.msra.mxu0 0.0
  %4545 = vmatprep.subr.mxu0 0.0
  %4546 = vmatpush1.msra.mxu0 0.0
  %4547 = vmatprep.subr.mxu0 0.0
  %4548 = vmatpush1.msra.mxu0 0.0
  %4549 = vmatprep.subr.mxu0 0.0
  %4550 = vmatpush1.msra.mxu0 0.0
  %4551 = vmatprep.subr.mxu0 0.0
  %4552 = vmatpush1.msra.mxu0 0.0
  %4553 = vmatprep.mubr.f32.mxu0 0.0
  %4554 = vmatmul.mubr.f32.gmra.mrb[0].mxu0 %v4176
  %v4555 = vpop.f32.mrb[0].mxu0
  %v4556 = vadd.f32 0.0, %v4555
  %v4557 = vpop.f32.mrb[0].mxu0
  %v4558 = vadd.f32 0.0, %v4557
  %4559 = vmatprep.mubr.f32.mxu0 0.0
  %4560 = vmatmul.mubr.f32.gmra.mrb[0].mxu0 %v4177
  %v4561 = vpop.f32.mrb[0].mxu0
  %v4562 = vadd.f32 0.0, %v4561
  %v4563 = vpop.f32.mrb[0].mxu0
  %v4564 = vadd.f32 0.0, %v4563
  %4565 = vdwg.mxu0
  %v4566 = vadd.f32 %v4404, %v4479
  %v4567 = vadd.f32 %v4405, %v4481
  %v4568 = vadd.f32 %v4406, %v4556
  %v4569 = vadd.f32 %v4407, %v4558
  %v4570 = vadd.f32 %v4408, %v4485
  %v4571 = vadd.f32 %v4409, %v4487
  %v4572 = vadd.f32 %v4410, %v4562
  %v4573 = vadd.f32 %v4411, %v4564
  %v4574 = vxor.u32 %v4566, 2147483648
  %v4575 = vxor.u32 %v4570, 2147483648
  %v4576 = vmul.f32 %v4574, 1.442695
  %v4577 = vpow.pop %v4576
  %v4578 = vmul.f32 %v4575, 1.442695
  %v4579 = vpow.pop %v4578
  %v4580 = vadd.f32 %v4577, 1.0
  %v4581 = vadd.f32 %v4579, 1.0
  %v4582 = vrcp.pop %v4580
  %v4583 = vmul.f32 1.0, %v4582
  %v4584 = vrcp.pop %v4581
  %v4585 = vmul.f32 1.0, %v4584
  %v4586 = vxor.u32 %v4567, 2147483648
  %v4587 = vxor.u32 %v4571, 2147483648
  %v4588 = vmul.f32 %v4586, 1.442695
  %v4589 = vpow.pop %v4588
  %v4590 = vmul.f32 %v4587, 1.442695
  %v4591 = vpow.pop %v4590
  %v4592 = vadd.f32 %v4589, 1.0
  %v4593 = vadd.f32 %v4591, 1.0
  %v4594 = vrcp.pop %v4592
  %v4595 = vmul.f32 1.0, %v4594
  %v4596 = vrcp.pop %v4593
  %v4597 = vmul.f32 1.0, %v4596
  %v4598 = vtanh.pop %v4568
  %v4599 = vtanh.pop %v4572
  %v4600 = vxor.u32 %v4569, 2147483648
  %v4601 = vxor.u32 %v4573, 2147483648
  %v4602 = vmul.f32 %v4600, 1.442695
  %v4603 = vpow.pop %v4602
  %v4604 = vmul.f32 %v4601, 1.442695
  %v4605 = vpow.pop %v4604
  %v4606 = vadd.f32 %v4603, 1.0
  %v4607 = vadd.f32 %v4605, 1.0
  %v4608 = vrcp.pop %v4606
  %v4609 = vmul.f32 1.0, %v4608
  %v4610 = vrcp.pop %v4607
  %v4611 = vmul.f32 1.0, %v4610
  %v4612 = vmul.f32 %v4595, %v4172
  %v4613 = vmul.f32 %v4597, %v4173
  %v4614 = vmul.f32 %v4583, %v4598
  %v4615 = vmul.f32 %v4585, %v4599
  %v4616 = vadd.f32 %v4612, %v4614
  %v4617 = vadd.f32 %v4613, %v4615
  %v4618 = vtanh.pop %v4616
  %v4619 = vtanh.pop %v4617
  %v4620 = vmul.f32 %v4609, %v4618
  %v4621 = vmul.f32 %v4611, %v4619
  %v4622 = vmax.f32 %v4178, %v4400
  %v4623 = vmax.f32 %v4179, %v4401
  %v4624 = vmax.f32 %v4180, %v4620
  %v4625 = vmax.f32 %v4181, %v4621
  %v4626 = vld [vmem:[%s5] sm:$0xff]
  %v4627 = vld [vmem:[%s5 + $0x8] sm:$0xff]
  %v4628 = vld [vmem:[%s5 + $0x10] sm:$0xff]
  %v4629 = vld [vmem:[%s5 + $0x18] sm:$0xff]
  %v4630 = vld [vmem:[%s5 + $0x20] sm:$0xff]
  %v4631 = vld [vmem:[%s5 + $0x28] sm:$0xff]
  %v4632 = vld [vmem:[%s5 + $0x30] sm:$0xff]
  %v4633 = vld [vmem:[%s5 + $0x38] sm:$0xff]
  %v4634 = vld [vmem:[%s5 + $0x40] sm:$0xff]
  %v4635 = vld [vmem:[%s5 + $0x48] sm:$0xff]
  %v4636 = vld [vmem:[%s5 + $0x50] sm:$0xff]
  %v4637 = vld [vmem:[%s5 + $0x58] sm:$0xff]
  %v4638 = vld [vmem:[%s5 + $0x60] sm:$0xff]
  %v4639 = vld [vmem:[%s5 + $0x68] sm:$0xff]
  %v4640 = vld [vmem:[%s5 + $0x70] sm:$0xff]
  %v4641 = vld [vmem:[%s5 + $0x78] sm:$0xff]
  %v4642 = vld [vmem:[%s5 + $0x80] sm:$0xff]
  %v4643 = vld [vmem:[%s5 + $0x88] sm:$0xff]
  %v4644 = vld [vmem:[%s5 + $0x90] sm:$0xff]
  %v4645 = vld [vmem:[%s5 + $0x98] sm:$0xff]
  %v4646 = vld [vmem:[%s5 + $0xa0] sm:$0xff]
  %v4647 = vld [vmem:[%s5 + $0xa8] sm:$0xff]
  %v4648 = vld [vmem:[%s5 + $0xb0] sm:$0xff]
  %v4649 = vld [vmem:[%s5 + $0xb8] sm:$0xff]
  %v4650 = vld [vmem:[%s5 + $0xc0] sm:$0xff]
  %v4651 = vld [vmem:[%s5 + $0xc8] sm:$0xff]
  %v4652 = vld [vmem:[%s5 + $0xd0] sm:$0xff]
  %v4653 = vld [vmem:[%s5 + $0xd8] sm:$0xff]
  %v4654 = vld [vmem:[%s5 + $0xe0] sm:$0xff]
  %v4655 = vld [vmem:[%s5 + $0xe8] sm:$0xff]
  %v4656 = vld [vmem:[%s5 + $0xf0] sm:$0xff]
  %v4657 = vld [vmem:[%s5 + $0xf8] sm:$0xff]
  %v4658 = vld [vmem:[%s6] sm:$0xff]
  %v4659 = vld [vmem:[%s6 + $0x8] sm:$0xff]
  %v4660 = vld [vmem:[%s6 + $0x10] sm:$0xff]
  %v4661 = vld [vmem:[%s6 + $0x18] sm:$0xff]
  %v4662 = vld [vmem:[%s6 + $0x20] sm:$0xff]
  %v4663 = vld [vmem:[%s6 + $0x28] sm:$0xff]
  %v4664 = vld [vmem:[%s6 + $0x30] sm:$0xff]
  %v4665 = vld [vmem:[%s6 + $0x38] sm:$0xff]
  %v4666 = vld [vmem:[%s6 + $0x40] sm:$0xff]
  %v4667 = vld [vmem:[%s6 + $0x48] sm:$0xff]
  %v4668 = vld [vmem:[%s6 + $0x50] sm:$0xff]
  %v4669 = vld [vmem:[%s6 + $0x58] sm:$0xff]
  %v4670 = vld [vmem:[%s6 + $0x60] sm:$0xff]
  %v4671 = vld [vmem:[%s6 + $0x68] sm:$0xff]
  %v4672 = vld [vmem:[%s6 + $0x70] sm:$0xff]
  %v4673 = vld [vmem:[%s6 + $0x78] sm:$0xff]
  %v4674 = vld [vmem:[%s6 + $0x80] sm:$0xff]
  %v4675 = vld [vmem:[%s6 + $0x88] sm:$0xff]
  %v4676 = vld [vmem:[%s6 + $0x90] sm:$0xff]
  %v4677 = vld [vmem:[%s6 + $0x98] sm:$0xff]
  %v4678 = vld [vmem:[%s6 + $0xa0] sm:$0xff]
  %v4679 = vld [vmem:[%s6 + $0xa8] sm:$0xff]
  %v4680 = vld [vmem:[%s6 + $0xb0] sm:$0xff]
  %v4681 = vld [vmem:[%s6 + $0xb8] sm:$0xff]
  %v4682 = vld [vmem:[%s6 + $0xc0] sm:$0xff]
  %v4683 = vld [vmem:[%s6 + $0xc8] sm:$0xff]
  %v4684 = vld [vmem:[%s6 + $0xd0] sm:$0xff]
  %v4685 = vld [vmem:[%s6 + $0xd8] sm:$0xff]
  %v4686 = vld [vmem:[%s6 + $0xe0] sm:$0xff]
  %v4687 = vld [vmem:[%s6 + $0xe8] sm:$0xff]
  %v4688 = vld [vmem:[%s6 + $0xf0] sm:$0xff]
  %v4689 = vld [vmem:[%s6 + $0xf8] sm:$0xff]
  %4690 = vmatprep.subr.mxu0 0.0
  %4691 = vmatpush1.msra.mxu0 %v4658
  %4692 = vmatprep.subr.mxu0 0.0
  %4693 = vmatpush1.msra.mxu0 %v4659
  %4694 = vmatprep.subr.mxu0 0.0
  %4695 = vmatpush1.msra.mxu0 %v4660
  %4696 = vmatprep.subr.mxu0 0.0
  %4697 = vmatpush1.msra.mxu0 %v4661
  %4698 = vmatprep.subr.mxu0 0.0
  %4699 = vmatpush1.msra.mxu0 %v4662
  %4700 = vmatprep.subr.mxu0 0.0
  %4701 = vmatpush1.msra.mxu0 %v4663
  %4702 = vmatprep.subr.mxu0 0.0
  %4703 = vmatpush1.msra.mxu0 %v4664
  %4704 = vmatprep.subr.mxu0 0.0
  %4705 = vmatpush1.msra.mxu0 %v4665
  %4706 = vmatprep.subr.mxu0 0.0
  %4707 = vmatpush1.msra.mxu0 %v4666
  %4708 = vmatprep.subr.mxu0 0.0
  %4709 = vmatpush1.msra.mxu0 %v4667
  %4710 = vmatprep.subr.mxu0 0.0
  %4711 = vmatpush1.msra.mxu0 %v4668
  %4712 = vmatprep.subr.mxu0 0.0
  %4713 = vmatpush1.msra.mxu0 %v4669
  %4714 = vmatprep.subr.mxu0 0.0
  %4715 = vmatpush1.msra.mxu0 %v4670
  %4716 = vmatprep.subr.mxu0 0.0
  %4717 = vmatpush1.msra.mxu0 %v4671
  %4718 = vmatprep.subr.mxu0 0.0
  %4719 = vmatpush1.msra.mxu0 %v4672
  %4720 = vmatprep.subr.mxu0 0.0
  %4721 = vmatpush1.msra.mxu0 %v4673
  %4722 = vmatprep.subr.mxu0 0.0
  %4723 = vmatpush1.msra.mxu0 %v4674
  %4724 = vmatprep.subr.mxu0 0.0
  %4725 = vmatpush1.msra.mxu0 %v4675
  %4726 = vmatprep.subr.mxu0 0.0
  %4727 = vmatpush1.msra.mxu0 %v4676
  %4728 = vmatprep.subr.mxu0 0.0
  %4729 = vmatpush1.msra.mxu0 %v4677
  %4730 = vmatprep.subr.mxu0 0.0
  %4731 = vmatpush1.msra.mxu0 %v4678
  %4732 = vmatprep.subr.mxu0 0.0
  %4733 = vmatpush1.msra.mxu0 %v4679
  %4734 = vmatprep.subr.mxu0 0.0
  %4735 = vmatpush1.msra.mxu0 %v4680
  %4736 = vmatprep.subr.mxu0 0.0
  %4737 = vmatpush1.msra.mxu0 %v4681
  %4738 = vmatprep.subr.mxu0 0.0
  %4739 = vmatpush1.msra.mxu0 %v4682
  %4740 = vmatprep.subr.mxu0 0.0
  %4741 = vmatpush1.msra.mxu0 %v4683
  %4742 = vmatprep.subr.mxu0 0.0
  %4743 = vmatpush1.msra.mxu0 %v4684
  %4744 = vmatprep.subr.mxu0 0.0
  %4745 = vmatpush1.msra.mxu0 %v4685
  %4746 = vmatprep.subr.mxu0 0.0
  %4747 = vmatpush1.msra.mxu0 %v4686
  %4748 = vmatprep.subr.mxu0 0.0
  %4749 = vmatpush1.msra.mxu0 %v4687
  %4750 = vmatprep.subr.mxu0 0.0
  %4751 = vmatpush1.msra.mxu0 %v4688
  %4752 = vmatprep.subr.mxu0 0.0
  %4753 = vmatpush1.msra.mxu0 %v4689
  %4754 = vmatprep.mubr.f32.mxu0 %v4625
  %4755 = vmatmul.mubr.f32.gmra.mrb[0].mxu0 %v4623
  %v4756 = vpop.f32.mrb[0].mxu0
  %v4757 = vadd.f32 0.0, %v4756
  %v4758 = vpop.f32.mrb[0].mxu0
  %4759 = vdwg.mxu0
  %4760 = vmatprep.subr.mxu0 0.0
  %4761 = vmatpush1.msra.mxu0 %v4626
  %4762 = vmatprep.subr.mxu0 0.0
  %4763 = vmatpush1.msra.mxu0 %v4627
  %4764 = vmatprep.subr.mxu0 0.0
  %4765 = vmatpush1.msra.mxu0 %v4628
  %4766 = vmatprep.subr.mxu0 0.0
  %4767 = vmatpush1.msra.mxu0 %v4629
  %4768 = vmatprep.subr.mxu0 0.0
  %4769 = vmatpush1.msra.mxu0 %v4630
  %4770 = vmatprep.subr.mxu0 0.0
  %4771 = vmatpush1.msra.mxu0 %v4631
  %4772 = vmatprep.subr.mxu0 0.0
  %4773 = vmatpush1.msra.mxu0 %v4632
  %4774 = vmatprep.subr.mxu0 0.0
  %4775 = vmatpush1.msra.mxu0 %v4633
  %4776 = vmatprep.subr.mxu0 0.0
  %4777 = vmatpush1.msra.mxu0 %v4634
  %4778 = vmatprep.subr.mxu0 0.0
  %4779 = vmatpush1.msra.mxu0 %v4635
  %4780 = vmatprep.subr.mxu0 0.0
  %4781 = vmatpush1.msra.mxu0 %v4636
  %4782 = vmatprep.subr.mxu0 0.0
  %4783 = vmatpush1.msra.mxu0 %v4637
  %4784 = vmatprep.subr.mxu0 0.0
  %4785 = vmatpush1.msra.mxu0 %v4638
  %4786 = vmatprep.subr.mxu0 0.0
  %4787 = vmatpush1.msra.mxu0 %v4639
  %4788 = vmatprep.subr.mxu0 0.0
  %4789 = vmatpush1.msra.mxu0 %v4640
  %4790 = vmatprep.subr.mxu0 0.0
  %4791 = vmatpush1.msra.mxu0 %v4641
  %4792 = vmatprep.subr.mxu0 0.0
  %4793 = vmatpush1.msra.mxu0 %v4642
  %4794 = vmatprep.subr.mxu0 0.0
  %4795 = vmatpush1.msra.mxu0 %v4643
  %4796 = vmatprep.subr.mxu0 0.0
  %4797 = vmatpush1.msra.mxu0 %v4644
  %4798 = vmatprep.subr.mxu0 0.0
  %4799 = vmatpush1.msra.mxu0 %v4645
  %4800 = vmatprep.subr.mxu0 0.0
  %4801 = vmatpush1.msra.mxu0 %v4646
  %4802 = vmatprep.subr.mxu0 0.0
  %4803 = vmatpush1.msra.mxu0 %v4647
  %4804 = vmatprep.subr.mxu0 0.0
  %4805 = vmatpush1.msra.mxu0 %v4648
  %4806 = vmatprep.subr.mxu0 0.0
  %4807 = vmatpush1.msra.mxu0 %v4649
  %4808 = vmatprep.subr.mxu0 0.0
  %4809 = vmatpush1.msra.mxu0 %v4650
  %4810 = vmatprep.subr.mxu0 0.0
  %4811 = vmatpush1.msra.mxu0 %v4651
  %4812 = vmatprep.subr.mxu0 0.0
  %4813 = vmatpush1.msra.mxu0 %v4652
  %4814 = vmatprep.subr.mxu0 0.0
  %4815 = vmatpush1.msra.mxu0 %v4653
  %4816 = vmatprep.subr.mxu0 0.0
  %4817 = vmatpush1.msra.mxu0 %v4654
  %4818 = vmatprep.subr.mxu0 0.0
  %4819 = vmatpush1.msra.mxu0 %v4655
  %4820 = vmatprep.subr.mxu0 0.0
  %4821 = vmatpush1.msra.mxu0 %v4656
  %4822 = vmatprep.subr.mxu0 0.0
  %4823 = vmatpush1.msra.mxu0 %v4657
  %4824 = vmatprep.mubr.f32.mxu0 %v4624
  %4825 = vmatmul.mubr.f32.gmra.mrb[0].mxu0 %v4622
  %v4826 = vpop.f32.mrb[0].mxu0
  %v4827 = vadd.f32 %v4757, %v4826
  %v4828 = vpop.f32.mrb[0].mxu0
  %4829 = vdwg.mxu0
  %v4830 = vsub.f32 %v4622, %v4623
  %v4831 = vsub.f32 %v4624, %v4625
  %v4832 = vand.u32 2147483647, %v4830
  %v4833 = vand.u32 2147483647, %v4831
  %v4834 = vld [vmem:[%s7] sm:$0xff]
  %v4835 = vld [vmem:[%s7 + $0x8] sm:$0xff]
  %v4836 = vld [vmem:[%s7 + $0x10] sm:$0xff]
  %v4837 = vld [vmem:[%s7 + $0x18] sm:$0xff]
  %v4838 = vld [vmem:[%s7 + $0x20] sm:$0xff]
  %v4839 = vld [vmem:[%s7 + $0x28] sm:$0xff]
  %v4840 = vld [vmem:[%s7 + $0x30] sm:$0xff]
  %v4841 = vld [vmem:[%s7 + $0x38] sm:$0xff]
  %v4842 = vld [vmem:[%s7 + $0x40] sm:$0xff]
  %v4843 = vld [vmem:[%s7 + $0x48] sm:$0xff]
  %v4844 = vld [vmem:[%s7 + $0x50] sm:$0xff]
  %v4845 = vld [vmem:[%s7 + $0x58] sm:$0xff]
  %v4846 = vld [vmem:[%s7 + $0x60] sm:$0xff]
  %v4847 = vld [vmem:[%s7 + $0x68] sm:$0xff]
  %v4848 = vld [vmem:[%s7 + $0x70] sm:$0xff]
  %v4849 = vld [vmem:[%s7 + $0x78] sm:$0xff]
  %v4850 = vld [vmem:[%s7 + $0x80] sm:$0xff]
  %v4851 = vld [vmem:[%s7 + $0x88] sm:$0xff]
  %v4852 = vld [vmem:[%s7 + $0x90] sm:$0xff]
  %v4853 = vld [vmem:[%s7 + $0x98] sm:$0xff]
  %v4854 = vld [vmem:[%s7 + $0xa0] sm:$0xff]
  %v4855 = vld [vmem:[%s7 + $0xa8] sm:$0xff]
  %v4856 = vld [vmem:[%s7 + $0xb0] sm:$0xff]
  %v4857 = vld [vmem:[%s7 + $0xb8] sm:$0xff]
  %v4858 = vld [vmem:[%s7 + $0xc0] sm:$0xff]
  %v4859 = vld [vmem:[%s7 + $0xc8] sm:$0xff]
  %v4860 = vld [vmem:[%s7 + $0xd0] sm:$0xff]
  %v4861 = vld [vmem:[%s7 + $0xd8] sm:$0xff]
  %v4862 = vld [vmem:[%s7 + $0xe0] sm:$0xff]
  %v4863 = vld [vmem:[%s7 + $0xe8] sm:$0xff]
  %v4864 = vld [vmem:[%s7 + $0xf0] sm:$0xff]
  %v4865 = vld [vmem:[%s7 + $0xf8] sm:$0xff]
  %4866 = vmatprep.subr.mxu0 0.0
  %4867 = vmatpush1.msra.mxu0 %v4834
  %4868 = vmatprep.subr.mxu0 0.0
  %4869 = vmatpush1.msra.mxu0 %v4835
  %4870 = vmatprep.subr.mxu0 0.0
  %4871 = vmatpush1.msra.mxu0 %v4836
  %4872 = vmatprep.subr.mxu0 0.0
  %4873 = vmatpush1.msra.mxu0 %v4837
  %4874 = vmatprep.subr.mxu0 0.0
  %4875 = vmatpush1.msra.mxu0 %v4838
  %4876 = vmatprep.subr.mxu0 0.0
  %4877 = vmatpush1.msra.mxu0 %v4839
  %4878 = vmatprep.subr.mxu0 0.0
  %4879 = vmatpush1.msra.mxu0 %v4840
  %4880 = vmatprep.subr.mxu0 0.0
  %4881 = vmatpush1.msra.mxu0 %v4841
  %4882 = vmatprep.subr.mxu0 0.0
  %4883 = vmatpush1.msra.mxu0 %v4842
  %4884 = vmatprep.subr.mxu0 0.0
  %4885 = vmatpush1.msra.mxu0 %v4843
  %4886 = vmatprep.subr.mxu0 0.0
  %4887 = vmatpush1.msra.mxu0 %v4844
  %4888 = vmatprep.subr.mxu0 0.0
  %4889 = vmatpush1.msra.mxu0 %v4845
  %4890 = vmatprep.subr.mxu0 0.0
  %4891 = vmatpush1.msra.mxu0 %v4846
  %4892 = vmatprep.subr.mxu0 0.0
  %4893 = vmatpush1.msra.mxu0 %v4847
  %4894 = vmatprep.subr.mxu0 0.0
  %4895 = vmatpush1.msra.mxu0 %v4848
  %4896 = vmatprep.subr.mxu0 0.0
  %4897 = vmatpush1.msra.mxu0 %v4849
  %4898 = vmatprep.subr.mxu0 0.0
  %4899 = vmatpush1.msra.mxu0 %v4850
  %4900 = vmatprep.subr.mxu0 0.0
  %4901 = vmatpush1.msra.mxu0 %v4851
  %4902 = vmatprep.subr.mxu0 0.0
  %4903 = vmatpush1.msra.mxu0 %v4852
  %4904 = vmatprep.subr.mxu0 0.0
  %4905 = vmatpush1.msra.mxu0 %v4853
  %4906 = vmatprep.subr.mxu0 0.0
  %4907 = vmatpush1.msra.mxu0 %v4854
  %4908 = vmatprep.subr.mxu0 0.0
  %4909 = vmatpush1.msra.mxu0 %v4855
  %4910 = vmatprep.subr.mxu0 0.0
  %4911 = vmatpush1.msra.mxu0 %v4856
  %4912 = vmatprep.subr.mxu0 0.0
  %4913 = vmatpush1.msra.mxu0 %v4857
  %4914 = vmatprep.subr.mxu0 0.0
  %4915 = vmatpush1.msra.mxu0 %v4858
  %4916 = vmatprep.subr.mxu0 0.0
  %4917 = vmatpush1.msra.mxu0 %v4859
  %4918 = vmatprep.subr.mxu0 0.0
  %4919 = vmatpush1.msra.mxu0 %v4860
  %4920 = vmatprep.subr.mxu0 0.0
  %4921 = vmatpush1.msra.mxu0 %v4861
  %4922 = vmatprep.subr.mxu0 0.0
  %4923 = vmatpush1.msra.mxu0 %v4862
  %4924 = vmatprep.subr.mxu0 0.0
  %4925 = vmatpush1.msra.mxu0 %v4863
  %4926 = vmatprep.subr.mxu0 0.0
  %4927 = vmatpush1.msra.mxu0 %v4864
  %4928 = vmatprep.subr.mxu0 0.0
  %4929 = vmatpush1.msra.mxu0 %v4865
  %4930 = vmatprep.mubr.f32.mxu0 %v4833
  %4931 = vmatmul.mubr.f32.gmra.mrb[0].mxu0 %v4832
  %v4932 = vpop.f32.mrb[0].mxu0
  %v4933 = vadd.f32 0.0, %v4932
  %v4934 = vpop.f32.mrb[0].mxu0
  %4935 = vdwg.mxu0
  %v4936 = vadd.f32 %v4827, %v4933
  %v4937 = vmul.f32 %v4622, %v4623
  %v4938 = vmul.f32 %v4624, %v4625
  %v4939 = vld [vmem:[%s8] sm:$0xff]
  %v4940 = vld [vmem:[%s8 + $0x8] sm:$0xff]
  %v4941 = vld [vmem:[%s8 + $0x10] sm:$0xff]
  %v4942 = vld [vmem:[%s8 + $0x18] sm:$0xff]
  %v4943 = vld [vmem:[%s8 + $0x20] sm:$0xff]
  %v4944 = vld [vmem:[%s8 + $0x28] sm:$0xff]
  %v4945 = vld [vmem:[%s8 + $0x30] sm:$0xff]
  %v4946 = vld [vmem:[%s8 + $0x38] sm:$0xff]
  %v4947 = vld [vmem:[%s8 + $0x40] sm:$0xff]
  %v4948 = vld [vmem:[%s8 + $0x48] sm:$0xff]
  %v4949 = vld [vmem:[%s8 + $0x50] sm:$0xff]
  %v4950 = vld [vmem:[%s8 + $0x58] sm:$0xff]
  %v4951 = vld [vmem:[%s8 + $0x60] sm:$0xff]
  %v4952 = vld [vmem:[%s8 + $0x68] sm:$0xff]
  %v4953 = vld [vmem:[%s8 + $0x70] sm:$0xff]
  %v4954 = vld [vmem:[%s8 + $0x78] sm:$0xff]
  %v4955 = vld [vmem:[%s8 + $0x80] sm:$0xff]
  %v4956 = vld [vmem:[%s8 + $0x88] sm:$0xff]
  %v4957 = vld [vmem:[%s8 + $0x90] sm:$0xff]
  %v4958 = vld [vmem:[%s8 + $0x98] sm:$0xff]
  %v4959 = vld [vmem:[%s8 + $0xa0] sm:$0xff]
  %v4960 = vld [vmem:[%s8 + $0xa8] sm:$0xff]
  %v4961 = vld [vmem:[%s8 + $0xb0] sm:$0xff]
  %v4962 = vld [vmem:[%s8 + $0xb8] sm:$0xff]
  %v4963 = vld [vmem:[%s8 + $0xc0] sm:$0xff]
  %v4964 = vld [vmem:[%s8 + $0xc8] sm:$0xff]
  %v4965 = vld [vmem:[%s8 + $0xd0] sm:$0xff]
  %v4966 = vld [vmem:[%s8 + $0xd8] sm:$0xff]
  %v4967 = vld [vmem:[%s8 + $0xe0] sm:$0xff]
  %v4968 = vld [vmem:[%s8 + $0xe8] sm:$0xff]
  %v4969 = vld [vmem:[%s8 + $0xf0] sm:$0xff]
  %v4970 = vld [vmem:[%s8 + $0xf8] sm:$0xff]
  %4971 = vmatprep.subr.mxu0 0.0
  %4972 = vmatpush1.msra.mxu0 %v4939
  %4973 = vmatprep.subr.mxu0 0.0
  %4974 = vmatpush1.msra.mxu0 %v4940
  %4975 = vmatprep.subr.mxu0 0.0
  %4976 = vmatpush1.msra.mxu0 %v4941
  %4977 = vmatprep.subr.mxu0 0.0
  %4978 = vmatpush1.msra.mxu0 %v4942
  %4979 = vmatprep.subr.mxu0 0.0
  %4980 = vmatpush1.msra.mxu0 %v4943
  %4981 = vmatprep.subr.mxu0 0.0
  %4982 = vmatpush1.msra.mxu0 %v4944
  %4983 = vmatprep.subr.mxu0 0.0
  %4984 = vmatpush1.msra.mxu0 %v4945
  %4985 = vmatprep.subr.mxu0 0.0
  %4986 = vmatpush1.msra.mxu0 %v4946
  %4987 = vmatprep.subr.mxu0 0.0
  %4988 = vmatpush1.msra.mxu0 %v4947
  %4989 = vmatprep.subr.mxu0 0.0
  %4990 = vmatpush1.msra.mxu0 %v4948
  %4991 = vmatprep.subr.mxu0 0.0
  %4992 = vmatpush1.msra.mxu0 %v4949
  %4993 = vmatprep.subr.mxu0 0.0
  %4994 = vmatpush1.msra.mxu0 %v4950
  %4995 = vmatprep.subr.mxu0 0.0
  %4996 = vmatpush1.msra.mxu0 %v4951
  %4997 = vmatprep.subr.mxu0 0.0
  %4998 = vmatpush1.msra.mxu0 %v4952
  %4999 = vmatprep.subr.mxu0 0.0
  %5000 = vmatpush1.msra.mxu0 %v4953
  %5001 = vmatprep.subr.mxu0 0.0
  %5002 = vmatpush1.msra.mxu0 %v4954
  %5003 = vmatprep.subr.mxu0 0.0
  %5004 = vmatpush1.msra.mxu0 %v4955
  %5005 = vmatprep.subr.mxu0 0.0
  %5006 = vmatpush1.msra.mxu0 %v4956
  %5007 = vmatprep.subr.mxu0 0.0
  %5008 = vmatpush1.msra.mxu0 %v4957
  %5009 = vmatprep.subr.mxu0 0.0
  %5010 = vmatpush1.msra.mxu0 %v4958
  %5011 = vmatprep.subr.mxu0 0.0
  %5012 = vmatpush1.msra.mxu0 %v4959
  %5013 = vmatprep.subr.mxu0 0.0
  %5014 = vmatpush1.msra.mxu0 %v4960
  %5015 = vmatprep.subr.mxu0 0.0
  %5016 = vmatpush1.msra.mxu0 %v4961
  %5017 = vmatprep.subr.mxu0 0.0
  %5018 = vmatpush1.msra.mxu0 %v4962
  %5019 = vmatprep.subr.mxu0 0.0
  %5020 = vmatpush1.msra.mxu0 %v4963
  %5021 = vmatprep.subr.mxu0 0.0
  %5022 = vmatpush1.msra.mxu0 %v4964
  %5023 = vmatprep.subr.mxu0 0.0
  %5024 = vmatpush1.msra.mxu0 %v4965
  %5025 = vmatprep.subr.mxu0 0.0
  %5026 = vmatpush1.msra.mxu0 %v4966
  %5027 = vmatprep.subr.mxu0 0.0
  %5028 = vmatpush1.msra.mxu0 %v4967
  %5029 = vmatprep.subr.mxu0 0.0
  %5030 = vmatpush1.msra.mxu0 %v4968
  %5031 = vmatprep.subr.mxu0 0.0
  %5032 = vmatpush1.msra.mxu0 %v4969
  %5033 = vmatprep.subr.mxu0 0.0
  %5034 = vmatpush1.msra.mxu0 %v4970
  %5035 = vmatprep.mubr.f32.mxu0 %v4938
  %5036 = vmatmul.mubr.f32.gmra.mrb[0].mxu0 %v4937
  %v5037 = vpop.f32.mrb[0].mxu0
  %v5038 = vadd.f32 0.0, %v5037
  %v5039 = vpop.f32.mrb[0].mxu0
  %5040 = vdwg.mxu0
  %v5041 = vadd.f32 %v4936, %v5038
  %v5042 = vld [vmem:[%s9] sm:$0x1]
  %v5044 = vlaneseq
  %v5045 = vshrl.u32 %v5044, 7
  %v5046 = vsub.s32 0, %v5045
  %v5047 = vrot.slane %v5042, %v5046
  %v5049 = vadd.f32 %v5041, %v5047
  %v5050 = vtanh.pop %v5049
  %v5051 = vld [vmem:[%s10] sm:$0xff]
  %v5052 = vld [vmem:[%s10 + $0x8] sm:$0xff]
  %v5053 = vld [vmem:[%s10 + $0x10] sm:$0xff]
  %v5054 = vld [vmem:[%s10 + $0x18] sm:$0xff]
  %v5055 = vld [vmem:[%s10 + $0x20] sm:$0xff]
  %v5056 = vld [vmem:[%s10 + $0x28] sm:$0xff]
  %v5057 = vld [vmem:[%s10 + $0x30] sm:$0xff]
  %v5058 = vld [vmem:[%s10 + $0x38] sm:$0xff]
  %v5059 = vld [vmem:[%s10 + $0x40] sm:$0xff]
  %v5060 = vld [vmem:[%s10 + $0x48] sm:$0xff]
  %v5061 = vld [vmem:[%s10 + $0x50] sm:$0xff]
  %v5062 = vld [vmem:[%s10 + $0x58] sm:$0xff]
  %v5063 = vld [vmem:[%s10 + $0x60] sm:$0xff]
  %v5064 = vld [vmem:[%s10 + $0x68] sm:$0xff]
  %v5065 = vld [vmem:[%s10 + $0x70] sm:$0xff]
  %v5066 = vld [vmem:[%s10 + $0x78] sm:$0xff]
  %v5067 = vld [vmem:[%s11] sm:$0x1]
  %v5069 = vlaneseq
  %v5070 = vshrl.u32 %v5069, 7
  %v5071 = vsub.s32 0, %v5070
  %v5072 = vrot.slane %v5067, %v5071
  %5074 = vmatprep.subr.mxu0 0.0
  %5075 = vmatpush1.msra.mxu0 %v5051
  %5076 = vmatprep.subr.mxu0 0.0
  %5077 = vmatpush1.msra.mxu0 %v5052
  %5078 = vmatprep.subr.mxu0 0.0
  %5079 = vmatpush1.msra.mxu0 %v5053
  %5080 = vmatprep.subr.mxu0 0.0
  %5081 = vmatpush1.msra.mxu0 %v5054
  %5082 = vmatprep.subr.mxu0 0.0
  %5083 = vmatpush1.msra.mxu0 %v5055
  %5084 = vmatprep.subr.mxu0 0.0
  %5085 = vmatpush1.msra.mxu0 %v5056
  %5086 = vmatprep.subr.mxu0 0.0
  %5087 = vmatpush1.msra.mxu0 %v5057
  %5088 = vmatprep.subr.mxu0 0.0
  %5089 = vmatpush1.msra.mxu0 %v5058
  %5090 = vmatprep.subr.mxu0 0.0
  %5091 = vmatpush1.msra.mxu0 %v5059
  %5092 = vmatprep.subr.mxu0 0.0
  %5093 = vmatpush1.msra.mxu0 %v5060
  %5094 = vmatprep.subr.mxu0 0.0
  %5095 = vmatpush1.msra.mxu0 %v5061
  %5096 = vmatprep.subr.mxu0 0.0
  %5097 = vmatpush1.msra.mxu0 %v5062
  %5098 = vmatprep.subr.mxu0 0.0
  %5099 = vmatpush1.msra.mxu0 %v5063
  %5100 = vmatprep.subr.mxu0 0.0
  %5101 = vmatpush1.msra.mxu0 %v5064
  %5102 = vmatprep.subr.mxu0 0.0
  %5103 = vmatpush1.msra.mxu0 %v5065
  %5104 = vmatprep.subr.mxu0 0.0
  %5105 = vmatpush1.msra.mxu0 %v5066
  %5106 = vmatprep.subr.mxu0 0.0
  %5107 = vmatpush1.msra.mxu0 0.0
  %5108 = vmatprep.subr.mxu0 0.0
  %5109 = vmatpush1.msra.mxu0 0.0
  %5110 = vmatprep.subr.mxu0 0.0
  %5111 = vmatpush1.msra.mxu0 0.0
  %5112 = vmatprep.subr.mxu0 0.0
  %5113 = vmatpush1.msra.mxu0 0.0
  %5114 = vmatprep.subr.mxu0 0.0
  %5115 = vmatpush1.msra.mxu0 0.0
  %5116 = vmatprep.subr.mxu0 0.0
  %5117 = vmatpush1.msra.mxu0 0.0
  %5118 = vmatprep.subr.mxu0 0.0
  %5119 = vmatpush1.msra.mxu0 0.0
  %5120 = vmatprep.subr.mxu0 0.0
  %5121 = vmatpush1.msra.mxu0 0.0
  %5122 = vmatprep.subr.mxu0 0.0
  %5123 = vmatpush1.msra.mxu0 0.0
  %5124 = vmatprep.subr.mxu0 0.0
  %5125 = vmatpush1.msra.mxu0 0.0
  %5126 = vmatprep.subr.mxu0 0.0
  %5127 = vmatpush1.msra.mxu0 0.0
  %5128 = vmatprep.subr.mxu0 0.0
  %5129 = vmatpush1.msra.mxu0 0.0
  %5130 = vmatprep.subr.mxu0 0.0
  %5131 = vmatpush1.msra.mxu0 0.0
  %5132 = vmatprep.subr.mxu0 0.0
  %5133 = vmatpush1.msra.mxu0 0.0
  %5134 = vmatprep.subr.mxu0 0.0
  %5135 = vmatpush1.msra.mxu0 0.0
  %5136 = vmatprep.subr.mxu0 0.0
  %5137 = vmatpush1.msra.mxu0 0.0
  %5138 = vmatprep.mubr.f32.mxu0 0.0
  %5139 = vmatmul.mubr.f32.gmra.mrb[0].mxu0 %v5050
  %v5140 = vpop.f32.mrb[0].mxu0
  %v5141 = vadd.f32 %v5072, %v5140
  %v5142 = vpop.f32.mrb[0].mxu0
  %5143 = vdwg.mxu0
  %v5144 = vtanh.pop %v5141
  %v5145 = vld [vmem:[%s12] sm:$0xff]
  %v5146 = vld [vmem:[%s12 + $0x8] sm:$0xff]
  %v5147 = vld [vmem:[%s12 + $0x10] sm:$0xff]
  %v5148 = vld [vmem:[%s12 + $0x18] sm:$0xff]
  %v5149 = vld [vmem:[%s12 + $0x20] sm:$0xff]
  %v5150 = vld [vmem:[%s12 + $0x28] sm:$0xff]
  %v5151 = vld [vmem:[%s12 + $0x30] sm:$0xff]
  %v5152 = vld [vmem:[%s12 + $0x38] sm:$0xff]
  %v5153 = vld [vmem:[%s12 + $0x40] sm:$0xff]
  %v5154 = vld [vmem:[%s12 + $0x48] sm:$0xff]
  %v5155 = vld [vmem:[%s12 + $0x50] sm:$0xff]
  %v5156 = vld [vmem:[%s12 + $0x58] sm:$0xff]
  %v5157 = vld [vmem:[%s12 + $0x60] sm:$0xff]
  %v5158 = vld [vmem:[%s12 + $0x68] sm:$0xff]
  %v5159 = vld [vmem:[%s12 + $0x70] sm:$0xff]
  %v5160 = vld [vmem:[%s12 + $0x78] sm:$0xff]
  %v5161 = vld [vmem:[%s13] sm:$0x1]
  %v5163 = vlaneseq
  %v5164 = vshrl.u32 %v5163, 7
  %v5165 = vsub.s32 0, %v5164
  %v5166 = vrot.slane %v5161, %v5165
  %5168 = vmatprep.subr.mxu0 0.0
  %5169 = vmatpush1.msra.mxu0 %v5145
  %5170 = vmatprep.subr.mxu0 0.0
  %5171 = vmatpush1.msra.mxu0 %v5146
  %5172 = vmatprep.subr.mxu0 0.0
  %5173 = vmatpush1.msra.mxu0 %v5147
  %5174 = vmatprep.subr.mxu0 0.0
  %5175 = vmatpush1.msra.mxu0 %v5148
  %5176 = vmatprep.subr.mxu0 0.0
  %5177 = vmatpush1.msra.mxu0 %v5149
  %5178 = vmatprep.subr.mxu0 0.0
  %5179 = vmatpush1.msra.mxu0 %v5150
  %5180 = vmatprep.subr.mxu0 0.0
  %5181 = vmatpush1.msra.mxu0 %v5151
  %5182 = vmatprep.subr.mxu0 0.0
  %5183 = vmatpush1.msra.mxu0 %v5152
  %5184 = vmatprep.subr.mxu0 0.0
  %5185 = vmatpush1.msra.mxu0 %v5153
  %5186 = vmatprep.subr.mxu0 0.0
  %5187 = vmatpush1.msra.mxu0 %v5154
  %5188 = vmatprep.subr.mxu0 0.0
  %5189 = vmatpush1.msra.mxu0 %v5155
  %5190 = vmatprep.subr.mxu0 0.0
  %5191 = vmatpush1.msra.mxu0 %v5156
  %5192 = vmatprep.subr.mxu0 0.0
  %5193 = vmatpush1.msra.mxu0 %v5157
  %5194 = vmatprep.subr.mxu0 0.0
  %5195 = vmatpush1.msra.mxu0 %v5158
  %5196 = vmatprep.subr.mxu0 0.0
  %5197 = vmatpush1.msra.mxu0 %v5159
  %5198 = vmatprep.subr.mxu0 0.0
  %5199 = vmatpush1.msra.mxu0 %v5160
  %5200 = vmatprep.subr.mxu0 0.0
  %5201 = vmatpush1.msra.mxu0 0.0
  %5202 = vmatprep.subr.mxu0 0.0
  %5203 = vmatpush1.msra.mxu0 0.0
  %5204 = vmatprep.subr.mxu0 0.0
  %5205 = vmatpush1.msra.mxu0 0.0
  %5206 = vmatprep.subr.mxu0 0.0
  %5207 = vmatpush1.msra.mxu0 0.0
  %5208 = vmatprep.subr.mxu0 0.0
  %5209 = vmatpush1.msra.mxu0 0.0
  %5210 = vmatprep.subr.mxu0 0.0
  %5211 = vmatpush1.msra.mxu0 0.0
  %5212 = vmatprep.subr.mxu0 0.0
  %5213 = vmatpush1.msra.mxu0 0.0
  %5214 = vmatprep.subr.mxu0 0.0
  %5215 = vmatpush1.msra.mxu0 0.0
  %5216 = vmatprep.subr.mxu0 0.0
  %5217 = vmatpush1.msra.mxu0 0.0
  %5218 = vmatprep.subr.mxu0 0.0
  %5219 = vmatpush1.msra.mxu0 0.0
  %5220 = vmatprep.subr.mxu0 0.0
  %5221 = vmatpush1.msra.mxu0 0.0
  %5222 = vmatprep.subr.mxu0 0.0
  %5223 = vmatpush1.msra.mxu0 0.0
  %5224 = vmatprep.subr.mxu0 0.0
  %5225 = vmatpush1.msra.mxu0 0.0
  %5226 = vmatprep.subr.mxu0 0.0
  %5227 = vmatpush1.msra.mxu0 0.0
  %5228 = vmatprep.subr.mxu0 0.0
  %5229 = vmatpush1.msra.mxu0 0.0
  %5230 = vmatprep.subr.mxu0 0.0
  %5231 = vmatpush1.msra.mxu0 0.0
  %5232 = vmatprep.mubr.f32.mxu0 0.0
  %5233 = vmatmul.mubr.f32.gmra.mrb[0].mxu0 %v5144
  %v5234 = vpop.f32.mrb[0].mxu0
  %v5235 = vadd.f32 %v5166, %v5234
  %v5236 = vpop.f32.mrb[0].mxu0
  %5237 = vdwg.mxu0
  %5238 = vst [vmem:[%s14] sm:$0xff] %v5235
  // Predicated region
  $region58: #{nlinet_forward.1} parent=0 // pred_check
    _
  $region59: #{nlinet_forward.1} parent=0 // pred_check_branch
    %5240 = sbr.rel (0) target = $region61
  $region60: #{nlinet_forward.1} parent=0 // pred_region
    _
  $region61: #{nlinet_forward.1} parent=0 // pred_fallthru
    _
  // Predicated region
  $region62: #{nlinet_forward.1} parent=0 // pred_check
    _
  $region63: #{nlinet_forward.1} parent=0 // pred_check_branch
    %5242 = sbr.rel (0) target = $region65
  $region64: #{nlinet_forward.1} parent=0 // pred_region
    _
  $region65: #{nlinet_forward.1} parent=0 // pred_fallthru
    _

</llo_original>
